<compile_context>
chip_gen: v7x
topology: tpu7x:2x2x1
jax: 0.10.0
libtpu: 0.0.40
codegen_flags: <defaults>
</compile_context>

<pallas_src>
import math

import jax
import jax.numpy as jnp
from jax import lax
from jax.experimental import pallas as pl
from jax.experimental.pallas import tpu as pltpu


def _round_up(x, m):
    return ((x + m - 1) // m) * m


# ------------------------------ fused kernel ------------------------------

def make_fused_kernel(S, L, vocab, E, Ep, H, nlayers):
    """Whole StackedBert forward (file-0 rows only) in one kernel.

    S = data batch B (transformer seq length), L = tokens per line,
    E = real hidden width, Ep = lane-padded width (128), H = heads.
    Invariant: padded lanes (>= E, or >= Dh inside a head block) are zero.
    """
    HB = 128                      # per-head lane block width (vreg aligned)
    eps = 1e-5
    inv_E = 1.0 / float(E)
    f32 = jnp.float32
    NEG = -1e30                   # f32 additive mask (reduce if cast to bf16)

    def masked_layernorm(z, w, b, lane_mask):
        # z's padded lanes are zero by construction -> sum(z)/E is the exact
        # mean over the real E features; variance is masked explicitly.
        mu = jnp.sum(z, axis=-1, keepdims=True) * inv_E
        d = (z - mu) * lane_mask
        var = jnp.sum(d * d, axis=-1, keepdims=True) * inv_E
        return d * lax.rsqrt(var + eps) * w + b

    def kernel(ids_ref, segs_ref, mskw_ref,                       # SMEM
               table_ref, pool_wt_ref, pool_b_ref, pe_ref,        # VMEM
               wqkv_ref, bqkv_ref, wo_ref, bo_ref,
               ln1w_ref, ln1b_ref, w1_ref, b1_ref, w2_ref, b2_ref,
               ln2w_ref, ln2b_ref, dec_wt_ref, dec_b_ref,
               logits_ref, hid_ref):
        lane_mask = (lax.broadcasted_iota(jnp.int32, (1, Ep), 1) < E).astype(f32)

        # ---- synthetic sentence encoder (file-0 lines only) ---------------
        # TODO(synk): BertSentenceEncoder.from_pretrained (full pretrained
        # BERT) is replaced by embedding + masked mean pool + tanh(linear).
        # Token / segment ids come from SMEM; rows are gathered directly from
        # the merged padded [Vp, Ep] table (no dense one-hot, vocab-scalable).
        rows = []
        for s in range(S):
            acc = jnp.zeros((1, Ep), f32)
            for l in range(L):
                w = mskw_ref[s, l]                     # mask/count weight
                tok = ids_ref[s, l]
                seg = segs_ref[s, l]
                emb = (table_ref[pl.ds(tok, 1), :]
                       + table_ref[pl.ds(vocab + seg, 1), :])
                acc = acc + w * emb
            rows.append(acc)
        pooled = jnp.concatenate(rows, axis=0)                     # [S, Ep]

        x = jnp.tanh(jnp.dot(pooled, pool_wt_ref[...],
                             preferred_element_type=f32) + pool_b_ref[...])

        # ---- positional encoding (dropout = identity, eval mode) ----------
        h = x + pe_ref[...]                                        # [S, Ep]

        # ---- causal additive mask, built in-kernel (no [S,S] DMA) ---------
        ri = lax.broadcasted_iota(jnp.int32, (S, S), 0)
        ci = lax.broadcasted_iota(jnp.int32, (S, S), 1)
        amask = jnp.where(ci <= ri, 0.0, NEG).astype(f32)

        # ---- nlayers post-norm transformer encoder layers -----------------
        # (static Python loop is fine at nlayers=2; switch to a layer grid
        #  with streamed weights before scaling nlayers / E up.)
        for li in range(nlayers):
            # fused QKV projection; each head's Q/K/V lives in its own
            # 128-lane block so all per-head slices below are vreg aligned.
            qkv = jnp.dot(h, wqkv_ref[li],
                          preferred_element_type=f32) + bqkv_ref[li]

            attn = jnp.zeros((S, Ep), f32)
            for hh in range(H):
                base = 3 * hh * HB
                qh = qkv[:, base:base + HB]            # q-scale folded in
                kh = qkv[:, base + HB:base + 2 * HB]
                vh = qkv[:, base + 2 * HB:base + 3 * HB]
                sc = lax.dot_general(qh, kh, (((1,), (1,)), ((), ())),
                                     preferred_element_type=f32)   # [S, S]
                sc = sc + amask
                sc = sc - jnp.max(sc, axis=-1, keepdims=True)
                p = jnp.exp(sc)
                # approx reciprocal on the EUP; tiny deviation vs exact softmax
                p = p * pl.reciprocal(jnp.sum(p, axis=-1, keepdims=True),
                                      approx=True)
                ctx = jnp.dot(p, vh, preferred_element_type=f32)   # [S, 128]
                # accumulate through this head's [128, Ep] W_O block
                # instead of concatenating 8-lane head outputs.
                attn = attn + jnp.dot(ctx, wo_ref[li * H + hh],
                                      preferred_element_type=f32)
            attn = attn + bo_ref[li]
            h1 = masked_layernorm(h + attn, ln1w_ref[li], ln1b_ref[li],
                                  lane_mask)

            f = jnp.maximum(
                jnp.dot(h1, w1_ref[li], preferred_element_type=f32)
                + b1_ref[li], 0.0)
            f = jnp.dot(f, w2_ref[li], preferred_element_type=f32) + b2_ref[li]
            h = masked_layernorm(h1 + f, ln2w_ref[li], ln2b_ref[li], lane_mask)

        # ---- DOCLEVEL slice is already "all rows" (file 0 only), decoder ---
        hid_ref[...] = h.astype(hid_ref.dtype)
        logits_ref[...] = (jnp.dot(h, dec_wt_ref[...],
                                   preferred_element_type=f32)
                           + dec_b_ref[...]).astype(logits_ref.dtype)

    return kernel


# --------------------------- parameters & packing ---------------------------

def positional_encoding(seq_len, d_model):
    position = jnp.arange(seq_len, dtype=jnp.float32)[:, None]
    div_term = jnp.exp(jnp.arange(0, d_model, 2, dtype=jnp.float32)
                       * (-math.log(10000.0) / d_model))
    pe = jnp.zeros((seq_len, d_model), jnp.float32)
    pe = pe.at[:, 0::2].set(jnp.sin(position * div_term))
    pe = pe.at[:, 1::2].set(jnp.cos(position * div_term))
    return pe                                   # [seq_len, d_model]


def init_params(key, vocab, E, FF, nlayers, ntoken):
    """Logical (unpadded) parameters; weights pre-transposed to [in, out]."""
    def unif(k, shape, s=0.1):
        return jax.random.uniform(k, shape, jnp.float32, -s, s)

    keys = jax.random.split(key, 4 + nlayers)
    params = {
        'word_emb': unif(keys[0], (vocab, E)),
        'type_emb': unif(keys[1], (2, E)),
        'pool_wt': unif(keys[2], (E, E)),
        'pool_b': jnp.zeros((1, E), jnp.float32),
        'dec_wt': unif(keys[3], (E, ntoken)),             # decoder.weight.T
        'dec_b': jnp.zeros((1, ntoken), jnp.float32),     # decoder.bias.zero_()
        'layers': [],
    }
    for li in range(nlayers):
        lk = jax.random.split(keys[4 + li], 4)
        params['layers'].append(dict(
            wqkv_t=unif(lk[0], (E, 3 * E)),
            bqkv=jnp.zeros((1, 3 * E), jnp.float32),
            wo_t=unif(lk[1], (E, E)),
            bo=jnp.zeros((1, E), jnp.float32),
            ln1w=jnp.ones((1, E), jnp.float32),
            ln1b=jnp.zeros((1, E), jnp.float32),
            w1_t=unif(lk[2], (E, FF)),
            b1=jnp.zeros((1, FF), jnp.float32),
            w2_t=unif(lk[3], (FF, E)),
            b2=jnp.zeros((1, E), jnp.float32),
            ln2w=jnp.ones((1, E), jnp.float32),
            ln2b=jnp.zeros((1, E), jnp.float32),
        ))
    return params


def pack_params(params, cfg, vocab):
    """Zero-pad lane dims to 128 multiples, fold 1/sqrt(Dh) into the Q
    projection, merge word+type embeddings, place every head's Q/K/V in its
    own 128-lane-aligned column block, split W_O into per-head [128, Ep]
    blocks, and stack per-layer weights along a leading axis (done once)."""
    E, H, FF, ntoken = cfg['ninp'], cfg['nhead'], cfg['nhid'], cfg['ntoken']
    Dh = E // H
    HB = 128
    Ep = _round_up(E, 128)
    FFp = _round_up(FF, 128)
    Np = _round_up(ntoken, 128)
    Vp = _round_up(vocab + 2, 128)
    qscale = 1.0 / math.sqrt(Dh)
    f32 = jnp.float32

    def pad2(a, r, c):
        return jnp.zeros((r, c), f32).at[:a.shape[0], :a.shape[1]].set(a)

    table = (jnp.zeros((Vp, Ep), f32)
             .at[:vocab, :E].set(params['word_emb'])
             .at[vocab:vocab + 2, :E].set(params['type_emb']))

    packed = dict(
        table=table,
        pool_wt=pad2(params['pool_wt'], Ep, Ep),
        pool_b=pad2(params['pool_b'], 1, Ep),
        dec_wt=pad2(params['dec_wt'], Ep, Np),
        dec_b=pad2(params['dec_b'], 1, Np),
    )

    wqkv_l, bqkv_l, wo_l = [], [], []
    stacks = {k: [] for k in ('bo', 'ln1w', 'ln1b', 'w1', 'b1',
                              'w2', 'b2', 'ln2w', 'ln2b')}
    for lyr in params['layers']:
        wqkv = jnp.zeros((Ep, 3 * H * HB), f32)
        bqkv = jnp.zeros((1, 3 * H * HB), f32)
        for hh in range(H):
            base = 3 * hh * HB
            q0, q1 = hh * Dh, (hh + 1) * Dh
            wqkv = (wqkv
                    .at[:E, base:base + Dh]
                    .set(lyr['wqkv_t'][:, q0:q1] * qscale)                 # Q_h
                    .at[:E, base + HB:base + HB + Dh]
                    .set(lyr['wqkv_t'][:, E + q0:E + q1])                  # K_h
                    .at[:E, base + 2 * HB:base + 2 * HB + Dh]
                    .set(lyr['wqkv_t'][:, 2 * E + q0:2 * E + q1]))         # V_h
            bqkv = (bqkv
                    .at[:, base:base + Dh].set(lyr['bqkv'][:, q0:q1] * qscale)
                    .at[:, base + HB:base + HB + Dh]
                    .set(lyr['bqkv'][:, E + q0:E + q1])
                    .at[:, base + 2 * HB:base + 2 * HB + Dh]
                    .set(lyr['bqkv'][:, 2 * E + q0:2 * E + q1]))
            wo_l.append(jnp.zeros((HB, Ep), f32)
                        .at[:Dh, :E].set(lyr['wo_t'][q0:q1, :]))
        wqkv_l.append(wqkv)
        bqkv_l.append(bqkv)
        stacks['bo'].append(pad2(lyr['bo'], 1, Ep))
        stacks['ln1w'].append(pad2(lyr['ln1w'], 1, Ep))
        stacks['ln1b'].append(pad2(lyr['ln1b'], 1, Ep))
        stacks['w1'].append(pad2(lyr['w1_t'], Ep, FFp))
        stacks['b1'].append(pad2(lyr['b1'], 1, FFp))
        stacks['w2'].append(pad2(lyr['w2_t'], FFp, Ep))
        stacks['b2'].append(pad2(lyr['b2'], 1, Ep))
        stacks['ln2w'].append(pad2(lyr['ln2w'], 1, Ep))
        stacks['ln2b'].append(pad2(lyr['ln2b'], 1, Ep))

    packed['wqkv'] = jnp.stack(wqkv_l, axis=0)      # [nlayers, Ep, 3*H*128]
    packed['bqkv'] = jnp.stack(bqkv_l, axis=0)      # [nlayers, 1, 3*H*128]
    packed['wo'] = jnp.stack(wo_l, axis=0)          # [nlayers*H, 128, Ep]
    for k, v in stacks.items():
        packed[k] = jnp.stack(v, axis=0)
    return packed


# ------------------------------ forward wrapper ------------------------------

def make_forward(cfg, vocab):
    E, H = cfg['ninp'], cfg['nhead']
    ntoken, nlayers = cfg['ntoken'], cfg['nlayers']
    Ep = _round_up(E, 128)
    Np = _round_up(ntoken, 128)

    def forward(packed, input_ids, segment_ids, input_mask):
        B, F, L = input_ids.shape

        # After permute(1,0,2) the transformer sees [seq=B, batch=F, E]; the
        # [B,B] causal mask acts per file (no cross-file attention) and only
        # batch index 0 (file 0) reaches the DOCLEVEL slice + decoder, so
        # running everything on file-0 lines only is numerically exact and an
        # F-fold work cut.
        ids0 = input_ids[:, 0, :].astype(jnp.int32)          # [B, L]
        segs0 = segment_ids[:, 0, :].astype(jnp.int32)       # [B, L]
        msk0 = input_mask[:, 0, :].astype(jnp.float32)       # [B, L]
        cnt = jnp.maximum(jnp.sum(msk0, axis=-1, keepdims=True), 1.0)
        mskw = (msk0 / cnt).astype(jnp.float32)              # masked-mean weights

        # positional encoding for seq positions 0..B-1, zero-padded to Ep
        # (shape-only -> compile-time constant under jit)
        pe = positional_encoding(B, E)
        pe_p = jnp.zeros((B, Ep), jnp.float32).at[:, :E].set(pe)

        kernel = make_fused_kernel(B, L, vocab, E, Ep, H, nlayers)
        logits_p, hid_p = pl.pallas_call(
            kernel,
            out_shape=(jax.ShapeDtypeStruct((B, Np), jnp.float32),
                       jax.ShapeDtypeStruct((B, Ep), jnp.float32)),
            in_specs=([pl.BlockSpec(memory_space=pltpu.MemorySpace.SMEM)] * 3
                      + [pl.BlockSpec(memory_space=pltpu.MemorySpace.VMEM)] * 18),
            out_specs=(pl.BlockSpec(memory_space=pltpu.MemorySpace.VMEM),
                       pl.BlockSpec(memory_space=pltpu.MemorySpace.VMEM)),
        )(ids0, segs0, mskw,
          packed['table'], packed['pool_wt'], packed['pool_b'], pe_p,
          packed['wqkv'], packed['bqkv'], packed['wo'], packed['bo'],
          packed['ln1w'], packed['ln1b'], packed['w1'], packed['b1'],
          packed['w2'], packed['b2'], packed['ln2w'], packed['ln2b'],
          packed['dec_wt'], packed['dec_b'])

        # slice padded lanes back to the logical widths
        return logits_p[:, :ntoken], hid_p[:, :E]

    return forward


# --------------------------------- main ---------------------------------

if __name__ == "__main__":
    # synthetic args (args.ntoken, args.ninp, args.nhead, args.nhid, args.nlayers)
    cfg = dict(ntoken=100, ninp=32, nhead=4, nhid=64, nlayers=2, dropout=0.1)
    B, F, L = 2, 4, 8          # batch, files-per-commit, tokens-per-line
    vocab = 100

    key = jax.random.PRNGKey(0)
    kp, kid, km = jax.random.split(key, 3)

    params = init_params(kp, vocab, cfg['ninp'], cfg['nhid'],
                         cfg['nlayers'], cfg['ntoken'])
    packed = pack_params(params, cfg, vocab)

    input_ids = jax.random.randint(kid, (B, F, L), 0, vocab)
    segment_ids = jnp.zeros((B, F, L), jnp.int32)
    input_mask = (jax.random.uniform(km, (B, F, L)) < 0.8).astype(jnp.int32)
    input_mask = input_mask.at[:, :, 0].set(1)

    forward = jax.jit(make_forward(cfg, vocab))
    logits, output = forward(packed, input_ids, segment_ids, input_mask)
    jax.block_until_ready((logits, output))

    assert logits.shape == (B, cfg['ntoken'])
    assert output.shape == (B, cfg['ninp'])
    assert bool(jnp.all(jnp.isfinite(logits)))
    assert bool(jnp.all(jnp.isfinite(output)))
    print("KERNEL_OK")
</pallas_src>

<mosaic_0001>
module attributes {stable_mosaic.version = 11 : i64} {
  func.func @kernel(%arg0: memref<2x8xi32, #tpu.memory_space<smem>>, %arg1: memref<2x8xi32, #tpu.memory_space<smem>>, %arg2: memref<2x8xf32, #tpu.memory_space<smem>>, %arg3: memref<128x128xf32, #tpu.memory_space<vmem>>, %arg4: memref<128x128xf32, #tpu.memory_space<vmem>>, %arg5: memref<1x128xf32, #tpu.memory_space<vmem>>, %arg6: memref<2x128xf32, #tpu.memory_space<vmem>>, %arg7: memref<2x128x1536xf32, #tpu.memory_space<vmem>>, %arg8: memref<2x1x1536xf32, #tpu.memory_space<vmem>>, %arg9: memref<8x128x128xf32, #tpu.memory_space<vmem>>, %arg10: memref<2x1x128xf32, #tpu.memory_space<vmem>>, %arg11: memref<2x1x128xf32, #tpu.memory_space<vmem>>, %arg12: memref<2x1x128xf32, #tpu.memory_space<vmem>>, %arg13: memref<2x128x128xf32, #tpu.memory_space<vmem>>, %arg14: memref<2x1x128xf32, #tpu.memory_space<vmem>>, %arg15: memref<2x128x128xf32, #tpu.memory_space<vmem>>, %arg16: memref<2x1x128xf32, #tpu.memory_space<vmem>>, %arg17: memref<2x1x128xf32, #tpu.memory_space<vmem>>, %arg18: memref<2x1x128xf32, #tpu.memory_space<vmem>>, %arg19: memref<128x128xf32, #tpu.memory_space<vmem>>, %arg20: memref<1x128xf32, #tpu.memory_space<vmem>>, %arg21: memref<2x128xf32, #tpu.memory_space<vmem>>, %arg22: memref<2x128xf32, #tpu.memory_space<vmem>>) attributes {dimension_semantics = [], scalar_prefetch = 0 : i64, scratch_operands = 0 : i64, tpu.core_type = #tpu.core_type<tc>} {
    %0 = tpu.iota {dimensions = array<i32: 1>} : vector<1x128xi32>
    %c32_i32 = arith.constant 32 : i32
    %1 = vector.broadcast %c32_i32 : i32 to vector<1x128xi32>
    %2 = arith.cmpi slt, %0, %1 : vector<1x128xi32>
    %3 = arith.extui %2 : vector<1x128xi1> to vector<1x128xi32>
    %4 = arith.sitofp %3 : vector<1x128xi32> to vector<1x128xf32>
    %cst = arith.constant 0.000000e+00 : f32
    %5 = vector.broadcast %cst : f32 to vector<1x128xf32>
    %c0 = arith.constant 0 : index
    %c0_0 = arith.constant 0 : index
    %6 = memref.load %arg2[%c0, %c0_0] : memref<2x8xf32, #tpu.memory_space<smem>>
    %c0_1 = arith.constant 0 : index
    %c0_2 = arith.constant 0 : index
    %7 = memref.load %arg0[%c0_1, %c0_2] : memref<2x8xi32, #tpu.memory_space<smem>>
    %c0_3 = arith.constant 0 : index
    %c0_4 = arith.constant 0 : index
    %8 = memref.load %arg1[%c0_3, %c0_4] : memref<2x8xi32, #tpu.memory_space<smem>>
    %9 = arith.index_cast %7 : i32 to index
    %c0_5 = arith.constant 0 : index
    %10 = vector.load %arg3[%9, %c0_5] : memref<128x128xf32, #tpu.memory_space<vmem>>, vector<1x128xf32>
    %c100_i32 = arith.constant 100 : i32
    %11 = arith.addi %c100_i32, %8 : i32
    %12 = arith.index_cast %11 : i32 to index
    %c0_6 = arith.constant 0 : index
    %13 = vector.load %arg3[%12, %c0_6] : memref<128x128xf32, #tpu.memory_space<vmem>>, vector<1x128xf32>
    %14 = arith.addf %10, %13 : vector<1x128xf32>
    %15 = vector.broadcast %6 : f32 to vector<1x128xf32>
    %16 = arith.mulf %15, %14 : vector<1x128xf32>
    %17 = arith.addf %5, %16 : vector<1x128xf32>
    %c0_7 = arith.constant 0 : index
    %c1 = arith.constant 1 : index
    %18 = memref.load %arg2[%c0_7, %c1] : memref<2x8xf32, #tpu.memory_space<smem>>
    %c0_8 = arith.constant 0 : index
    %c1_9 = arith.constant 1 : index
    %19 = memref.load %arg0[%c0_8, %c1_9] : memref<2x8xi32, #tpu.memory_space<smem>>
    %c0_10 = arith.constant 0 : index
    %c1_11 = arith.constant 1 : index
    %20 = memref.load %arg1[%c0_10, %c1_11] : memref<2x8xi32, #tpu.memory_space<smem>>
    %21 = arith.index_cast %19 : i32 to index
    %c0_12 = arith.constant 0 : index
    %22 = vector.load %arg3[%21, %c0_12] : memref<128x128xf32, #tpu.memory_space<vmem>>, vector<1x128xf32>
    %c100_i32_13 = arith.constant 100 : i32
    %23 = arith.addi %c100_i32_13, %20 : i32
    %24 = arith.index_cast %23 : i32 to index
    %c0_14 = arith.constant 0 : index
    %25 = vector.load %arg3[%24, %c0_14] : memref<128x128xf32, #tpu.memory_space<vmem>>, vector<1x128xf32>
    %26 = arith.addf %22, %25 : vector<1x128xf32>
    %27 = vector.broadcast %18 : f32 to vector<1x128xf32>
    %28 = arith.mulf %27, %26 : vector<1x128xf32>
    %29 = arith.addf %17, %28 : vector<1x128xf32>
    %c0_15 = arith.constant 0 : index
    %c2 = arith.constant 2 : index
    %30 = memref.load %arg2[%c0_15, %c2] : memref<2x8xf32, #tpu.memory_space<smem>>
    %c0_16 = arith.constant 0 : index
    %c2_17 = arith.constant 2 : index
    %31 = memref.load %arg0[%c0_16, %c2_17] : memref<2x8xi32, #tpu.memory_space<smem>>
    %c0_18 = arith.constant 0 : index
    %c2_19 = arith.constant 2 : index
    %32 = memref.load %arg1[%c0_18, %c2_19] : memref<2x8xi32, #tpu.memory_space<smem>>
    %33 = arith.index_cast %31 : i32 to index
    %c0_20 = arith.constant 0 : index
    %34 = vector.load %arg3[%33, %c0_20] : memref<128x128xf32, #tpu.memory_space<vmem>>, vector<1x128xf32>
    %c100_i32_21 = arith.constant 100 : i32
    %35 = arith.addi %c100_i32_21, %32 : i32
    %36 = arith.index_cast %35 : i32 to index
    %c0_22 = arith.constant 0 : index
    %37 = vector.load %arg3[%36, %c0_22] : memref<128x128xf32, #tpu.memory_space<vmem>>, vector<1x128xf32>
    %38 = arith.addf %34, %37 : vector<1x128xf32>
    %39 = vector.broadcast %30 : f32 to vector<1x128xf32>
    %40 = arith.mulf %39, %38 : vector<1x128xf32>
    %41 = arith.addf %29, %40 : vector<1x128xf32>
    %c0_23 = arith.constant 0 : index
    %c3 = arith.constant 3 : index
    %42 = memref.load %arg2[%c0_23, %c3] : memref<2x8xf32, #tpu.memory_space<smem>>
    %c0_24 = arith.constant 0 : index
    %c3_25 = arith.constant 3 : index
    %43 = memref.load %arg0[%c0_24, %c3_25] : memref<2x8xi32, #tpu.memory_space<smem>>
    %c0_26 = arith.constant 0 : index
    %c3_27 = arith.constant 3 : index
    %44 = memref.load %arg1[%c0_26, %c3_27] : memref<2x8xi32, #tpu.memory_space<smem>>
    %45 = arith.index_cast %43 : i32 to index
    %c0_28 = arith.constant 0 : index
    %46 = vector.load %arg3[%45, %c0_28] : memref<128x128xf32, #tpu.memory_space<vmem>>, vector<1x128xf32>
    %c100_i32_29 = arith.constant 100 : i32
    %47 = arith.addi %c100_i32_29, %44 : i32
    %48 = arith.index_cast %47 : i32 to index
    %c0_30 = arith.constant 0 : index
    %49 = vector.load %arg3[%48, %c0_30] : memref<128x128xf32, #tpu.memory_space<vmem>>, vector<1x128xf32>
    %50 = arith.addf %46, %49 : vector<1x128xf32>
    %51 = vector.broadcast %42 : f32 to vector<1x128xf32>
    %52 = arith.mulf %51, %50 : vector<1x128xf32>
    %53 = arith.addf %41, %52 : vector<1x128xf32>
    %c0_31 = arith.constant 0 : index
    %c4 = arith.constant 4 : index
    %54 = memref.load %arg2[%c0_31, %c4] : memref<2x8xf32, #tpu.memory_space<smem>>
    %c0_32 = arith.constant 0 : index
    %c4_33 = arith.constant 4 : index
    %55 = memref.load %arg0[%c0_32, %c4_33] : memref<2x8xi32, #tpu.memory_space<smem>>
    %c0_34 = arith.constant 0 : index
    %c4_35 = arith.constant 4 : index
    %56 = memref.load %arg1[%c0_34, %c4_35] : memref<2x8xi32, #tpu.memory_space<smem>>
    %57 = arith.index_cast %55 : i32 to index
    %c0_36 = arith.constant 0 : index
    %58 = vector.load %arg3[%57, %c0_36] : memref<128x128xf32, #tpu.memory_space<vmem>>, vector<1x128xf32>
    %c100_i32_37 = arith.constant 100 : i32
    %59 = arith.addi %c100_i32_37, %56 : i32
    %60 = arith.index_cast %59 : i32 to index
    %c0_38 = arith.constant 0 : index
    %61 = vector.load %arg3[%60, %c0_38] : memref<128x128xf32, #tpu.memory_space<vmem>>, vector<1x128xf32>
    %62 = arith.addf %58, %61 : vector<1x128xf32>
    %63 = vector.broadcast %54 : f32 to vector<1x128xf32>
    %64 = arith.mulf %63, %62 : vector<1x128xf32>
    %65 = arith.addf %53, %64 : vector<1x128xf32>
    %c0_39 = arith.constant 0 : index
    %c5 = arith.constant 5 : index
    %66 = memref.load %arg2[%c0_39, %c5] : memref<2x8xf32, #tpu.memory_space<smem>>
    %c0_40 = arith.constant 0 : index
    %c5_41 = arith.constant 5 : index
    %67 = memref.load %arg0[%c0_40, %c5_41] : memref<2x8xi32, #tpu.memory_space<smem>>
    %c0_42 = arith.constant 0 : index
    %c5_43 = arith.constant 5 : index
    %68 = memref.load %arg1[%c0_42, %c5_43] : memref<2x8xi32, #tpu.memory_space<smem>>
    %69 = arith.index_cast %67 : i32 to index
    %c0_44 = arith.constant 0 : index
    %70 = vector.load %arg3[%69, %c0_44] : memref<128x128xf32, #tpu.memory_space<vmem>>, vector<1x128xf32>
    %c100_i32_45 = arith.constant 100 : i32
    %71 = arith.addi %c100_i32_45, %68 : i32
    %72 = arith.index_cast %71 : i32 to index
    %c0_46 = arith.constant 0 : index
    %73 = vector.load %arg3[%72, %c0_46] : memref<128x128xf32, #tpu.memory_space<vmem>>, vector<1x128xf32>
    %74 = arith.addf %70, %73 : vector<1x128xf32>
    %75 = vector.broadcast %66 : f32 to vector<1x128xf32>
    %76 = arith.mulf %75, %74 : vector<1x128xf32>
    %77 = arith.addf %65, %76 : vector<1x128xf32>
    %c0_47 = arith.constant 0 : index
    %c6 = arith.constant 6 : index
    %78 = memref.load %arg2[%c0_47, %c6] : memref<2x8xf32, #tpu.memory_space<smem>>
    %c0_48 = arith.constant 0 : index
    %c6_49 = arith.constant 6 : index
    %79 = memref.load %arg0[%c0_48, %c6_49] : memref<2x8xi32, #tpu.memory_space<smem>>
    %c0_50 = arith.constant 0 : index
    %c6_51 = arith.constant 6 : index
    %80 = memref.load %arg1[%c0_50, %c6_51] : memref<2x8xi32, #tpu.memory_space<smem>>
    %81 = arith.index_cast %79 : i32 to index
    %c0_52 = arith.constant 0 : index
    %82 = vector.load %arg3[%81, %c0_52] : memref<128x128xf32, #tpu.memory_space<vmem>>, vector<1x128xf32>
    %c100_i32_53 = arith.constant 100 : i32
    %83 = arith.addi %c100_i32_53, %80 : i32
    %84 = arith.index_cast %83 : i32 to index
    %c0_54 = arith.constant 0 : index
    %85 = vector.load %arg3[%84, %c0_54] : memref<128x128xf32, #tpu.memory_space<vmem>>, vector<1x128xf32>
    %86 = arith.addf %82, %85 : vector<1x128xf32>
    %87 = vector.broadcast %78 : f32 to vector<1x128xf32>
    %88 = arith.mulf %87, %86 : vector<1x128xf32>
    %89 = arith.addf %77, %88 : vector<1x128xf32>
    %c0_55 = arith.constant 0 : index
    %c7 = arith.constant 7 : index
    %90 = memref.load %arg2[%c0_55, %c7] : memref<2x8xf32, #tpu.memory_space<smem>>
    %c0_56 = arith.constant 0 : index
    %c7_57 = arith.constant 7 : index
    %91 = memref.load %arg0[%c0_56, %c7_57] : memref<2x8xi32, #tpu.memory_space<smem>>
    %c0_58 = arith.constant 0 : index
    %c7_59 = arith.constant 7 : index
    %92 = memref.load %arg1[%c0_58, %c7_59] : memref<2x8xi32, #tpu.memory_space<smem>>
    %93 = arith.index_cast %91 : i32 to index
    %c0_60 = arith.constant 0 : index
    %94 = vector.load %arg3[%93, %c0_60] : memref<128x128xf32, #tpu.memory_space<vmem>>, vector<1x128xf32>
    %c100_i32_61 = arith.constant 100 : i32
    %95 = arith.addi %c100_i32_61, %92 : i32
    %96 = arith.index_cast %95 : i32 to index
    %c0_62 = arith.constant 0 : index
    %97 = vector.load %arg3[%96, %c0_62] : memref<128x128xf32, #tpu.memory_space<vmem>>, vector<1x128xf32>
    %98 = arith.addf %94, %97 : vector<1x128xf32>
    %99 = vector.broadcast %90 : f32 to vector<1x128xf32>
    %100 = arith.mulf %99, %98 : vector<1x128xf32>
    %101 = arith.addf %89, %100 : vector<1x128xf32>
    %cst_63 = arith.constant 0.000000e+00 : f32
    %102 = vector.broadcast %cst_63 : f32 to vector<1x128xf32>
    %c1_64 = arith.constant 1 : index
    %c0_65 = arith.constant 0 : index
    %103 = memref.load %arg2[%c1_64, %c0_65] : memref<2x8xf32, #tpu.memory_space<smem>>
    %c1_66 = arith.constant 1 : index
    %c0_67 = arith.constant 0 : index
    %104 = memref.load %arg0[%c1_66, %c0_67] : memref<2x8xi32, #tpu.memory_space<smem>>
    %c1_68 = arith.constant 1 : index
    %c0_69 = arith.constant 0 : index
    %105 = memref.load %arg1[%c1_68, %c0_69] : memref<2x8xi32, #tpu.memory_space<smem>>
    %106 = arith.index_cast %104 : i32 to index
    %c0_70 = arith.constant 0 : index
    %107 = vector.load %arg3[%106, %c0_70] : memref<128x128xf32, #tpu.memory_space<vmem>>, vector<1x128xf32>
    %c100_i32_71 = arith.constant 100 : i32
    %108 = arith.addi %c100_i32_71, %105 : i32
    %109 = arith.index_cast %108 : i32 to index
    %c0_72 = arith.constant 0 : index
    %110 = vector.load %arg3[%109, %c0_72] : memref<128x128xf32, #tpu.memory_space<vmem>>, vector<1x128xf32>
    %111 = arith.addf %107, %110 : vector<1x128xf32>
    %112 = vector.broadcast %103 : f32 to vector<1x128xf32>
    %113 = arith.mulf %112, %111 : vector<1x128xf32>
    %114 = arith.addf %102, %113 : vector<1x128xf32>
    %c1_73 = arith.constant 1 : index
    %c1_74 = arith.constant 1 : index
    %115 = memref.load %arg2[%c1_73, %c1_74] : memref<2x8xf32, #tpu.memory_space<smem>>
    %c1_75 = arith.constant 1 : index
    %c1_76 = arith.constant 1 : index
    %116 = memref.load %arg0[%c1_75, %c1_76] : memref<2x8xi32, #tpu.memory_space<smem>>
    %c1_77 = arith.constant 1 : index
    %c1_78 = arith.constant 1 : index
    %117 = memref.load %arg1[%c1_77, %c1_78] : memref<2x8xi32, #tpu.memory_space<smem>>
    %118 = arith.index_cast %116 : i32 to index
    %c0_79 = arith.constant 0 : index
    %119 = vector.load %arg3[%118, %c0_79] : memref<128x128xf32, #tpu.memory_space<vmem>>, vector<1x128xf32>
    %c100_i32_80 = arith.constant 100 : i32
    %120 = arith.addi %c100_i32_80, %117 : i32
    %121 = arith.index_cast %120 : i32 to index
    %c0_81 = arith.constant 0 : index
    %122 = vector.load %arg3[%121, %c0_81] : memref<128x128xf32, #tpu.memory_space<vmem>>, vector<1x128xf32>
    %123 = arith.addf %119, %122 : vector<1x128xf32>
    %124 = vector.broadcast %115 : f32 to vector<1x128xf32>
    %125 = arith.mulf %124, %123 : vector<1x128xf32>
    %126 = arith.addf %114, %125 : vector<1x128xf32>
    %c1_82 = arith.constant 1 : index
    %c2_83 = arith.constant 2 : index
    %127 = memref.load %arg2[%c1_82, %c2_83] : memref<2x8xf32, #tpu.memory_space<smem>>
    %c1_84 = arith.constant 1 : index
    %c2_85 = arith.constant 2 : index
    %128 = memref.load %arg0[%c1_84, %c2_85] : memref<2x8xi32, #tpu.memory_space<smem>>
    %c1_86 = arith.constant 1 : index
    %c2_87 = arith.constant 2 : index
    %129 = memref.load %arg1[%c1_86, %c2_87] : memref<2x8xi32, #tpu.memory_space<smem>>
    %130 = arith.index_cast %128 : i32 to index
    %c0_88 = arith.constant 0 : index
    %131 = vector.load %arg3[%130, %c0_88] : memref<128x128xf32, #tpu.memory_space<vmem>>, vector<1x128xf32>
    %c100_i32_89 = arith.constant 100 : i32
    %132 = arith.addi %c100_i32_89, %129 : i32
    %133 = arith.index_cast %132 : i32 to index
    %c0_90 = arith.constant 0 : index
    %134 = vector.load %arg3[%133, %c0_90] : memref<128x128xf32, #tpu.memory_space<vmem>>, vector<1x128xf32>
    %135 = arith.addf %131, %134 : vector<1x128xf32>
    %136 = vector.broadcast %127 : f32 to vector<1x128xf32>
    %137 = arith.mulf %136, %135 : vector<1x128xf32>
    %138 = arith.addf %126, %137 : vector<1x128xf32>
    %c1_91 = arith.constant 1 : index
    %c3_92 = arith.constant 3 : index
    %139 = memref.load %arg2[%c1_91, %c3_92] : memref<2x8xf32, #tpu.memory_space<smem>>
    %c1_93 = arith.constant 1 : index
    %c3_94 = arith.constant 3 : index
    %140 = memref.load %arg0[%c1_93, %c3_94] : memref<2x8xi32, #tpu.memory_space<smem>>
    %c1_95 = arith.constant 1 : index
    %c3_96 = arith.constant 3 : index
    %141 = memref.load %arg1[%c1_95, %c3_96] : memref<2x8xi32, #tpu.memory_space<smem>>
    %142 = arith.index_cast %140 : i32 to index
    %c0_97 = arith.constant 0 : index
    %143 = vector.load %arg3[%142, %c0_97] : memref<128x128xf32, #tpu.memory_space<vmem>>, vector<1x128xf32>
    %c100_i32_98 = arith.constant 100 : i32
    %144 = arith.addi %c100_i32_98, %141 : i32
    %145 = arith.index_cast %144 : i32 to index
    %c0_99 = arith.constant 0 : index
    %146 = vector.load %arg3[%145, %c0_99] : memref<128x128xf32, #tpu.memory_space<vmem>>, vector<1x128xf32>
    %147 = arith.addf %143, %146 : vector<1x128xf32>
    %148 = vector.broadcast %139 : f32 to vector<1x128xf32>
    %149 = arith.mulf %148, %147 : vector<1x128xf32>
    %150 = arith.addf %138, %149 : vector<1x128xf32>
    %c1_100 = arith.constant 1 : index
    %c4_101 = arith.constant 4 : index
    %151 = memref.load %arg2[%c1_100, %c4_101] : memref<2x8xf32, #tpu.memory_space<smem>>
    %c1_102 = arith.constant 1 : index
    %c4_103 = arith.constant 4 : index
    %152 = memref.load %arg0[%c1_102, %c4_103] : memref<2x8xi32, #tpu.memory_space<smem>>
    %c1_104 = arith.constant 1 : index
    %c4_105 = arith.constant 4 : index
    %153 = memref.load %arg1[%c1_104, %c4_105] : memref<2x8xi32, #tpu.memory_space<smem>>
    %154 = arith.index_cast %152 : i32 to index
    %c0_106 = arith.constant 0 : index
    %155 = vector.load %arg3[%154, %c0_106] : memref<128x128xf32, #tpu.memory_space<vmem>>, vector<1x128xf32>
    %c100_i32_107 = arith.constant 100 : i32
    %156 = arith.addi %c100_i32_107, %153 : i32
    %157 = arith.index_cast %156 : i32 to index
    %c0_108 = arith.constant 0 : index
    %158 = vector.load %arg3[%157, %c0_108] : memref<128x128xf32, #tpu.memory_space<vmem>>, vector<1x128xf32>
    %159 = arith.addf %155, %158 : vector<1x128xf32>
    %160 = vector.broadcast %151 : f32 to vector<1x128xf32>
    %161 = arith.mulf %160, %159 : vector<1x128xf32>
    %162 = arith.addf %150, %161 : vector<1x128xf32>
    %c1_109 = arith.constant 1 : index
    %c5_110 = arith.constant 5 : index
    %163 = memref.load %arg2[%c1_109, %c5_110] : memref<2x8xf32, #tpu.memory_space<smem>>
    %c1_111 = arith.constant 1 : index
    %c5_112 = arith.constant 5 : index
    %164 = memref.load %arg0[%c1_111, %c5_112] : memref<2x8xi32, #tpu.memory_space<smem>>
    %c1_113 = arith.constant 1 : index
    %c5_114 = arith.constant 5 : index
    %165 = memref.load %arg1[%c1_113, %c5_114] : memref<2x8xi32, #tpu.memory_space<smem>>
    %166 = arith.index_cast %164 : i32 to index
    %c0_115 = arith.constant 0 : index
    %167 = vector.load %arg3[%166, %c0_115] : memref<128x128xf32, #tpu.memory_space<vmem>>, vector<1x128xf32>
    %c100_i32_116 = arith.constant 100 : i32
    %168 = arith.addi %c100_i32_116, %165 : i32
    %169 = arith.index_cast %168 : i32 to index
    %c0_117 = arith.constant 0 : index
    %170 = vector.load %arg3[%169, %c0_117] : memref<128x128xf32, #tpu.memory_space<vmem>>, vector<1x128xf32>
    %171 = arith.addf %167, %170 : vector<1x128xf32>
    %172 = vector.broadcast %163 : f32 to vector<1x128xf32>
    %173 = arith.mulf %172, %171 : vector<1x128xf32>
    %174 = arith.addf %162, %173 : vector<1x128xf32>
    %c1_118 = arith.constant 1 : index
    %c6_119 = arith.constant 6 : index
    %175 = memref.load %arg2[%c1_118, %c6_119] : memref<2x8xf32, #tpu.memory_space<smem>>
    %c1_120 = arith.constant 1 : index
    %c6_121 = arith.constant 6 : index
    %176 = memref.load %arg0[%c1_120, %c6_121] : memref<2x8xi32, #tpu.memory_space<smem>>
    %c1_122 = arith.constant 1 : index
    %c6_123 = arith.constant 6 : index
    %177 = memref.load %arg1[%c1_122, %c6_123] : memref<2x8xi32, #tpu.memory_space<smem>>
    %178 = arith.index_cast %176 : i32 to index
    %c0_124 = arith.constant 0 : index
    %179 = vector.load %arg3[%178, %c0_124] : memref<128x128xf32, #tpu.memory_space<vmem>>, vector<1x128xf32>
    %c100_i32_125 = arith.constant 100 : i32
    %180 = arith.addi %c100_i32_125, %177 : i32
    %181 = arith.index_cast %180 : i32 to index
    %c0_126 = arith.constant 0 : index
    %182 = vector.load %arg3[%181, %c0_126] : memref<128x128xf32, #tpu.memory_space<vmem>>, vector<1x128xf32>
    %183 = arith.addf %179, %182 : vector<1x128xf32>
    %184 = vector.broadcast %175 : f32 to vector<1x128xf32>
    %185 = arith.mulf %184, %183 : vector<1x128xf32>
    %186 = arith.addf %174, %185 : vector<1x128xf32>
    %c1_127 = arith.constant 1 : index
    %c7_128 = arith.constant 7 : index
    %187 = memref.load %arg2[%c1_127, %c7_128] : memref<2x8xf32, #tpu.memory_space<smem>>
    %c1_129 = arith.constant 1 : index
    %c7_130 = arith.constant 7 : index
    %188 = memref.load %arg0[%c1_129, %c7_130] : memref<2x8xi32, #tpu.memory_space<smem>>
    %c1_131 = arith.constant 1 : index
    %c7_132 = arith.constant 7 : index
    %189 = memref.load %arg1[%c1_131, %c7_132] : memref<2x8xi32, #tpu.memory_space<smem>>
    %190 = arith.index_cast %188 : i32 to index
    %c0_133 = arith.constant 0 : index
    %191 = vector.load %arg3[%190, %c0_133] : memref<128x128xf32, #tpu.memory_space<vmem>>, vector<1x128xf32>
    %c100_i32_134 = arith.constant 100 : i32
    %192 = arith.addi %c100_i32_134, %189 : i32
    %193 = arith.index_cast %192 : i32 to index
    %c0_135 = arith.constant 0 : index
    %194 = vector.load %arg3[%193, %c0_135] : memref<128x128xf32, #tpu.memory_space<vmem>>, vector<1x128xf32>
    %195 = arith.addf %191, %194 : vector<1x128xf32>
    %196 = vector.broadcast %187 : f32 to vector<1x128xf32>
    %197 = arith.mulf %196, %195 : vector<1x128xf32>
    %198 = arith.addf %186, %197 : vector<1x128xf32>
    %199 = tpu.concatenate %101, %198 in 0 : vector<1x128xf32>, vector<1x128xf32> -> vector<2x128xf32>
    %c0_136 = arith.constant 0 : index
    %c0_137 = arith.constant 0 : index
    %200 = vector.load %arg4[%c0_136, %c0_137] : memref<128x128xf32, #tpu.memory_space<vmem>>, vector<128x128xf32>
    %cst_138 = arith.constant dense<0.000000e+00> : vector<2x128xf32>
    %201 = tpu.matmul %199, %200, %cst_138 {dimension_numbers = #tpu.dot_dimension_numbers<[1], [0], [0], [1], [0, 0, 1, 1], [], []>} : vector<2x128xf32>, vector<128x128xf32>, vector<2x128xf32> -> vector<2x128xf32>
    %c0_139 = arith.constant 0 : index
    %c0_140 = arith.constant 0 : index
    %202 = vector.load %arg5[%c0_139, %c0_140] : memref<1x128xf32, #tpu.memory_space<vmem>>, vector<1x128xf32>
    %203 = vector.broadcast %202 : vector<1x128xf32> to vector<2x128xf32>
    %204 = arith.addf %201, %203 : vector<2x128xf32>
    %205 = math.tanh %204 : vector<2x128xf32>
    %c0_141 = arith.constant 0 : index
    %c0_142 = arith.constant 0 : index
    %206 = vector.load %arg6[%c0_141, %c0_142] : memref<2x128xf32, #tpu.memory_space<vmem>>, vector<2x128xf32>
    %207 = arith.addf %205, %206 : vector<2x128xf32>
    %208 = tpu.iota {dimensions = array<i32: 0>} : vector<2x2xi32>
    %209 = tpu.iota {dimensions = array<i32: 1>} : vector<2x2xi32>
    %210 = arith.cmpi sle, %209, %208 : vector<2x2xi32>
    %cst_143 = arith.constant 0.000000e+00 : f32
    %cst_144 = arith.constant -1.000000e+30 : f32
    %211 = vector.broadcast %cst_143 : f32 to vector<2x2xf32>
    %212 = vector.broadcast %cst_144 : f32 to vector<2x2xf32>
    %213 = arith.select %210, %211, %212 : vector<2x2xi1>, vector<2x2xf32>
    %c0_145 = arith.constant 0 : index
    %c0_146 = arith.constant 0 : index
    %c0_147 = arith.constant 0 : index
    %214 = vector.load %arg7[%c0_145, %c0_146, %c0_147] : memref<2x128x1536xf32, #tpu.memory_space<vmem>>, vector<1x128x1536xf32>
    %215 = vector.shape_cast %214 : vector<1x128x1536xf32> to vector<128x1536xf32>
    %cst_148 = arith.constant dense<0.000000e+00> : vector<2x1536xf32>
    %216 = tpu.matmul %207, %215, %cst_148 {dimension_numbers = #tpu.dot_dimension_numbers<[1], [0], [0], [1], [0, 0, 1, 1], [], []>} : vector<2x128xf32>, vector<128x1536xf32>, vector<2x1536xf32> -> vector<2x1536xf32>
    %c0_149 = arith.constant 0 : index
    %c0_150 = arith.constant 0 : index
    %c0_151 = arith.constant 0 : index
    %217 = vector.load %arg8[%c0_149, %c0_150, %c0_151] : memref<2x1x1536xf32, #tpu.memory_space<vmem>>, vector<1x1x1536xf32>
    %218 = vector.shape_cast %217 : vector<1x1x1536xf32> to vector<1x1536xf32>
    %219 = vector.broadcast %218 : vector<1x1536xf32> to vector<2x1536xf32>
    %220 = arith.addf %216, %219 : vector<2x1536xf32>
    %cst_152 = arith.constant 0.000000e+00 : f32
    %221 = vector.broadcast %cst_152 : f32 to vector<2x128xf32>
    %222 = vector.extract_strided_slice %220 {offsets = [0, 0], sizes = [2, 128], strides = [1, 1]} : vector<2x1536xf32> to vector<2x128xf32>
    %223 = vector.extract_strided_slice %220 {offsets = [0, 128], sizes = [2, 128], strides = [1, 1]} : vector<2x1536xf32> to vector<2x128xf32>
    %224 = vector.extract_strided_slice %220 {offsets = [0, 256], sizes = [2, 128], strides = [1, 1]} : vector<2x1536xf32> to vector<2x128xf32>
    %cst_153 = arith.constant dense<0.000000e+00> : vector<2x2xf32>
    %225 = tpu.matmul %222, %223, %cst_153 {dimension_numbers = #tpu.dot_dimension_numbers<[1], [1], [0], [0], [0, 0, 1, 0], [], []>} : vector<2x128xf32>, vector<2x128xf32>, vector<2x2xf32> -> vector<2x2xf32>
    %226 = arith.addf %225, %213 : vector<2x2xf32>
    %cst_154 = arith.constant dense<0xFF800000> : vector<2xf32>
    %227 = vector.multi_reduction <maximumf>, %226, %cst_154 [1] : vector<2x2xf32> to vector<2xf32>
    %228 = vector.shape_cast %227 : vector<2xf32> to vector<2x1xf32>
    %229 = vector.broadcast %228 : vector<2x1xf32> to vector<2x2xf32>
    %230 = arith.subf %226, %229 : vector<2x2xf32>
    %231 = math.exp %230 : vector<2x2xf32>
    %cst_155 = arith.constant dense<0.000000e+00> : vector<2xf32>
    %232 = vector.multi_reduction <add>, %231, %cst_155 [1] : vector<2x2xf32> to vector<2xf32>
    %233 = vector.shape_cast %232 : vector<2xf32> to vector<2x1xf32>
    %234 = tpu.reciprocal %233 {approx = true} : vector<2x1xf32> -> vector<2x1xf32>
    %235 = vector.broadcast %234 : vector<2x1xf32> to vector<2x2xf32>
    %236 = arith.mulf %231, %235 : vector<2x2xf32>
    %cst_156 = arith.constant dense<0.000000e+00> : vector<2x128xf32>
    %237 = tpu.matmul %236, %224, %cst_156 {dimension_numbers = #tpu.dot_dimension_numbers<[1], [0], [0], [1], [0, 0, 1, 1], [], []>} : vector<2x2xf32>, vector<2x128xf32>, vector<2x128xf32> -> vector<2x128xf32>
    %c0_157 = arith.constant 0 : index
    %c0_158 = arith.constant 0 : index
    %c0_159 = arith.constant 0 : index
    %238 = vector.load %arg9[%c0_157, %c0_158, %c0_159] : memref<8x128x128xf32, #tpu.memory_space<vmem>>, vector<1x128x128xf32>
    %239 = vector.shape_cast %238 : vector<1x128x128xf32> to vector<128x128xf32>
    %cst_160 = arith.constant dense<0.000000e+00> : vector<2x128xf32>
    %240 = tpu.matmul %237, %239, %cst_160 {dimension_numbers = #tpu.dot_dimension_numbers<[1], [0], [0], [1], [0, 0, 1, 1], [], []>} : vector<2x128xf32>, vector<128x128xf32>, vector<2x128xf32> -> vector<2x128xf32>
    %241 = arith.addf %221, %240 : vector<2x128xf32>
    %242 = vector.extract_strided_slice %220 {offsets = [0, 384], sizes = [2, 128], strides = [1, 1]} : vector<2x1536xf32> to vector<2x128xf32>
    %243 = vector.extract_strided_slice %220 {offsets = [0, 512], sizes = [2, 128], strides = [1, 1]} : vector<2x1536xf32> to vector<2x128xf32>
    %244 = vector.extract_strided_slice %220 {offsets = [0, 640], sizes = [2, 128], strides = [1, 1]} : vector<2x1536xf32> to vector<2x128xf32>
    %cst_161 = arith.constant dense<0.000000e+00> : vector<2x2xf32>
    %245 = tpu.matmul %242, %243, %cst_161 {dimension_numbers = #tpu.dot_dimension_numbers<[1], [1], [0], [0], [0, 0, 1, 0], [], []>} : vector<2x128xf32>, vector<2x128xf32>, vector<2x2xf32> -> vector<2x2xf32>
    %246 = arith.addf %245, %213 : vector<2x2xf32>
    %cst_162 = arith.constant dense<0xFF800000> : vector<2xf32>
    %247 = vector.multi_reduction <maximumf>, %246, %cst_162 [1] : vector<2x2xf32> to vector<2xf32>
    %248 = vector.shape_cast %247 : vector<2xf32> to vector<2x1xf32>
    %249 = vector.broadcast %248 : vector<2x1xf32> to vector<2x2xf32>
    %250 = arith.subf %246, %249 : vector<2x2xf32>
    %251 = math.exp %250 : vector<2x2xf32>
    %cst_163 = arith.constant dense<0.000000e+00> : vector<2xf32>
    %252 = vector.multi_reduction <add>, %251, %cst_163 [1] : vector<2x2xf32> to vector<2xf32>
    %253 = vector.shape_cast %252 : vector<2xf32> to vector<2x1xf32>
    %254 = tpu.reciprocal %253 {approx = true} : vector<2x1xf32> -> vector<2x1xf32>
    %255 = vector.broadcast %254 : vector<2x1xf32> to vector<2x2xf32>
    %256 = arith.mulf %251, %255 : vector<2x2xf32>
    %cst_164 = arith.constant dense<0.000000e+00> : vector<2x128xf32>
    %257 = tpu.matmul %256, %244, %cst_164 {dimension_numbers = #tpu.dot_dimension_numbers<[1], [0], [0], [1], [0, 0, 1, 1], [], []>} : vector<2x2xf32>, vector<2x128xf32>, vector<2x128xf32> -> vector<2x128xf32>
    %c1_165 = arith.constant 1 : index
    %c0_166 = arith.constant 0 : index
    %c0_167 = arith.constant 0 : index
    %258 = vector.load %arg9[%c1_165, %c0_166, %c0_167] : memref<8x128x128xf32, #tpu.memory_space<vmem>>, vector<1x128x128xf32>
    %259 = vector.shape_cast %258 : vector<1x128x128xf32> to vector<128x128xf32>
    %cst_168 = arith.constant dense<0.000000e+00> : vector<2x128xf32>
    %260 = tpu.matmul %257, %259, %cst_168 {dimension_numbers = #tpu.dot_dimension_numbers<[1], [0], [0], [1], [0, 0, 1, 1], [], []>} : vector<2x128xf32>, vector<128x128xf32>, vector<2x128xf32> -> vector<2x128xf32>
    %261 = arith.addf %241, %260 : vector<2x128xf32>
    %262 = vector.extract_strided_slice %220 {offsets = [0, 768], sizes = [2, 128], strides = [1, 1]} : vector<2x1536xf32> to vector<2x128xf32>
    %263 = vector.extract_strided_slice %220 {offsets = [0, 896], sizes = [2, 128], strides = [1, 1]} : vector<2x1536xf32> to vector<2x128xf32>
    %264 = vector.extract_strided_slice %220 {offsets = [0, 1024], sizes = [2, 128], strides = [1, 1]} : vector<2x1536xf32> to vector<2x128xf32>
    %cst_169 = arith.constant dense<0.000000e+00> : vector<2x2xf32>
    %265 = tpu.matmul %262, %263, %cst_169 {dimension_numbers = #tpu.dot_dimension_numbers<[1], [1], [0], [0], [0, 0, 1, 0], [], []>} : vector<2x128xf32>, vector<2x128xf32>, vector<2x2xf32> -> vector<2x2xf32>
    %266 = arith.addf %265, %213 : vector<2x2xf32>
    %cst_170 = arith.constant dense<0xFF800000> : vector<2xf32>
    %267 = vector.multi_reduction <maximumf>, %266, %cst_170 [1] : vector<2x2xf32> to vector<2xf32>
    %268 = vector.shape_cast %267 : vector<2xf32> to vector<2x1xf32>
    %269 = vector.broadcast %268 : vector<2x1xf32> to vector<2x2xf32>
    %270 = arith.subf %266, %269 : vector<2x2xf32>
    %271 = math.exp %270 : vector<2x2xf32>
    %cst_171 = arith.constant dense<0.000000e+00> : vector<2xf32>
    %272 = vector.multi_reduction <add>, %271, %cst_171 [1] : vector<2x2xf32> to vector<2xf32>
    %273 = vector.shape_cast %272 : vector<2xf32> to vector<2x1xf32>
    %274 = tpu.reciprocal %273 {approx = true} : vector<2x1xf32> -> vector<2x1xf32>
    %275 = vector.broadcast %274 : vector<2x1xf32> to vector<2x2xf32>
    %276 = arith.mulf %271, %275 : vector<2x2xf32>
    %cst_172 = arith.constant dense<0.000000e+00> : vector<2x128xf32>
    %277 = tpu.matmul %276, %264, %cst_172 {dimension_numbers = #tpu.dot_dimension_numbers<[1], [0], [0], [1], [0, 0, 1, 1], [], []>} : vector<2x2xf32>, vector<2x128xf32>, vector<2x128xf32> -> vector<2x128xf32>
    %c2_173 = arith.constant 2 : index
    %c0_174 = arith.constant 0 : index
    %c0_175 = arith.constant 0 : index
    %278 = vector.load %arg9[%c2_173, %c0_174, %c0_175] : memref<8x128x128xf32, #tpu.memory_space<vmem>>, vector<1x128x128xf32>
    %279 = vector.shape_cast %278 : vector<1x128x128xf32> to vector<128x128xf32>
    %cst_176 = arith.constant dense<0.000000e+00> : vector<2x128xf32>
    %280 = tpu.matmul %277, %279, %cst_176 {dimension_numbers = #tpu.dot_dimension_numbers<[1], [0], [0], [1], [0, 0, 1, 1], [], []>} : vector<2x128xf32>, vector<128x128xf32>, vector<2x128xf32> -> vector<2x128xf32>
    %281 = arith.addf %261, %280 : vector<2x128xf32>
    %282 = vector.extract_strided_slice %220 {offsets = [0, 1152], sizes = [2, 128], strides = [1, 1]} : vector<2x1536xf32> to vector<2x128xf32>
    %283 = vector.extract_strided_slice %220 {offsets = [0, 1280], sizes = [2, 128], strides = [1, 1]} : vector<2x1536xf32> to vector<2x128xf32>
    %284 = vector.extract_strided_slice %220 {offsets = [0, 1408], sizes = [2, 128], strides = [1, 1]} : vector<2x1536xf32> to vector<2x128xf32>
    %cst_177 = arith.constant dense<0.000000e+00> : vector<2x2xf32>
    %285 = tpu.matmul %282, %283, %cst_177 {dimension_numbers = #tpu.dot_dimension_numbers<[1], [1], [0], [0], [0, 0, 1, 0], [], []>} : vector<2x128xf32>, vector<2x128xf32>, vector<2x2xf32> -> vector<2x2xf32>
    %286 = arith.addf %285, %213 : vector<2x2xf32>
    %cst_178 = arith.constant dense<0xFF800000> : vector<2xf32>
    %287 = vector.multi_reduction <maximumf>, %286, %cst_178 [1] : vector<2x2xf32> to vector<2xf32>
    %288 = vector.shape_cast %287 : vector<2xf32> to vector<2x1xf32>
    %289 = vector.broadcast %288 : vector<2x1xf32> to vector<2x2xf32>
    %290 = arith.subf %286, %289 : vector<2x2xf32>
    %291 = math.exp %290 : vector<2x2xf32>
    %cst_179 = arith.constant dense<0.000000e+00> : vector<2xf32>
    %292 = vector.multi_reduction <add>, %291, %cst_179 [1] : vector<2x2xf32> to vector<2xf32>
    %293 = vector.shape_cast %292 : vector<2xf32> to vector<2x1xf32>
    %294 = tpu.reciprocal %293 {approx = true} : vector<2x1xf32> -> vector<2x1xf32>
    %295 = vector.broadcast %294 : vector<2x1xf32> to vector<2x2xf32>
    %296 = arith.mulf %291, %295 : vector<2x2xf32>
    %cst_180 = arith.constant dense<0.000000e+00> : vector<2x128xf32>
    %297 = tpu.matmul %296, %284, %cst_180 {dimension_numbers = #tpu.dot_dimension_numbers<[1], [0], [0], [1], [0, 0, 1, 1], [], []>} : vector<2x2xf32>, vector<2x128xf32>, vector<2x128xf32> -> vector<2x128xf32>
    %c3_181 = arith.constant 3 : index
    %c0_182 = arith.constant 0 : index
    %c0_183 = arith.constant 0 : index
    %298 = vector.load %arg9[%c3_181, %c0_182, %c0_183] : memref<8x128x128xf32, #tpu.memory_space<vmem>>, vector<1x128x128xf32>
    %299 = vector.shape_cast %298 : vector<1x128x128xf32> to vector<128x128xf32>
    %cst_184 = arith.constant dense<0.000000e+00> : vector<2x128xf32>
    %300 = tpu.matmul %297, %299, %cst_184 {dimension_numbers = #tpu.dot_dimension_numbers<[1], [0], [0], [1], [0, 0, 1, 1], [], []>} : vector<2x128xf32>, vector<128x128xf32>, vector<2x128xf32> -> vector<2x128xf32>
    %301 = arith.addf %281, %300 : vector<2x128xf32>
    %c0_185 = arith.constant 0 : index
    %c0_186 = arith.constant 0 : index
    %c0_187 = arith.constant 0 : index
    %302 = vector.load %arg10[%c0_185, %c0_186, %c0_187] : memref<2x1x128xf32, #tpu.memory_space<vmem>>, vector<1x1x128xf32>
    %303 = vector.shape_cast %302 : vector<1x1x128xf32> to vector<1x128xf32>
    %304 = vector.broadcast %303 : vector<1x128xf32> to vector<2x128xf32>
    %305 = arith.addf %301, %304 : vector<2x128xf32>
    %306 = arith.addf %207, %305 : vector<2x128xf32>
    %c0_188 = arith.constant 0 : index
    %c0_189 = arith.constant 0 : index
    %c0_190 = arith.constant 0 : index
    %307 = vector.load %arg11[%c0_188, %c0_189, %c0_190] : memref<2x1x128xf32, #tpu.memory_space<vmem>>, vector<1x1x128xf32>
    %308 = vector.shape_cast %307 : vector<1x1x128xf32> to vector<1x128xf32>
    %c0_191 = arith.constant 0 : index
    %c0_192 = arith.constant 0 : index
    %c0_193 = arith.constant 0 : index
    %309 = vector.load %arg12[%c0_191, %c0_192, %c0_193] : memref<2x1x128xf32, #tpu.memory_space<vmem>>, vector<1x1x128xf32>
    %310 = vector.shape_cast %309 : vector<1x1x128xf32> to vector<1x128xf32>
    %cst_194 = arith.constant dense<0.000000e+00> : vector<2xf32>
    %311 = vector.multi_reduction <add>, %306, %cst_194 [1] : vector<2x128xf32> to vector<2xf32>
    %312 = vector.shape_cast %311 : vector<2xf32> to vector<2x1xf32>
    %cst_195 = arith.constant 3.125000e-02 : f32
    %313 = vector.broadcast %cst_195 : f32 to vector<2x1xf32>
    %314 = arith.mulf %312, %313 : vector<2x1xf32>
    %315 = vector.broadcast %314 : vector<2x1xf32> to vector<2x128xf32>
    %316 = arith.subf %306, %315 : vector<2x128xf32>
    %317 = vector.broadcast %4 : vector<1x128xf32> to vector<2x128xf32>
    %318 = arith.mulf %316, %317 : vector<2x128xf32>
    %319 = arith.mulf %318, %318 : vector<2x128xf32>
    %cst_196 = arith.constant dense<0.000000e+00> : vector<2xf32>
    %320 = vector.multi_reduction <add>, %319, %cst_196 [1] : vector<2x128xf32> to vector<2xf32>
    %321 = vector.shape_cast %320 : vector<2xf32> to vector<2x1xf32>
    %cst_197 = arith.constant 3.125000e-02 : f32
    %322 = vector.broadcast %cst_197 : f32 to vector<2x1xf32>
    %323 = arith.mulf %321, %322 : vector<2x1xf32>
    %cst_198 = arith.constant 9.99999974E-6 : f32
    %324 = vector.broadcast %cst_198 : f32 to vector<2x1xf32>
    %325 = arith.addf %323, %324 : vector<2x1xf32>
    %326 = math.rsqrt %325 : vector<2x1xf32>
    %327 = vector.broadcast %326 : vector<2x1xf32> to vector<2x128xf32>
    %328 = arith.mulf %318, %327 : vector<2x128xf32>
    %329 = vector.broadcast %308 : vector<1x128xf32> to vector<2x128xf32>
    %330 = arith.mulf %328, %329 : vector<2x128xf32>
    %331 = vector.broadcast %310 : vector<1x128xf32> to vector<2x128xf32>
    %332 = arith.addf %330, %331 : vector<2x128xf32>
    %c0_199 = arith.constant 0 : index
    %c0_200 = arith.constant 0 : index
    %c0_201 = arith.constant 0 : index
    %333 = vector.load %arg13[%c0_199, %c0_200, %c0_201] : memref<2x128x128xf32, #tpu.memory_space<vmem>>, vector<1x128x128xf32>
    %334 = vector.shape_cast %333 : vector<1x128x128xf32> to vector<128x128xf32>
    %cst_202 = arith.constant dense<0.000000e+00> : vector<2x128xf32>
    %335 = tpu.matmul %332, %334, %cst_202 {dimension_numbers = #tpu.dot_dimension_numbers<[1], [0], [0], [1], [0, 0, 1, 1], [], []>} : vector<2x128xf32>, vector<128x128xf32>, vector<2x128xf32> -> vector<2x128xf32>
    %c0_203 = arith.constant 0 : index
    %c0_204 = arith.constant 0 : index
    %c0_205 = arith.constant 0 : index
    %336 = vector.load %arg14[%c0_203, %c0_204, %c0_205] : memref<2x1x128xf32, #tpu.memory_space<vmem>>, vector<1x1x128xf32>
    %337 = vector.shape_cast %336 : vector<1x1x128xf32> to vector<1x128xf32>
    %338 = vector.broadcast %337 : vector<1x128xf32> to vector<2x128xf32>
    %339 = arith.addf %335, %338 : vector<2x128xf32>
    %cst_206 = arith.constant 0.000000e+00 : f32
    %340 = vector.broadcast %cst_206 : f32 to vector<2x128xf32>
    %341 = arith.maximumf %339, %340 : vector<2x128xf32>
    %c0_207 = arith.constant 0 : index
    %c0_208 = arith.constant 0 : index
    %c0_209 = arith.constant 0 : index
    %342 = vector.load %arg15[%c0_207, %c0_208, %c0_209] : memref<2x128x128xf32, #tpu.memory_space<vmem>>, vector<1x128x128xf32>
    %343 = vector.shape_cast %342 : vector<1x128x128xf32> to vector<128x128xf32>
    %cst_210 = arith.constant dense<0.000000e+00> : vector<2x128xf32>
    %344 = tpu.matmul %341, %343, %cst_210 {dimension_numbers = #tpu.dot_dimension_numbers<[1], [0], [0], [1], [0, 0, 1, 1], [], []>} : vector<2x128xf32>, vector<128x128xf32>, vector<2x128xf32> -> vector<2x128xf32>
    %c0_211 = arith.constant 0 : index
    %c0_212 = arith.constant 0 : index
    %c0_213 = arith.constant 0 : index
    %345 = vector.load %arg16[%c0_211, %c0_212, %c0_213] : memref<2x1x128xf32, #tpu.memory_space<vmem>>, vector<1x1x128xf32>
    %346 = vector.shape_cast %345 : vector<1x1x128xf32> to vector<1x128xf32>
    %347 = vector.broadcast %346 : vector<1x128xf32> to vector<2x128xf32>
    %348 = arith.addf %344, %347 : vector<2x128xf32>
    %349 = arith.addf %332, %348 : vector<2x128xf32>
    %c0_214 = arith.constant 0 : index
    %c0_215 = arith.constant 0 : index
    %c0_216 = arith.constant 0 : index
    %350 = vector.load %arg17[%c0_214, %c0_215, %c0_216] : memref<2x1x128xf32, #tpu.memory_space<vmem>>, vector<1x1x128xf32>
    %351 = vector.shape_cast %350 : vector<1x1x128xf32> to vector<1x128xf32>
    %c0_217 = arith.constant 0 : index
    %c0_218 = arith.constant 0 : index
    %c0_219 = arith.constant 0 : index
    %352 = vector.load %arg18[%c0_217, %c0_218, %c0_219] : memref<2x1x128xf32, #tpu.memory_space<vmem>>, vector<1x1x128xf32>
    %353 = vector.shape_cast %352 : vector<1x1x128xf32> to vector<1x128xf32>
    %cst_220 = arith.constant dense<0.000000e+00> : vector<2xf32>
    %354 = vector.multi_reduction <add>, %349, %cst_220 [1] : vector<2x128xf32> to vector<2xf32>
    %355 = vector.shape_cast %354 : vector<2xf32> to vector<2x1xf32>
    %cst_221 = arith.constant 3.125000e-02 : f32
    %356 = vector.broadcast %cst_221 : f32 to vector<2x1xf32>
    %357 = arith.mulf %355, %356 : vector<2x1xf32>
    %358 = vector.broadcast %357 : vector<2x1xf32> to vector<2x128xf32>
    %359 = arith.subf %349, %358 : vector<2x128xf32>
    %360 = vector.broadcast %4 : vector<1x128xf32> to vector<2x128xf32>
    %361 = arith.mulf %359, %360 : vector<2x128xf32>
    %362 = arith.mulf %361, %361 : vector<2x128xf32>
    %cst_222 = arith.constant dense<0.000000e+00> : vector<2xf32>
    %363 = vector.multi_reduction <add>, %362, %cst_222 [1] : vector<2x128xf32> to vector<2xf32>
    %364 = vector.shape_cast %363 : vector<2xf32> to vector<2x1xf32>
    %cst_223 = arith.constant 3.125000e-02 : f32
    %365 = vector.broadcast %cst_223 : f32 to vector<2x1xf32>
    %366 = arith.mulf %364, %365 : vector<2x1xf32>
    %cst_224 = arith.constant 9.99999974E-6 : f32
    %367 = vector.broadcast %cst_224 : f32 to vector<2x1xf32>
    %368 = arith.addf %366, %367 : vector<2x1xf32>
    %369 = math.rsqrt %368 : vector<2x1xf32>
    %370 = vector.broadcast %369 : vector<2x1xf32> to vector<2x128xf32>
    %371 = arith.mulf %361, %370 : vector<2x128xf32>
    %372 = vector.broadcast %351 : vector<1x128xf32> to vector<2x128xf32>
    %373 = arith.mulf %371, %372 : vector<2x128xf32>
    %374 = vector.broadcast %353 : vector<1x128xf32> to vector<2x128xf32>
    %375 = arith.addf %373, %374 : vector<2x128xf32>
    %c1_225 = arith.constant 1 : index
    %c0_226 = arith.constant 0 : index
    %c0_227 = arith.constant 0 : index
    %376 = vector.load %arg7[%c1_225, %c0_226, %c0_227] : memref<2x128x1536xf32, #tpu.memory_space<vmem>>, vector<1x128x1536xf32>
    %377 = vector.shape_cast %376 : vector<1x128x1536xf32> to vector<128x1536xf32>
    %cst_228 = arith.constant dense<0.000000e+00> : vector<2x1536xf32>
    %378 = tpu.matmul %375, %377, %cst_228 {dimension_numbers = #tpu.dot_dimension_numbers<[1], [0], [0], [1], [0, 0, 1, 1], [], []>} : vector<2x128xf32>, vector<128x1536xf32>, vector<2x1536xf32> -> vector<2x1536xf32>
    %c1_229 = arith.constant 1 : index
    %c0_230 = arith.constant 0 : index
    %c0_231 = arith.constant 0 : index
    %379 = vector.load %arg8[%c1_229, %c0_230, %c0_231] : memref<2x1x1536xf32, #tpu.memory_space<vmem>>, vector<1x1x1536xf32>
    %380 = vector.shape_cast %379 : vector<1x1x1536xf32> to vector<1x1536xf32>
    %381 = vector.broadcast %380 : vector<1x1536xf32> to vector<2x1536xf32>
    %382 = arith.addf %378, %381 : vector<2x1536xf32>
    %cst_232 = arith.constant 0.000000e+00 : f32
    %383 = vector.broadcast %cst_232 : f32 to vector<2x128xf32>
    %384 = vector.extract_strided_slice %382 {offsets = [0, 0], sizes = [2, 128], strides = [1, 1]} : vector<2x1536xf32> to vector<2x128xf32>
    %385 = vector.extract_strided_slice %382 {offsets = [0, 128], sizes = [2, 128], strides = [1, 1]} : vector<2x1536xf32> to vector<2x128xf32>
    %386 = vector.extract_strided_slice %382 {offsets = [0, 256], sizes = [2, 128], strides = [1, 1]} : vector<2x1536xf32> to vector<2x128xf32>
    %cst_233 = arith.constant dense<0.000000e+00> : vector<2x2xf32>
    %387 = tpu.matmul %384, %385, %cst_233 {dimension_numbers = #tpu.dot_dimension_numbers<[1], [1], [0], [0], [0, 0, 1, 0], [], []>} : vector<2x128xf32>, vector<2x128xf32>, vector<2x2xf32> -> vector<2x2xf32>
    %388 = arith.addf %387, %213 : vector<2x2xf32>
    %cst_234 = arith.constant dense<0xFF800000> : vector<2xf32>
    %389 = vector.multi_reduction <maximumf>, %388, %cst_234 [1] : vector<2x2xf32> to vector<2xf32>
    %390 = vector.shape_cast %389 : vector<2xf32> to vector<2x1xf32>
    %391 = vector.broadcast %390 : vector<2x1xf32> to vector<2x2xf32>
    %392 = arith.subf %388, %391 : vector<2x2xf32>
    %393 = math.exp %392 : vector<2x2xf32>
    %cst_235 = arith.constant dense<0.000000e+00> : vector<2xf32>
    %394 = vector.multi_reduction <add>, %393, %cst_235 [1] : vector<2x2xf32> to vector<2xf32>
    %395 = vector.shape_cast %394 : vector<2xf32> to vector<2x1xf32>
    %396 = tpu.reciprocal %395 {approx = true} : vector<2x1xf32> -> vector<2x1xf32>
    %397 = vector.broadcast %396 : vector<2x1xf32> to vector<2x2xf32>
    %398 = arith.mulf %393, %397 : vector<2x2xf32>
    %cst_236 = arith.constant dense<0.000000e+00> : vector<2x128xf32>
    %399 = tpu.matmul %398, %386, %cst_236 {dimension_numbers = #tpu.dot_dimension_numbers<[1], [0], [0], [1], [0, 0, 1, 1], [], []>} : vector<2x2xf32>, vector<2x128xf32>, vector<2x128xf32> -> vector<2x128xf32>
    %c4_237 = arith.constant 4 : index
    %c0_238 = arith.constant 0 : index
    %c0_239 = arith.constant 0 : index
    %400 = vector.load %arg9[%c4_237, %c0_238, %c0_239] : memref<8x128x128xf32, #tpu.memory_space<vmem>>, vector<1x128x128xf32>
    %401 = vector.shape_cast %400 : vector<1x128x128xf32> to vector<128x128xf32>
    %cst_240 = arith.constant dense<0.000000e+00> : vector<2x128xf32>
    %402 = tpu.matmul %399, %401, %cst_240 {dimension_numbers = #tpu.dot_dimension_numbers<[1], [0], [0], [1], [0, 0, 1, 1], [], []>} : vector<2x128xf32>, vector<128x128xf32>, vector<2x128xf32> -> vector<2x128xf32>
    %403 = arith.addf %383, %402 : vector<2x128xf32>
    %404 = vector.extract_strided_slice %382 {offsets = [0, 384], sizes = [2, 128], strides = [1, 1]} : vector<2x1536xf32> to vector<2x128xf32>
    %405 = vector.extract_strided_slice %382 {offsets = [0, 512], sizes = [2, 128], strides = [1, 1]} : vector<2x1536xf32> to vector<2x128xf32>
    %406 = vector.extract_strided_slice %382 {offsets = [0, 640], sizes = [2, 128], strides = [1, 1]} : vector<2x1536xf32> to vector<2x128xf32>
    %cst_241 = arith.constant dense<0.000000e+00> : vector<2x2xf32>
    %407 = tpu.matmul %404, %405, %cst_241 {dimension_numbers = #tpu.dot_dimension_numbers<[1], [1], [0], [0], [0, 0, 1, 0], [], []>} : vector<2x128xf32>, vector<2x128xf32>, vector<2x2xf32> -> vector<2x2xf32>
    %408 = arith.addf %407, %213 : vector<2x2xf32>
    %cst_242 = arith.constant dense<0xFF800000> : vector<2xf32>
    %409 = vector.multi_reduction <maximumf>, %408, %cst_242 [1] : vector<2x2xf32> to vector<2xf32>
    %410 = vector.shape_cast %409 : vector<2xf32> to vector<2x1xf32>
    %411 = vector.broadcast %410 : vector<2x1xf32> to vector<2x2xf32>
    %412 = arith.subf %408, %411 : vector<2x2xf32>
    %413 = math.exp %412 : vector<2x2xf32>
    %cst_243 = arith.constant dense<0.000000e+00> : vector<2xf32>
    %414 = vector.multi_reduction <add>, %413, %cst_243 [1] : vector<2x2xf32> to vector<2xf32>
    %415 = vector.shape_cast %414 : vector<2xf32> to vector<2x1xf32>
    %416 = tpu.reciprocal %415 {approx = true} : vector<2x1xf32> -> vector<2x1xf32>
    %417 = vector.broadcast %416 : vector<2x1xf32> to vector<2x2xf32>
    %418 = arith.mulf %413, %417 : vector<2x2xf32>
    %cst_244 = arith.constant dense<0.000000e+00> : vector<2x128xf32>
    %419 = tpu.matmul %418, %406, %cst_244 {dimension_numbers = #tpu.dot_dimension_numbers<[1], [0], [0], [1], [0, 0, 1, 1], [], []>} : vector<2x2xf32>, vector<2x128xf32>, vector<2x128xf32> -> vector<2x128xf32>
    %c5_245 = arith.constant 5 : index
    %c0_246 = arith.constant 0 : index
    %c0_247 = arith.constant 0 : index
    %420 = vector.load %arg9[%c5_245, %c0_246, %c0_247] : memref<8x128x128xf32, #tpu.memory_space<vmem>>, vector<1x128x128xf32>
    %421 = vector.shape_cast %420 : vector<1x128x128xf32> to vector<128x128xf32>
    %cst_248 = arith.constant dense<0.000000e+00> : vector<2x128xf32>
    %422 = tpu.matmul %419, %421, %cst_248 {dimension_numbers = #tpu.dot_dimension_numbers<[1], [0], [0], [1], [0, 0, 1, 1], [], []>} : vector<2x128xf32>, vector<128x128xf32>, vector<2x128xf32> -> vector<2x128xf32>
    %423 = arith.addf %403, %422 : vector<2x128xf32>
    %424 = vector.extract_strided_slice %382 {offsets = [0, 768], sizes = [2, 128], strides = [1, 1]} : vector<2x1536xf32> to vector<2x128xf32>
    %425 = vector.extract_strided_slice %382 {offsets = [0, 896], sizes = [2, 128], strides = [1, 1]} : vector<2x1536xf32> to vector<2x128xf32>
    %426 = vector.extract_strided_slice %382 {offsets = [0, 1024], sizes = [2, 128], strides = [1, 1]} : vector<2x1536xf32> to vector<2x128xf32>
    %cst_249 = arith.constant dense<0.000000e+00> : vector<2x2xf32>
    %427 = tpu.matmul %424, %425, %cst_249 {dimension_numbers = #tpu.dot_dimension_numbers<[1], [1], [0], [0], [0, 0, 1, 0], [], []>} : vector<2x128xf32>, vector<2x128xf32>, vector<2x2xf32> -> vector<2x2xf32>
    %428 = arith.addf %427, %213 : vector<2x2xf32>
    %cst_250 = arith.constant dense<0xFF800000> : vector<2xf32>
    %429 = vector.multi_reduction <maximumf>, %428, %cst_250 [1] : vector<2x2xf32> to vector<2xf32>
    %430 = vector.shape_cast %429 : vector<2xf32> to vector<2x1xf32>
    %431 = vector.broadcast %430 : vector<2x1xf32> to vector<2x2xf32>
    %432 = arith.subf %428, %431 : vector<2x2xf32>
    %433 = math.exp %432 : vector<2x2xf32>
    %cst_251 = arith.constant dense<0.000000e+00> : vector<2xf32>
    %434 = vector.multi_reduction <add>, %433, %cst_251 [1] : vector<2x2xf32> to vector<2xf32>
    %435 = vector.shape_cast %434 : vector<2xf32> to vector<2x1xf32>
    %436 = tpu.reciprocal %435 {approx = true} : vector<2x1xf32> -> vector<2x1xf32>
    %437 = vector.broadcast %436 : vector<2x1xf32> to vector<2x2xf32>
    %438 = arith.mulf %433, %437 : vector<2x2xf32>
    %cst_252 = arith.constant dense<0.000000e+00> : vector<2x128xf32>
    %439 = tpu.matmul %438, %426, %cst_252 {dimension_numbers = #tpu.dot_dimension_numbers<[1], [0], [0], [1], [0, 0, 1, 1], [], []>} : vector<2x2xf32>, vector<2x128xf32>, vector<2x128xf32> -> vector<2x128xf32>
    %c6_253 = arith.constant 6 : index
    %c0_254 = arith.constant 0 : index
    %c0_255 = arith.constant 0 : index
    %440 = vector.load %arg9[%c6_253, %c0_254, %c0_255] : memref<8x128x128xf32, #tpu.memory_space<vmem>>, vector<1x128x128xf32>
    %441 = vector.shape_cast %440 : vector<1x128x128xf32> to vector<128x128xf32>
    %cst_256 = arith.constant dense<0.000000e+00> : vector<2x128xf32>
    %442 = tpu.matmul %439, %441, %cst_256 {dimension_numbers = #tpu.dot_dimension_numbers<[1], [0], [0], [1], [0, 0, 1, 1], [], []>} : vector<2x128xf32>, vector<128x128xf32>, vector<2x128xf32> -> vector<2x128xf32>
    %443 = arith.addf %423, %442 : vector<2x128xf32>
    %444 = vector.extract_strided_slice %382 {offsets = [0, 1152], sizes = [2, 128], strides = [1, 1]} : vector<2x1536xf32> to vector<2x128xf32>
    %445 = vector.extract_strided_slice %382 {offsets = [0, 1280], sizes = [2, 128], strides = [1, 1]} : vector<2x1536xf32> to vector<2x128xf32>
    %446 = vector.extract_strided_slice %382 {offsets = [0, 1408], sizes = [2, 128], strides = [1, 1]} : vector<2x1536xf32> to vector<2x128xf32>
    %cst_257 = arith.constant dense<0.000000e+00> : vector<2x2xf32>
    %447 = tpu.matmul %444, %445, %cst_257 {dimension_numbers = #tpu.dot_dimension_numbers<[1], [1], [0], [0], [0, 0, 1, 0], [], []>} : vector<2x128xf32>, vector<2x128xf32>, vector<2x2xf32> -> vector<2x2xf32>
    %448 = arith.addf %447, %213 : vector<2x2xf32>
    %cst_258 = arith.constant dense<0xFF800000> : vector<2xf32>
    %449 = vector.multi_reduction <maximumf>, %448, %cst_258 [1] : vector<2x2xf32> to vector<2xf32>
    %450 = vector.shape_cast %449 : vector<2xf32> to vector<2x1xf32>
    %451 = vector.broadcast %450 : vector<2x1xf32> to vector<2x2xf32>
    %452 = arith.subf %448, %451 : vector<2x2xf32>
    %453 = math.exp %452 : vector<2x2xf32>
    %cst_259 = arith.constant dense<0.000000e+00> : vector<2xf32>
    %454 = vector.multi_reduction <add>, %453, %cst_259 [1] : vector<2x2xf32> to vector<2xf32>
    %455 = vector.shape_cast %454 : vector<2xf32> to vector<2x1xf32>
    %456 = tpu.reciprocal %455 {approx = true} : vector<2x1xf32> -> vector<2x1xf32>
    %457 = vector.broadcast %456 : vector<2x1xf32> to vector<2x2xf32>
    %458 = arith.mulf %453, %457 : vector<2x2xf32>
    %cst_260 = arith.constant dense<0.000000e+00> : vector<2x128xf32>
    %459 = tpu.matmul %458, %446, %cst_260 {dimension_numbers = #tpu.dot_dimension_numbers<[1], [0], [0], [1], [0, 0, 1, 1], [], []>} : vector<2x2xf32>, vector<2x128xf32>, vector<2x128xf32> -> vector<2x128xf32>
    %c7_261 = arith.constant 7 : index
    %c0_262 = arith.constant 0 : index
    %c0_263 = arith.constant 0 : index
    %460 = vector.load %arg9[%c7_261, %c0_262, %c0_263] : memref<8x128x128xf32, #tpu.memory_space<vmem>>, vector<1x128x128xf32>
    %461 = vector.shape_cast %460 : vector<1x128x128xf32> to vector<128x128xf32>
    %cst_264 = arith.constant dense<0.000000e+00> : vector<2x128xf32>
    %462 = tpu.matmul %459, %461, %cst_264 {dimension_numbers = #tpu.dot_dimension_numbers<[1], [0], [0], [1], [0, 0, 1, 1], [], []>} : vector<2x128xf32>, vector<128x128xf32>, vector<2x128xf32> -> vector<2x128xf32>
    %463 = arith.addf %443, %462 : vector<2x128xf32>
    %c1_265 = arith.constant 1 : index
    %c0_266 = arith.constant 0 : index
    %c0_267 = arith.constant 0 : index
    %464 = vector.load %arg10[%c1_265, %c0_266, %c0_267] : memref<2x1x128xf32, #tpu.memory_space<vmem>>, vector<1x1x128xf32>
    %465 = vector.shape_cast %464 : vector<1x1x128xf32> to vector<1x128xf32>
    %466 = vector.broadcast %465 : vector<1x128xf32> to vector<2x128xf32>
    %467 = arith.addf %463, %466 : vector<2x128xf32>
    %468 = arith.addf %375, %467 : vector<2x128xf32>
    %c1_268 = arith.constant 1 : index
    %c0_269 = arith.constant 0 : index
    %c0_270 = arith.constant 0 : index
    %469 = vector.load %arg11[%c1_268, %c0_269, %c0_270] : memref<2x1x128xf32, #tpu.memory_space<vmem>>, vector<1x1x128xf32>
    %470 = vector.shape_cast %469 : vector<1x1x128xf32> to vector<1x128xf32>
    %c1_271 = arith.constant 1 : index
    %c0_272 = arith.constant 0 : index
    %c0_273 = arith.constant 0 : index
    %471 = vector.load %arg12[%c1_271, %c0_272, %c0_273] : memref<2x1x128xf32, #tpu.memory_space<vmem>>, vector<1x1x128xf32>
    %472 = vector.shape_cast %471 : vector<1x1x128xf32> to vector<1x128xf32>
    %cst_274 = arith.constant dense<0.000000e+00> : vector<2xf32>
    %473 = vector.multi_reduction <add>, %468, %cst_274 [1] : vector<2x128xf32> to vector<2xf32>
    %474 = vector.shape_cast %473 : vector<2xf32> to vector<2x1xf32>
    %cst_275 = arith.constant 3.125000e-02 : f32
    %475 = vector.broadcast %cst_275 : f32 to vector<2x1xf32>
    %476 = arith.mulf %474, %475 : vector<2x1xf32>
    %477 = vector.broadcast %476 : vector<2x1xf32> to vector<2x128xf32>
    %478 = arith.subf %468, %477 : vector<2x128xf32>
    %479 = vector.broadcast %4 : vector<1x128xf32> to vector<2x128xf32>
    %480 = arith.mulf %478, %479 : vector<2x128xf32>
    %481 = arith.mulf %480, %480 : vector<2x128xf32>
    %cst_276 = arith.constant dense<0.000000e+00> : vector<2xf32>
    %482 = vector.multi_reduction <add>, %481, %cst_276 [1] : vector<2x128xf32> to vector<2xf32>
    %483 = vector.shape_cast %482 : vector<2xf32> to vector<2x1xf32>
    %cst_277 = arith.constant 3.125000e-02 : f32
    %484 = vector.broadcast %cst_277 : f32 to vector<2x1xf32>
    %485 = arith.mulf %483, %484 : vector<2x1xf32>
    %cst_278 = arith.constant 9.99999974E-6 : f32
    %486 = vector.broadcast %cst_278 : f32 to vector<2x1xf32>
    %487 = arith.addf %485, %486 : vector<2x1xf32>
    %488 = math.rsqrt %487 : vector<2x1xf32>
    %489 = vector.broadcast %488 : vector<2x1xf32> to vector<2x128xf32>
    %490 = arith.mulf %480, %489 : vector<2x128xf32>
    %491 = vector.broadcast %470 : vector<1x128xf32> to vector<2x128xf32>
    %492 = arith.mulf %490, %491 : vector<2x128xf32>
    %493 = vector.broadcast %472 : vector<1x128xf32> to vector<2x128xf32>
    %494 = arith.addf %492, %493 : vector<2x128xf32>
    %c1_279 = arith.constant 1 : index
    %c0_280 = arith.constant 0 : index
    %c0_281 = arith.constant 0 : index
    %495 = vector.load %arg13[%c1_279, %c0_280, %c0_281] : memref<2x128x128xf32, #tpu.memory_space<vmem>>, vector<1x128x128xf32>
    %496 = vector.shape_cast %495 : vector<1x128x128xf32> to vector<128x128xf32>
    %cst_282 = arith.constant dense<0.000000e+00> : vector<2x128xf32>
    %497 = tpu.matmul %494, %496, %cst_282 {dimension_numbers = #tpu.dot_dimension_numbers<[1], [0], [0], [1], [0, 0, 1, 1], [], []>} : vector<2x128xf32>, vector<128x128xf32>, vector<2x128xf32> -> vector<2x128xf32>
    %c1_283 = arith.constant 1 : index
    %c0_284 = arith.constant 0 : index
    %c0_285 = arith.constant 0 : index
    %498 = vector.load %arg14[%c1_283, %c0_284, %c0_285] : memref<2x1x128xf32, #tpu.memory_space<vmem>>, vector<1x1x128xf32>
    %499 = vector.shape_cast %498 : vector<1x1x128xf32> to vector<1x128xf32>
    %500 = vector.broadcast %499 : vector<1x128xf32> to vector<2x128xf32>
    %501 = arith.addf %497, %500 : vector<2x128xf32>
    %cst_286 = arith.constant 0.000000e+00 : f32
    %502 = vector.broadcast %cst_286 : f32 to vector<2x128xf32>
    %503 = arith.maximumf %501, %502 : vector<2x128xf32>
    %c1_287 = arith.constant 1 : index
    %c0_288 = arith.constant 0 : index
    %c0_289 = arith.constant 0 : index
    %504 = vector.load %arg15[%c1_287, %c0_288, %c0_289] : memref<2x128x128xf32, #tpu.memory_space<vmem>>, vector<1x128x128xf32>
    %505 = vector.shape_cast %504 : vector<1x128x128xf32> to vector<128x128xf32>
    %cst_290 = arith.constant dense<0.000000e+00> : vector<2x128xf32>
    %506 = tpu.matmul %503, %505, %cst_290 {dimension_numbers = #tpu.dot_dimension_numbers<[1], [0], [0], [1], [0, 0, 1, 1], [], []>} : vector<2x128xf32>, vector<128x128xf32>, vector<2x128xf32> -> vector<2x128xf32>
    %c1_291 = arith.constant 1 : index
    %c0_292 = arith.constant 0 : index
    %c0_293 = arith.constant 0 : index
    %507 = vector.load %arg16[%c1_291, %c0_292, %c0_293] : memref<2x1x128xf32, #tpu.memory_space<vmem>>, vector<1x1x128xf32>
    %508 = vector.shape_cast %507 : vector<1x1x128xf32> to vector<1x128xf32>
    %509 = vector.broadcast %508 : vector<1x128xf32> to vector<2x128xf32>
    %510 = arith.addf %506, %509 : vector<2x128xf32>
    %511 = arith.addf %494, %510 : vector<2x128xf32>
    %c1_294 = arith.constant 1 : index
    %c0_295 = arith.constant 0 : index
    %c0_296 = arith.constant 0 : index
    %512 = vector.load %arg17[%c1_294, %c0_295, %c0_296] : memref<2x1x128xf32, #tpu.memory_space<vmem>>, vector<1x1x128xf32>
    %513 = vector.shape_cast %512 : vector<1x1x128xf32> to vector<1x128xf32>
    %c1_297 = arith.constant 1 : index
    %c0_298 = arith.constant 0 : index
    %c0_299 = arith.constant 0 : index
    %514 = vector.load %arg18[%c1_297, %c0_298, %c0_299] : memref<2x1x128xf32, #tpu.memory_space<vmem>>, vector<1x1x128xf32>
    %515 = vector.shape_cast %514 : vector<1x1x128xf32> to vector<1x128xf32>
    %cst_300 = arith.constant dense<0.000000e+00> : vector<2xf32>
    %516 = vector.multi_reduction <add>, %511, %cst_300 [1] : vector<2x128xf32> to vector<2xf32>
    %517 = vector.shape_cast %516 : vector<2xf32> to vector<2x1xf32>
    %cst_301 = arith.constant 3.125000e-02 : f32
    %518 = vector.broadcast %cst_301 : f32 to vector<2x1xf32>
    %519 = arith.mulf %517, %518 : vector<2x1xf32>
    %520 = vector.broadcast %519 : vector<2x1xf32> to vector<2x128xf32>
    %521 = arith.subf %511, %520 : vector<2x128xf32>
    %522 = vector.broadcast %4 : vector<1x128xf32> to vector<2x128xf32>
    %523 = arith.mulf %521, %522 : vector<2x128xf32>
    %524 = arith.mulf %523, %523 : vector<2x128xf32>
    %cst_302 = arith.constant dense<0.000000e+00> : vector<2xf32>
    %525 = vector.multi_reduction <add>, %524, %cst_302 [1] : vector<2x128xf32> to vector<2xf32>
    %526 = vector.shape_cast %525 : vector<2xf32> to vector<2x1xf32>
    %cst_303 = arith.constant 3.125000e-02 : f32
    %527 = vector.broadcast %cst_303 : f32 to vector<2x1xf32>
    %528 = arith.mulf %526, %527 : vector<2x1xf32>
    %cst_304 = arith.constant 9.99999974E-6 : f32
    %529 = vector.broadcast %cst_304 : f32 to vector<2x1xf32>
    %530 = arith.addf %528, %529 : vector<2x1xf32>
    %531 = math.rsqrt %530 : vector<2x1xf32>
    %532 = vector.broadcast %531 : vector<2x1xf32> to vector<2x128xf32>
    %533 = arith.mulf %523, %532 : vector<2x128xf32>
    %534 = vector.broadcast %513 : vector<1x128xf32> to vector<2x128xf32>
    %535 = arith.mulf %533, %534 : vector<2x128xf32>
    %536 = vector.broadcast %515 : vector<1x128xf32> to vector<2x128xf32>
    %537 = arith.addf %535, %536 : vector<2x128xf32>
    %c0_305 = arith.constant 0 : index
    %c0_306 = arith.constant 0 : index
    %538 = vector.load %arg22[%c0_305, %c0_306] : memref<2x128xf32, #tpu.memory_space<vmem>>, vector<2x128xf32>
    tpu.vector_store %arg22[%c0_305, %c0_306], %537 {strides = array<i32>} : memref<2x128xf32, #tpu.memory_space<vmem>>, vector<2x128xf32>,
    %c0_307 = arith.constant 0 : index
    %c0_308 = arith.constant 0 : index
    %539 = vector.load %arg19[%c0_307, %c0_308] : memref<128x128xf32, #tpu.memory_space<vmem>>, vector<128x128xf32>
    %cst_309 = arith.constant dense<0.000000e+00> : vector<2x128xf32>
    %540 = tpu.matmul %537, %539, %cst_309 {dimension_numbers = #tpu.dot_dimension_numbers<[1], [0], [0], [1], [0, 0, 1, 1], [], []>} : vector<2x128xf32>, vector<128x128xf32>, vector<2x128xf32> -> vector<2x128xf32>
    %c0_310 = arith.constant 0 : index
    %c0_311 = arith.constant 0 : index
    %541 = vector.load %arg20[%c0_310, %c0_311] : memref<1x128xf32, #tpu.memory_space<vmem>>, vector<1x128xf32>
    %542 = vector.broadcast %541 : vector<1x128xf32> to vector<2x128xf32>
    %543 = arith.addf %540, %542 : vector<2x128xf32>
    %c0_312 = arith.constant 0 : index
    %c0_313 = arith.constant 0 : index
    %544 = vector.load %arg21[%c0_312, %c0_313] : memref<2x128xf32, #tpu.memory_space<vmem>>, vector<2x128xf32>
    tpu.vector_store %arg21[%c0_312, %c0_313], %543 {strides = array<i32>} : memref<2x128xf32, #tpu.memory_space<vmem>>, vector<2x128xf32>,
    return
  }
}

</mosaic_0001>

<llo_original>
// kernel: forward.1
$region0: #{forward.1}
  #allocation0 [shape = 'u32[]', space=smem, size = 0x4, offset = 0x4, fixed_abs, tag = 'smem constant byte address 0x4 - core index']
  #allocation1 [shape = 'u32[144,128]{1,0:T(1,128)}', space=vmem, size = 0x12000, scoped, tag = 'internal scratch']
  %s0 = inlined_call_operand.vmem [shape: s32[2,8], index: 0, kind: input, shape index: {}]
  %s1 = inlined_call_operand.vmem [shape: s32[2,8], index: 1, kind: input, shape index: {}]
  %s2 = inlined_call_operand.vmem [shape: f32[2,8], index: 2, kind: input, shape index: {}]
  %s3 = inlined_call_operand.hbm [shape: f32[128,128], index: 3, kind: input, shape index: {}]
  %s4 = inlined_call_operand.hbm [shape: f32[128,128], index: 4, kind: input, shape index: {}]
  %s5 = inlined_call_operand.hbm [shape: f32[1,128], index: 5, kind: input, shape index: {}]
  %s6 = inlined_call_operand.vmem [shape: f32[2,128], index: 6, kind: input, shape index: {}]
  %s7 = inlined_call_operand.hbm [shape: f32[2,128,1536], index: 7, kind: input, shape index: {}]
  %s8 = inlined_call_operand.hbm [shape: f32[2,1,1536], index: 8, kind: input, shape index: {}]
  %s9 = inlined_call_operand.hbm [shape: f32[8,128,128], index: 9, kind: input, shape index: {}]
  %s10 = inlined_call_operand.hbm [shape: f32[2,1,128], index: 10, kind: input, shape index: {}]
  %s11 = inlined_call_operand.hbm [shape: f32[2,1,128], index: 11, kind: input, shape index: {}]
  %s12 = inlined_call_operand.hbm [shape: f32[2,1,128], index: 12, kind: input, shape index: {}]
  %s13 = inlined_call_operand.hbm [shape: f32[2,128,128], index: 13, kind: input, shape index: {}]
  %s14 = inlined_call_operand.hbm [shape: f32[2,1,128], index: 14, kind: input, shape index: {}]
  %s15 = inlined_call_operand.hbm [shape: f32[2,128,128], index: 15, kind: input, shape index: {}]
  %s16 = inlined_call_operand.hbm [shape: f32[2,1,128], index: 16, kind: input, shape index: {}]
  %s17 = inlined_call_operand.hbm [shape: f32[2,1,128], index: 17, kind: input, shape index: {}]
  %s18 = inlined_call_operand.hbm [shape: f32[2,1,128], index: 18, kind: input, shape index: {}]
  %s19 = inlined_call_operand.hbm [shape: f32[128,128], index: 19, kind: input, shape index: {}]
  %s20 = inlined_call_operand.hbm [shape: f32[1,128], index: 20, kind: input, shape index: {}]
  %s21 = inlined_call_operand.hbm [shape: f32[2,128], index: 21, kind: output, shape index: {0}]
  %s22 = inlined_call_operand.hbm [shape: f32[2,128], index: 22, kind: output, shape index: {1}]
  %23 = xla_tuple %s21, %s22
  %s24 = sld [smem:[#allocation0]]
  $region182: #{forward.1} parent=0
    _
  %s26 = ssub.s32 1, %s24
  %s27 = scalar_select 0, %s26, %s24
  $region1: #{forward.1} parent=0
    #allocation2 [shape = 'u8[1024]{0}', space=smem, size = 0x400, scoped, tag = 'input window, operand 0, single buffered']
    #allocation3 [shape = 's32[1]{0}', space=sflag, size = 0x4, scoped, tag = 'scoped memory for forward.1']
    #allocation4 [shape = 's32[1]{0}', space=sflag, size = 0x4, scoped, tag = 'scoped memory for forward.1']
    #allocation5 [shape = 's32[1]{0}', space=sflag, size = 0x4, scoped, tag = 'scoped memory for forward.1']
    #allocation6 [shape = 'u8[1024]{0}', space=smem, size = 0x400, scoped, tag = 'input window, operand 1, single buffered']
    #allocation7 [shape = 's32[1]{0}', space=sflag, size = 0x4, scoped, tag = 'scoped memory for forward.1']
    #allocation8 [shape = 'u8[1024]{0}', space=smem, size = 0x400, scoped, tag = 'input window, operand 2, single buffered']
    #allocation9 [shape = 'u8[65536]{0}', space=vmem, size = 0x10000, scoped, tag = 'input window, operand 3, single buffered']
    #allocation10 [shape = 'u8[65536]{0}', space=vmem, size = 0x10000, scoped, tag = 'input window, operand 4, single buffered']
    #allocation11 [shape = 's32[1]{0}', space=sflag, size = 0x4, scoped, tag = 'scoped memory for forward.1']
    #allocation12 [shape = 'u8[512]{0}', space=vmem, size = 0x400, scoped, tag = 'input window, operand 5, single buffered']
    #allocation13 [shape = 'u8[1572864]{0}', space=vmem, size = 0x180000, scoped, tag = 'input window, operand 7, single buffered']
    #allocation14 [shape = 's32[1]{0}', space=sflag, size = 0x4, scoped, tag = 'scoped memory for forward.1']
    #allocation15 [shape = 'u8[12288]{0}', space=vmem, size = 0x3000, scoped, tag = 'input window, operand 8, single buffered']
    #allocation16 [shape = 'u8[524288]{0}', space=vmem, size = 0x80000, scoped, tag = 'input window, operand 9, single buffered']
    #allocation17 [shape = 's32[1]{0}', space=sflag, size = 0x4, scoped, tag = 'scoped memory for forward.1']
    #allocation18 [shape = 'u8[1024]{0}', space=vmem, size = 0x400, scoped, tag = 'input window, operand 10, single buffered']
    #allocation19 [shape = 'u8[1024]{0}', space=vmem, size = 0x400, scoped, tag = 'input window, operand 11, single buffered']
    #allocation20 [shape = 's32[1]{0}', space=sflag, size = 0x4, scoped, tag = 'scoped memory for forward.1']
    #allocation21 [shape = 'u8[1024]{0}', space=vmem, size = 0x400, scoped, tag = 'input window, operand 12, single buffered']
    #allocation22 [shape = 'u8[131072]{0}', space=vmem, size = 0x20000, scoped, tag = 'input window, operand 13, single buffered']
    #allocation23 [shape = 's32[1]{0}', space=sflag, size = 0x4, scoped, tag = 'scoped memory for forward.1']
    #allocation24 [shape = 'u8[1024]{0}', space=vmem, size = 0x400, scoped, tag = 'input window, operand 14, single buffered']
    #allocation25 [shape = 'u8[131072]{0}', space=vmem, size = 0x20000, scoped, tag = 'input window, operand 15, single buffered']
    #allocation26 [shape = 's32[1]{0}', space=sflag, size = 0x4, scoped, tag = 'scoped memory for forward.1']
    #allocation27 [shape = 'u8[1024]{0}', space=vmem, size = 0x400, scoped, tag = 'input window, operand 16, single buffered']
    #allocation28 [shape = 'u8[1024]{0}', space=vmem, size = 0x400, scoped, tag = 'input window, operand 17, single buffered']
    #allocation29 [shape = 's32[1]{0}', space=sflag, size = 0x4, scoped, tag = 'scoped memory for forward.1']
    #allocation30 [shape = 'u8[1024]{0}', space=vmem, size = 0x400, scoped, tag = 'input window, operand 18, single buffered']
    #allocation31 [shape = 'u8[65536]{0}', space=vmem, size = 0x10000, scoped, tag = 'input window, operand 19, single buffered']
    #allocation32 [shape = 's32[1]{0}', space=sflag, size = 0x4, scoped, tag = 'scoped memory for forward.1']
    #allocation33 [shape = 'u8[512]{0}', space=vmem, size = 0x400, scoped, tag = 'input window, operand 20, single buffered']
    #allocation34 [shape = 'u8[1024]{0}', space=vmem, size = 0x400, scoped, tag = 'output window, operand 0, single buffered']
    #allocation35 [shape = 'u8[1024]{0}', space=vmem, size = 0x400, scoped, tag = 'output window, operand 1, single buffered']
    #allocation36 [shape = 's32[1]{0}', space=sflag, size = 0x4, scoped, tag = 'scoped memory for forward.1']
    %28 = vsyncpa [#allocation5], 0
    %29 = vsyncpa [#allocation7], 0
    %30 = vsyncpa [#allocation3], 0
    %31 = vsyncpa [#allocation11], 0
    %32 = vsyncpa [#allocation14], 0
    %33 = vsyncpa [#allocation17], 0
    %34 = vsyncpa [#allocation20], 0
    %35 = vsyncpa [#allocation23], 0
    %36 = vsyncpa [#allocation26], 0
    %37 = vsyncpa [#allocation29], 0
    %38 = vsyncpa [#allocation32], 0
    %39 = vsyncpa [#allocation4], 0
    %40 = vsyncpa [#allocation36], 0
    // Predicated region
    $region2: #{forward.1} parent=1 // pred_check
      _
    $region3: #{forward.1} parent=1 // pred_check_branch
      %42 = sbr.rel (0) target = $region5
    $region4: #{forward.1} parent=1 // pred_region
      %s44 = ssub.s32 32, 32
      %45 = vsyncadd [#allocation5], %s44
      %s47 = sshll.u32 %s0, 4
      %s48 = int_to_ptr.vmem [resolvable:$true] %s47
      %50 = dma.vmem_to_smem %s48, 32, [#allocation2], [#allocation5]
    $region5: #{forward.1} parent=1 // pred_fallthru
      _
    // Predicated region
    $region6: #{forward.1} parent=1 // pred_check
      _
    $region7: #{forward.1} parent=1 // pred_check_branch
      %52 = sbr.rel (0) target = $region9
    $region8: #{forward.1} parent=1 // pred_region
      %s54 = ssub.s32 32, 32
      %55 = vsyncadd [#allocation7], %s54
      %s57 = sshll.u32 %s1, 4
      %s58 = int_to_ptr.vmem [resolvable:$true] %s57
      %60 = dma.vmem_to_smem %s58, 32, [#allocation6], [#allocation7]
    $region9: #{forward.1} parent=1 // pred_fallthru
      _
    // Predicated region
    $region10: #{forward.1} parent=1 // pred_check
      _
    $region11: #{forward.1} parent=1 // pred_check_branch
      %62 = sbr.rel (0) target = $region13
    $region12: #{forward.1} parent=1 // pred_region
      %s64 = ssub.s32 32, 32
      %65 = vsyncadd [#allocation7], %s64
      %s67 = sshll.u32 %s2, 4
      %s68 = int_to_ptr.vmem [resolvable:$true] %s67
      %70 = dma.vmem_to_smem %s68, 32, [#allocation8], [#allocation7]
    $region13: #{forward.1} parent=1 // pred_fallthru
      _
    // Predicated region
    $region14: #{forward.1} parent=1 // pred_check
      _
    $region15: #{forward.1} parent=1 // pred_check_branch
      %72 = sbr.rel (0) target = $region17
    $region16: #{forward.1} parent=1 // pred_region
      %s74 = ssub.s32 2048, 2048
      %75 = vsyncadd [#allocation3], %s74
      %s76 = sshll.u32 [#allocation9], 4
      %s77 = int_to_ptr.vmem [resolvable:$true] %s76
      %82 = dma.hbm_to_vmem [thread:$0]  %s3, 2048, %s77, [#allocation3], 128, 128, 8
    $region17: #{forward.1} parent=1 // pred_fallthru
      _
    // Predicated region
    $region18: #{forward.1} parent=1 // pred_check
      _
    $region19: #{forward.1} parent=1 // pred_check_branch
      %84 = sbr.rel (0) target = $region21
    $region20: #{forward.1} parent=1 // pred_region
      %s86 = ssub.s32 2048, 2048
      %87 = vsyncadd [#allocation11], %s86
      %s88 = sshll.u32 [#allocation10], 4
      %s89 = int_to_ptr.vmem [resolvable:$true] %s88
      %94 = dma.hbm_to_vmem [thread:$0]  %s4, 2048, %s89, [#allocation11], 128, 128, 8
    $region21: #{forward.1} parent=1 // pred_fallthru
      _
    // Predicated region
    $region22: #{forward.1} parent=1 // pred_check
      _
    $region23: #{forward.1} parent=1 // pred_check_branch
      %96 = sbr.rel (0) target = $region25
    $region24: #{forward.1} parent=1 // pred_region
      %s98 = ssub.s32 16, 16
      %99 = vsyncadd [#allocation11], %s98
      %s101 = sshll.u32 [#allocation12], 4
      %s102 = int_to_ptr.vmem [resolvable:$true] %s101
      %104 = dma.hbm_to_vmem [thread:$0]  %s5, 16, %s102, [#allocation11]
    $region25: #{forward.1} parent=1 // pred_fallthru
      _
    // Predicated region
    $region26: #{forward.1} parent=1 // pred_check
      _
    $region27: #{forward.1} parent=1 // pred_check_branch
      %106 = sbr.rel (0) target = $region29
    $region28: #{forward.1} parent=1 // pred_region
      _
    $region29: #{forward.1} parent=1 // pred_fallthru
      _
    // Predicated region
    $region30: #{forward.1} parent=1 // pred_check
      _
    $region31: #{forward.1} parent=1 // pred_check_branch
      %108 = sbr.rel (0) target = $region33
    $region32: #{forward.1} parent=1 // pred_region
      %s110 = ssub.s32 49152, 49152
      %111 = vsyncadd [#allocation14], %s110
      %s112 = sshll.u32 [#allocation13], 4
      %s113 = int_to_ptr.vmem [resolvable:$true] %s112
      %118 = dma.hbm_to_vmem [thread:$0]  %s7, 49152, %s113, [#allocation14], 1536, 1536, 96
    $region33: #{forward.1} parent=1 // pred_fallthru
      _
    // Predicated region
    $region34: #{forward.1} parent=1 // pred_check
      _
    $region35: #{forward.1} parent=1 // pred_check_branch
      %120 = sbr.rel (0) target = $region37
    $region36: #{forward.1} parent=1 // pred_region
      %s122 = ssub.s32 384, 384
      %123 = vsyncadd [#allocation14], %s122
      %s124 = sshll.u32 [#allocation15], 4
      %s125 = int_to_ptr.vmem [resolvable:$true] %s124
      %130 = dma.hbm_to_vmem [thread:$0]  %s8, 384, %s125, [#allocation14], 192, 192, 12
    $region37: #{forward.1} parent=1 // pred_fallthru
      _
    // Predicated region
    $region38: #{forward.1} parent=1 // pred_check
      _
    $region39: #{forward.1} parent=1 // pred_check_branch
      %132 = sbr.rel (0) target = $region41
    $region40: #{forward.1} parent=1 // pred_region
      %s134 = ssub.s32 16384, 16384
      %135 = vsyncadd [#allocation17], %s134
      %s136 = sshll.u32 [#allocation16], 4
      %s137 = int_to_ptr.vmem [resolvable:$true] %s136
      %142 = dma.hbm_to_vmem [thread:$0]  %s9, 16384, %s137, [#allocation17], 128, 128, 8
    $region41: #{forward.1} parent=1 // pred_fallthru
      _
    // Predicated region
    $region42: #{forward.1} parent=1 // pred_check
      _
    $region43: #{forward.1} parent=1 // pred_check_branch
      %144 = sbr.rel (0) target = $region45
    $region44: #{forward.1} parent=1 // pred_region
      %s146 = ssub.s32 32, 32
      %147 = vsyncadd [#allocation17], %s146
      %s148 = sshll.u32 [#allocation18], 4
      %s149 = int_to_ptr.vmem [resolvable:$true] %s148
      %154 = dma.hbm_to_vmem [thread:$0]  %s10, 32, %s149, [#allocation17], 16, 16, 1
    $region45: #{forward.1} parent=1 // pred_fallthru
      _
    // Predicated region
    $region46: #{forward.1} parent=1 // pred_check
      _
    $region47: #{forward.1} parent=1 // pred_check_branch
      %156 = sbr.rel (0) target = $region49
    $region48: #{forward.1} parent=1 // pred_region
      %s158 = ssub.s32 32, 32
      %159 = vsyncadd [#allocation20], %s158
      %s160 = sshll.u32 [#allocation19], 4
      %s161 = int_to_ptr.vmem [resolvable:$true] %s160
      %166 = dma.hbm_to_vmem [thread:$0]  %s11, 32, %s161, [#allocation20], 16, 16, 1
    $region49: #{forward.1} parent=1 // pred_fallthru
      _
    // Predicated region
    $region50: #{forward.1} parent=1 // pred_check
      _
    $region51: #{forward.1} parent=1 // pred_check_branch
      %168 = sbr.rel (0) target = $region53
    $region52: #{forward.1} parent=1 // pred_region
      %s170 = ssub.s32 32, 32
      %171 = vsyncadd [#allocation20], %s170
      %s172 = sshll.u32 [#allocation21], 4
      %s173 = int_to_ptr.vmem [resolvable:$true] %s172
      %178 = dma.hbm_to_vmem [thread:$0]  %s12, 32, %s173, [#allocation20], 16, 16, 1
    $region53: #{forward.1} parent=1 // pred_fallthru
      _
    // Predicated region
    $region54: #{forward.1} parent=1 // pred_check
      _
    $region55: #{forward.1} parent=1 // pred_check_branch
      %180 = sbr.rel (0) target = $region57
    $region56: #{forward.1} parent=1 // pred_region
      %s182 = ssub.s32 4096, 4096
      %183 = vsyncadd [#allocation23], %s182
      %s184 = sshll.u32 [#allocation22], 4
      %s185 = int_to_ptr.vmem [resolvable:$true] %s184
      %190 = dma.hbm_to_vmem [thread:$0]  %s13, 4096, %s185, [#allocation23], 128, 128, 8
    $region57: #{forward.1} parent=1 // pred_fallthru
      _
    // Predicated region
    $region58: #{forward.1} parent=1 // pred_check
      _
    $region59: #{forward.1} parent=1 // pred_check_branch
      %192 = sbr.rel (0) target = $region61
    $region60: #{forward.1} parent=1 // pred_region
      %s194 = ssub.s32 32, 32
      %195 = vsyncadd [#allocation23], %s194
      %s196 = sshll.u32 [#allocation24], 4
      %s197 = int_to_ptr.vmem [resolvable:$true] %s196
      %202 = dma.hbm_to_vmem [thread:$0]  %s14, 32, %s197, [#allocation23], 16, 16, 1
    $region61: #{forward.1} parent=1 // pred_fallthru
      _
    // Predicated region
    $region62: #{forward.1} parent=1 // pred_check
      _
    $region63: #{forward.1} parent=1 // pred_check_branch
      %204 = sbr.rel (0) target = $region65
    $region64: #{forward.1} parent=1 // pred_region
      %s206 = ssub.s32 4096, 4096
      %207 = vsyncadd [#allocation26], %s206
      %s208 = sshll.u32 [#allocation25], 4
      %s209 = int_to_ptr.vmem [resolvable:$true] %s208
      %214 = dma.hbm_to_vmem [thread:$0]  %s15, 4096, %s209, [#allocation26], 128, 128, 8
    $region65: #{forward.1} parent=1 // pred_fallthru
      _
    // Predicated region
    $region66: #{forward.1} parent=1 // pred_check
      _
    $region67: #{forward.1} parent=1 // pred_check_branch
      %216 = sbr.rel (0) target = $region69
    $region68: #{forward.1} parent=1 // pred_region
      %s218 = ssub.s32 32, 32
      %219 = vsyncadd [#allocation26], %s218
      %s220 = sshll.u32 [#allocation27], 4
      %s221 = int_to_ptr.vmem [resolvable:$true] %s220
      %226 = dma.hbm_to_vmem [thread:$0]  %s16, 32, %s221, [#allocation26], 16, 16, 1
    $region69: #{forward.1} parent=1 // pred_fallthru
      _
    // Predicated region
    $region70: #{forward.1} parent=1 // pred_check
      _
    $region71: #{forward.1} parent=1 // pred_check_branch
      %228 = sbr.rel (0) target = $region73
    $region72: #{forward.1} parent=1 // pred_region
      %s230 = ssub.s32 32, 32
      %231 = vsyncadd [#allocation29], %s230
      %s232 = sshll.u32 [#allocation28], 4
      %s233 = int_to_ptr.vmem [resolvable:$true] %s232
      %238 = dma.hbm_to_vmem [thread:$0]  %s17, 32, %s233, [#allocation29], 16, 16, 1
    $region73: #{forward.1} parent=1 // pred_fallthru
      _
    // Predicated region
    $region74: #{forward.1} parent=1 // pred_check
      _
    $region75: #{forward.1} parent=1 // pred_check_branch
      %240 = sbr.rel (0) target = $region77
    $region76: #{forward.1} parent=1 // pred_region
      %s242 = ssub.s32 32, 32
      %243 = vsyncadd [#allocation29], %s242
      %s244 = sshll.u32 [#allocation30], 4
      %s245 = int_to_ptr.vmem [resolvable:$true] %s244
      %250 = dma.hbm_to_vmem [thread:$0]  %s18, 32, %s245, [#allocation29], 16, 16, 1
    $region77: #{forward.1} parent=1 // pred_fallthru
      _
    // Predicated region
    $region78: #{forward.1} parent=1 // pred_check
      _
    $region79: #{forward.1} parent=1 // pred_check_branch
      %252 = sbr.rel (0) target = $region81
    $region80: #{forward.1} parent=1 // pred_region
      %s254 = ssub.s32 2048, 2048
      %255 = vsyncadd [#allocation32], %s254
      %s256 = sshll.u32 [#allocation31], 4
      %s257 = int_to_ptr.vmem [resolvable:$true] %s256
      %262 = dma.hbm_to_vmem [thread:$0]  %s19, 2048, %s257, [#allocation32], 128, 128, 8
    $region81: #{forward.1} parent=1 // pred_fallthru
      _
    // Predicated region
    $region82: #{forward.1} parent=1 // pred_check
      _
    $region83: #{forward.1} parent=1 // pred_check_branch
      %264 = sbr.rel (0) target = $region85
    $region84: #{forward.1} parent=1 // pred_region
      %s266 = ssub.s32 16, 16
      %267 = vsyncadd [#allocation32], %s266
      %s269 = sshll.u32 [#allocation33], 4
      %s270 = int_to_ptr.vmem [resolvable:$true] %s269
      %272 = dma.hbm_to_vmem [thread:$0]  %s20, 16, %s270, [#allocation32]
    $region85: #{forward.1} parent=1 // pred_fallthru
      _
    // Predicated region
    $region86: #{forward.1} parent=1 // pred_check
      _
    $region87: #{forward.1} parent=1 // pred_check_branch
      %274 = sbr.rel (0) target = $region89
    $region88: #{forward.1} parent=1 // pred_region
      %275 = dma.done [#allocation5], 32
    $region89: #{forward.1} parent=1 // pred_fallthru
      _
    // Predicated region
    $region90: #{forward.1} parent=1 // pred_check
      _
    $region91: #{forward.1} parent=1 // pred_check_branch
      %277 = sbr.rel (0) target = $region93
    $region92: #{forward.1} parent=1 // pred_region
      %278 = dma.done [#allocation7], 32
    $region93: #{forward.1} parent=1 // pred_fallthru
      _
    // Predicated region
    $region94: #{forward.1} parent=1 // pred_check
      _
    $region95: #{forward.1} parent=1 // pred_check_branch
      %280 = sbr.rel (0) target = $region97
    $region96: #{forward.1} parent=1 // pred_region
      %281 = dma.done [#allocation7], 32
    $region97: #{forward.1} parent=1 // pred_fallthru
      _
    // Predicated region
    $region98: #{forward.1} parent=1 // pred_check
      _
    $region99: #{forward.1} parent=1 // pred_check_branch
      %283 = sbr.rel (0) target = $region101
    $region100: #{forward.1} parent=1 // pred_region
      %284 = dma.done [#allocation3], 2048
    $region101: #{forward.1} parent=1 // pred_fallthru
      _
    // Predicated region
    $region102: #{forward.1} parent=1 // pred_check
      _
    $region103: #{forward.1} parent=1 // pred_check_branch
      %286 = sbr.rel (0) target = $region105
    $region104: #{forward.1} parent=1 // pred_region
      %287 = dma.done [#allocation11], 2048
    $region105: #{forward.1} parent=1 // pred_fallthru
      _
    // Predicated region
    $region106: #{forward.1} parent=1 // pred_check
      _
    $region107: #{forward.1} parent=1 // pred_check_branch
      %289 = sbr.rel (0) target = $region109
    $region108: #{forward.1} parent=1 // pred_region
      %290 = dma.done [#allocation11], 16
    $region109: #{forward.1} parent=1 // pred_fallthru
      _
    // Predicated region
    $region110: #{forward.1} parent=1 // pred_check
      _
    $region111: #{forward.1} parent=1 // pred_check_branch
      %292 = sbr.rel (0) target = $region113
    $region112: #{forward.1} parent=1 // pred_region
      %293 = dma.done [#allocation14], 49152
    $region113: #{forward.1} parent=1 // pred_fallthru
      _
    // Predicated region
    $region114: #{forward.1} parent=1 // pred_check
      _
    $region115: #{forward.1} parent=1 // pred_check_branch
      %295 = sbr.rel (0) target = $region117
    $region116: #{forward.1} parent=1 // pred_region
      %296 = dma.done [#allocation14], 384
    $region117: #{forward.1} parent=1 // pred_fallthru
      _
    // Predicated region
    $region118: #{forward.1} parent=1 // pred_check
      _
    $region119: #{forward.1} parent=1 // pred_check_branch
      %298 = sbr.rel (0) target = $region121
    $region120: #{forward.1} parent=1 // pred_region
      %299 = dma.done [#allocation17], 16384
    $region121: #{forward.1} parent=1 // pred_fallthru
      _
    // Predicated region
    $region122: #{forward.1} parent=1 // pred_check
      _
    $region123: #{forward.1} parent=1 // pred_check_branch
      %301 = sbr.rel (0) target = $region125
    $region124: #{forward.1} parent=1 // pred_region
      %302 = dma.done [#allocation17], 32
    $region125: #{forward.1} parent=1 // pred_fallthru
      _
    // Predicated region
    $region126: #{forward.1} parent=1 // pred_check
      _
    $region127: #{forward.1} parent=1 // pred_check_branch
      %304 = sbr.rel (0) target = $region129
    $region128: #{forward.1} parent=1 // pred_region
      %305 = dma.done [#allocation20], 32
    $region129: #{forward.1} parent=1 // pred_fallthru
      _
    // Predicated region
    $region130: #{forward.1} parent=1 // pred_check
      _
    $region131: #{forward.1} parent=1 // pred_check_branch
      %307 = sbr.rel (0) target = $region133
    $region132: #{forward.1} parent=1 // pred_region
      %308 = dma.done [#allocation20], 32
    $region133: #{forward.1} parent=1 // pred_fallthru
      _
    // Predicated region
    $region134: #{forward.1} parent=1 // pred_check
      _
    $region135: #{forward.1} parent=1 // pred_check_branch
      %310 = sbr.rel (0) target = $region137
    $region136: #{forward.1} parent=1 // pred_region
      %311 = dma.done [#allocation23], 4096
    $region137: #{forward.1} parent=1 // pred_fallthru
      _
    // Predicated region
    $region138: #{forward.1} parent=1 // pred_check
      _
    $region139: #{forward.1} parent=1 // pred_check_branch
      %313 = sbr.rel (0) target = $region141
    $region140: #{forward.1} parent=1 // pred_region
      %314 = dma.done [#allocation23], 32
    $region141: #{forward.1} parent=1 // pred_fallthru
      _
    // Predicated region
    $region142: #{forward.1} parent=1 // pred_check
      _
    $region143: #{forward.1} parent=1 // pred_check_branch
      %316 = sbr.rel (0) target = $region145
    $region144: #{forward.1} parent=1 // pred_region
      %317 = dma.done [#allocation26], 4096
    $region145: #{forward.1} parent=1 // pred_fallthru
      _
    // Predicated region
    $region146: #{forward.1} parent=1 // pred_check
      _
    $region147: #{forward.1} parent=1 // pred_check_branch
      %319 = sbr.rel (0) target = $region149
    $region148: #{forward.1} parent=1 // pred_region
      %320 = dma.done [#allocation26], 32
    $region149: #{forward.1} parent=1 // pred_fallthru
      _
    // Predicated region
    $region150: #{forward.1} parent=1 // pred_check
      _
    $region151: #{forward.1} parent=1 // pred_check_branch
      %322 = sbr.rel (0) target = $region153
    $region152: #{forward.1} parent=1 // pred_region
      %323 = dma.done [#allocation29], 32
    $region153: #{forward.1} parent=1 // pred_fallthru
      _
    // Predicated region
    $region154: #{forward.1} parent=1 // pred_check
      _
    $region155: #{forward.1} parent=1 // pred_check_branch
      %325 = sbr.rel (0) target = $region157
    $region156: #{forward.1} parent=1 // pred_region
      %326 = dma.done [#allocation29], 32
    $region157: #{forward.1} parent=1 // pred_fallthru
      _
    // Predicated region
    $region158: #{forward.1} parent=1 // pred_check
      _
    $region159: #{forward.1} parent=1 // pred_check_branch
      %328 = sbr.rel (0) target = $region161
    $region160: #{forward.1} parent=1 // pred_region
      %329 = dma.done [#allocation32], 2048
    $region161: #{forward.1} parent=1 // pred_fallthru
      _
    // Predicated region
    $region162: #{forward.1} parent=1 // pred_check
      _
    $region163: #{forward.1} parent=1 // pred_check_branch
      %331 = sbr.rel (0) target = $region165
    $region164: #{forward.1} parent=1 // pred_region
      %332 = dma.done [#allocation32], 16
    $region165: #{forward.1} parent=1 // pred_fallthru
      _
    %333 = sfence
    %v334 = vlaneseq
    %v335 = vand.u32 %v334, 127
    %vm336 = vcmp.lt.s32.totalorder %v335, 32
    %v337 = vsel %vm336, 1, 0
    %v338 = vcvt.s32.f32 %v337
    %s339 = sld [smem:[#allocation8]]
    %s340 = sld [smem:[#allocation2]]
    %s341 = sld [smem:[#allocation6]]
    %s342 = scalar_lea.vmem [#allocation9], %s340
    %v343 = vld [vmem:[%s342] sm:$0x1]
    %s344 = sadd.s32 %s341, 100
    %s345 = scalar_lea.vmem [#allocation9], %s344
    %v346 = vld [vmem:[%s345] sm:$0x1]
    %v347 = vadd.f32 %v343, %v346
    %v348 = vstv %s339
    %v349 = vmul.f32 %v348, %v347
    %v350 = vadd.f32 %v349, 0.0
    %s351 = sld [smem:[#allocation8 + $0x1]]
    %s352 = sld [smem:[#allocation2 + $0x1]]
    %s353 = sld [smem:[#allocation6 + $0x1]]
    %s354 = scalar_lea.vmem [#allocation9], %s352
    %v355 = vld [vmem:[%s354] sm:$0x1]
    %s356 = sadd.s32 %s353, 100
    %s357 = scalar_lea.vmem [#allocation9], %s356
    %v358 = vld [vmem:[%s357] sm:$0x1]
    %v359 = vadd.f32 %v355, %v358
    %v360 = vstv %s351
    %v361 = vmul.f32 %v360, %v359
    %v362 = vadd.f32 %v350, %v361
    %s363 = sld [smem:[#allocation8 + $0x2]]
    %s364 = sld [smem:[#allocation2 + $0x2]]
    %s365 = sld [smem:[#allocation6 + $0x2]]
    %s366 = scalar_lea.vmem [#allocation9], %s364
    %v367 = vld [vmem:[%s366] sm:$0x1]
    %s368 = sadd.s32 %s365, 100
    %s369 = scalar_lea.vmem [#allocation9], %s368
    %v370 = vld [vmem:[%s369] sm:$0x1]
    %v371 = vadd.f32 %v367, %v370
    %v372 = vstv %s363
    %v373 = vmul.f32 %v372, %v371
    %v374 = vadd.f32 %v362, %v373
    %s375 = sld [smem:[#allocation8 + $0x3]]
    %s376 = sld [smem:[#allocation2 + $0x3]]
    %s377 = sld [smem:[#allocation6 + $0x3]]
    %s378 = scalar_lea.vmem [#allocation9], %s376
    %v379 = vld [vmem:[%s378] sm:$0x1]
    %s380 = sadd.s32 %s377, 100
    %s381 = scalar_lea.vmem [#allocation9], %s380
    %v382 = vld [vmem:[%s381] sm:$0x1]
    %v383 = vadd.f32 %v379, %v382
    %v384 = vstv %s375
    %v385 = vmul.f32 %v384, %v383
    %v386 = vadd.f32 %v374, %v385
    %s387 = sld [smem:[#allocation8 + $0x4]]
    %s388 = sld [smem:[#allocation2 + $0x4]]
    %s389 = sld [smem:[#allocation6 + $0x4]]
    %s390 = scalar_lea.vmem [#allocation9], %s388
    %v391 = vld [vmem:[%s390] sm:$0x1]
    %s392 = sadd.s32 %s389, 100
    %s393 = scalar_lea.vmem [#allocation9], %s392
    %v394 = vld [vmem:[%s393] sm:$0x1]
    %v395 = vadd.f32 %v391, %v394
    %v396 = vstv %s387
    %v397 = vmul.f32 %v396, %v395
    %v398 = vadd.f32 %v386, %v397
    %s399 = sld [smem:[#allocation8 + $0x5]]
    %s400 = sld [smem:[#allocation2 + $0x5]]
    %s401 = sld [smem:[#allocation6 + $0x5]]
    %s402 = scalar_lea.vmem [#allocation9], %s400
    %v403 = vld [vmem:[%s402] sm:$0x1]
    %s404 = sadd.s32 %s401, 100
    %s405 = scalar_lea.vmem [#allocation9], %s404
    %v406 = vld [vmem:[%s405] sm:$0x1]
    %v407 = vadd.f32 %v403, %v406
    %v408 = vstv %s399
    %v409 = vmul.f32 %v408, %v407
    %v410 = vadd.f32 %v398, %v409
    %s411 = sld [smem:[#allocation8 + $0x6]]
    %s412 = sld [smem:[#allocation2 + $0x6]]
    %s413 = sld [smem:[#allocation6 + $0x6]]
    %s414 = scalar_lea.vmem [#allocation9], %s412
    %v415 = vld [vmem:[%s414] sm:$0x1]
    %s416 = sadd.s32 %s413, 100
    %s417 = scalar_lea.vmem [#allocation9], %s416
    %v418 = vld [vmem:[%s417] sm:$0x1]
    %v419 = vadd.f32 %v415, %v418
    %v420 = vstv %s411
    %v421 = vmul.f32 %v420, %v419
    %v422 = vadd.f32 %v410, %v421
    %s423 = sld [smem:[#allocation8 + $0x7]]
    %s424 = sld [smem:[#allocation2 + $0x7]]
    %s425 = sld [smem:[#allocation6 + $0x7]]
    %s426 = scalar_lea.vmem [#allocation9], %s424
    %v427 = vld [vmem:[%s426] sm:$0x1]
    %s428 = sadd.s32 %s425, 100
    %s429 = scalar_lea.vmem [#allocation9], %s428
    %v430 = vld [vmem:[%s429] sm:$0x1]
    %v431 = vadd.f32 %v427, %v430
    %v432 = vstv %s423
    %v433 = vmul.f32 %v432, %v431
    %v434 = vadd.f32 %v422, %v433
    %s435 = sld [smem:[#allocation8 + $0x80]]
    %s436 = sld [smem:[#allocation2 + $0x80]]
    %s437 = sld [smem:[#allocation6 + $0x80]]
    %s438 = scalar_lea.vmem [#allocation9], %s436
    %v439 = vld [vmem:[%s438] sm:$0x1]
    %s440 = sadd.s32 %s437, 100
    %s441 = scalar_lea.vmem [#allocation9], %s440
    %v442 = vld [vmem:[%s441] sm:$0x1]
    %v443 = vadd.f32 %v439, %v442
    %v444 = vstv %s435
    %v445 = vmul.f32 %v444, %v443
    %v446 = vadd.f32 %v445, 0.0
    %s447 = sld [smem:[#allocation8 + $0x81]]
    %s448 = sld [smem:[#allocation2 + $0x81]]
    %s449 = sld [smem:[#allocation6 + $0x81]]
    %s450 = scalar_lea.vmem [#allocation9], %s448
    %v451 = vld [vmem:[%s450] sm:$0x1]
    %s452 = sadd.s32 %s449, 100
    %s453 = scalar_lea.vmem [#allocation9], %s452
    %v454 = vld [vmem:[%s453] sm:$0x1]
    %v455 = vadd.f32 %v451, %v454
    %v456 = vstv %s447
    %v457 = vmul.f32 %v456, %v455
    %v458 = vadd.f32 %v446, %v457
    %s459 = sld [smem:[#allocation8 + $0x82]]
    %s460 = sld [smem:[#allocation2 + $0x82]]
    %s461 = sld [smem:[#allocation6 + $0x82]]
    %s462 = scalar_lea.vmem [#allocation9], %s460
    %v463 = vld [vmem:[%s462] sm:$0x1]
    %s464 = sadd.s32 %s461, 100
    %s465 = scalar_lea.vmem [#allocation9], %s464
    %v466 = vld [vmem:[%s465] sm:$0x1]
    %v467 = vadd.f32 %v463, %v466
    %v468 = vstv %s459
    %v469 = vmul.f32 %v468, %v467
    %v470 = vadd.f32 %v458, %v469
    %s471 = sld [smem:[#allocation8 + $0x83]]
    %s472 = sld [smem:[#allocation2 + $0x83]]
    %s473 = sld [smem:[#allocation6 + $0x83]]
    %s474 = scalar_lea.vmem [#allocation9], %s472
    %v475 = vld [vmem:[%s474] sm:$0x1]
    %s476 = sadd.s32 %s473, 100
    %s477 = scalar_lea.vmem [#allocation9], %s476
    %v478 = vld [vmem:[%s477] sm:$0x1]
    %v479 = vadd.f32 %v475, %v478
    %v480 = vstv %s471
    %v481 = vmul.f32 %v480, %v479
    %v482 = vadd.f32 %v470, %v481
    %s483 = sld [smem:[#allocation8 + $0x84]]
    %s484 = sld [smem:[#allocation2 + $0x84]]
    %s485 = sld [smem:[#allocation6 + $0x84]]
    %s486 = scalar_lea.vmem [#allocation9], %s484
    %v487 = vld [vmem:[%s486] sm:$0x1]
    %s488 = sadd.s32 %s485, 100
    %s489 = scalar_lea.vmem [#allocation9], %s488
    %v490 = vld [vmem:[%s489] sm:$0x1]
    %v491 = vadd.f32 %v487, %v490
    %v492 = vstv %s483
    %v493 = vmul.f32 %v492, %v491
    %v494 = vadd.f32 %v482, %v493
    %s495 = sld [smem:[#allocation8 + $0x85]]
    %s496 = sld [smem:[#allocation2 + $0x85]]
    %s497 = sld [smem:[#allocation6 + $0x85]]
    %s498 = scalar_lea.vmem [#allocation9], %s496
    %v499 = vld [vmem:[%s498] sm:$0x1]
    %s500 = sadd.s32 %s497, 100
    %s501 = scalar_lea.vmem [#allocation9], %s500
    %v502 = vld [vmem:[%s501] sm:$0x1]
    %v503 = vadd.f32 %v499, %v502
    %v504 = vstv %s495
    %v505 = vmul.f32 %v504, %v503
    %v506 = vadd.f32 %v494, %v505
    %s507 = sld [smem:[#allocation8 + $0x86]]
    %s508 = sld [smem:[#allocation2 + $0x86]]
    %s509 = sld [smem:[#allocation6 + $0x86]]
    %s510 = scalar_lea.vmem [#allocation9], %s508
    %v511 = vld [vmem:[%s510] sm:$0x1]
    %s512 = sadd.s32 %s509, 100
    %s513 = scalar_lea.vmem [#allocation9], %s512
    %v514 = vld [vmem:[%s513] sm:$0x1]
    %v515 = vadd.f32 %v511, %v514
    %v516 = vstv %s507
    %v517 = vmul.f32 %v516, %v515
    %v518 = vadd.f32 %v506, %v517
    %s519 = sld [smem:[#allocation8 + $0x87]]
    %s520 = sld [smem:[#allocation2 + $0x87]]
    %s521 = sld [smem:[#allocation6 + $0x87]]
    %s522 = scalar_lea.vmem [#allocation9], %s520
    %v523 = vld [vmem:[%s522] sm:$0x1]
    %s524 = sadd.s32 %s521, 100
    %s525 = scalar_lea.vmem [#allocation9], %s524
    %v526 = vld [vmem:[%s525] sm:$0x1]
    %v527 = vadd.f32 %v523, %v526
    %v528 = vstv %s519
    %v529 = vmul.f32 %v528, %v527
    %v530 = vadd.f32 %v518, %v529
    %v532 = vrot.slane %v530, 7
    %vm534 = vcmask 1040384
    %v535 = vsel %vm534, %v434, %v532
    %v536 = vld [vmem:[#allocation10] sm:$0xff]
    %v537 = vld [vmem:[#allocation10 + $0x8] sm:$0xff]
    %v538 = vld [vmem:[#allocation10 + $0x10] sm:$0xff]
    %v539 = vld [vmem:[#allocation10 + $0x18] sm:$0xff]
    %v540 = vld [vmem:[#allocation10 + $0x20] sm:$0xff]
    %v541 = vld [vmem:[#allocation10 + $0x28] sm:$0xff]
    %v542 = vld [vmem:[#allocation10 + $0x30] sm:$0xff]
    %v543 = vld [vmem:[#allocation10 + $0x38] sm:$0xff]
    %v544 = vld [vmem:[#allocation10 + $0x40] sm:$0xff]
    %v545 = vld [vmem:[#allocation10 + $0x48] sm:$0xff]
    %v546 = vld [vmem:[#allocation10 + $0x50] sm:$0xff]
    %v547 = vld [vmem:[#allocation10 + $0x58] sm:$0xff]
    %v548 = vld [vmem:[#allocation10 + $0x60] sm:$0xff]
    %v549 = vld [vmem:[#allocation10 + $0x68] sm:$0xff]
    %v550 = vld [vmem:[#allocation10 + $0x70] sm:$0xff]
    %v551 = vld [vmem:[#allocation10 + $0x78] sm:$0xff]
    %v552 = vld [vmem:[#allocation12] sm:$0x1]
    %v554 = vlaneseq
    %v555 = vshrl.u32 %v554, 7
    %v556 = vsub.s32 0, %v555
    %v557 = vrot.slane %v552, %v556
    %559 = vmatprep.subr.mxu0 0.0
    %560 = vmatpush1.msra.mxu0 %v536
    %561 = vmatprep.subr.mxu0 0.0
    %562 = vmatpush1.msra.mxu0 %v537
    %563 = vmatprep.subr.mxu0 0.0
    %564 = vmatpush1.msra.mxu0 %v538
    %565 = vmatprep.subr.mxu0 0.0
    %566 = vmatpush1.msra.mxu0 %v539
    %567 = vmatprep.subr.mxu0 0.0
    %568 = vmatpush1.msra.mxu0 %v540
    %569 = vmatprep.subr.mxu0 0.0
    %570 = vmatpush1.msra.mxu0 %v541
    %571 = vmatprep.subr.mxu0 0.0
    %572 = vmatpush1.msra.mxu0 %v542
    %573 = vmatprep.subr.mxu0 0.0
    %574 = vmatpush1.msra.mxu0 %v543
    %575 = vmatprep.subr.mxu0 0.0
    %576 = vmatpush1.msra.mxu0 %v544
    %577 = vmatprep.subr.mxu0 0.0
    %578 = vmatpush1.msra.mxu0 %v545
    %579 = vmatprep.subr.mxu0 0.0
    %580 = vmatpush1.msra.mxu0 %v546
    %581 = vmatprep.subr.mxu0 0.0
    %582 = vmatpush1.msra.mxu0 %v547
    %583 = vmatprep.subr.mxu0 0.0
    %584 = vmatpush1.msra.mxu0 %v548
    %585 = vmatprep.subr.mxu0 0.0
    %586 = vmatpush1.msra.mxu0 %v549
    %587 = vmatprep.subr.mxu0 0.0
    %588 = vmatpush1.msra.mxu0 %v550
    %589 = vmatprep.subr.mxu0 0.0
    %590 = vmatpush1.msra.mxu0 %v551
    %591 = vmatprep.subr.mxu0 0.0
    %592 = vmatpush1.msra.mxu0 0.0
    %593 = vmatprep.subr.mxu0 0.0
    %594 = vmatpush1.msra.mxu0 0.0
    %595 = vmatprep.subr.mxu0 0.0
    %596 = vmatpush1.msra.mxu0 0.0
    %597 = vmatprep.subr.mxu0 0.0
    %598 = vmatpush1.msra.mxu0 0.0
    %599 = vmatprep.subr.mxu0 0.0
    %600 = vmatpush1.msra.mxu0 0.0
    %601 = vmatprep.subr.mxu0 0.0
    %602 = vmatpush1.msra.mxu0 0.0
    %603 = vmatprep.subr.mxu0 0.0
    %604 = vmatpush1.msra.mxu0 0.0
    %605 = vmatprep.subr.mxu0 0.0
    %606 = vmatpush1.msra.mxu0 0.0
    %607 = vmatprep.subr.mxu0 0.0
    %608 = vmatpush1.msra.mxu0 0.0
    %609 = vmatprep.subr.mxu0 0.0
    %610 = vmatpush1.msra.mxu0 0.0
    %611 = vmatprep.subr.mxu0 0.0
    %612 = vmatpush1.msra.mxu0 0.0
    %613 = vmatprep.subr.mxu0 0.0
    %614 = vmatpush1.msra.mxu0 0.0
    %615 = vmatprep.subr.mxu0 0.0
    %616 = vmatpush1.msra.mxu0 0.0
    %617 = vmatprep.subr.mxu0 0.0
    %618 = vmatpush1.msra.mxu0 0.0
    %619 = vmatprep.subr.mxu0 0.0
    %620 = vmatpush1.msra.mxu0 0.0
    %621 = vmatprep.subr.mxu0 0.0
    %622 = vmatpush1.msra.mxu0 0.0
    %623 = vmatprep.mubr.f32.mxu0 0.0
    %624 = vmatmul.mubr.f32.gmra.mrb[0].mxu0 %v535
    %v625 = vpop.f32.mrb[0].mxu0
    %v626 = vadd.f32 %v557, %v625
    %v627 = vpop.f32.mrb[0].mxu0
    %628 = vdwg.mxu0
    %v629 = vtanh.pop %v626
    %v630 = vld [vmem:[%s6] sm:$0x3]
    %v631 = vadd.f32 %v629, %v630
    %v632 = vlaneseq
    %v633 = vshrl.u32 %v632, 7
    %vm634 = vcmp.le.s32.totalorder %v335, %v633
    %v635 = vsel %vm634, 0.0, -1e+30
    %v636 = vld [vmem:[#allocation13] sm:$0xff]
    %v637 = vld [vmem:[#allocation13 + $0x8] sm:$0xff]
    %v638 = vld [vmem:[#allocation13 + $0x10] sm:$0xff]
    %v639 = vld [vmem:[#allocation13 + $0x18] sm:$0xff]
    %v640 = vld [vmem:[#allocation13 + $0x20] sm:$0xff]
    %v641 = vld [vmem:[#allocation13 + $0x28] sm:$0xff]
    %v642 = vld [vmem:[#allocation13 + $0x30] sm:$0xff]
    %v643 = vld [vmem:[#allocation13 + $0x38] sm:$0xff]
    %v644 = vld [vmem:[#allocation13 + $0x40] sm:$0xff]
    %v645 = vld [vmem:[#allocation13 + $0x48] sm:$0xff]
    %v646 = vld [vmem:[#allocation13 + $0x50] sm:$0xff]
    %v647 = vld [vmem:[#allocation13 + $0x58] sm:$0xff]
    %v648 = vld [vmem:[#allocation13 + $0x60] sm:$0xff]
    %v649 = vld [vmem:[#allocation13 + $0x68] sm:$0xff]
    %v650 = vld [vmem:[#allocation13 + $0x70] sm:$0xff]
    %v651 = vld [vmem:[#allocation13 + $0x78] sm:$0xff]
    %v652 = vld [vmem:[#allocation13 + $0x80] sm:$0xff]
    %v653 = vld [vmem:[#allocation13 + $0x88] sm:$0xff]
    %v654 = vld [vmem:[#allocation13 + $0x90] sm:$0xff]
    %v655 = vld [vmem:[#allocation13 + $0x98] sm:$0xff]
    %v656 = vld [vmem:[#allocation13 + $0xa0] sm:$0xff]
    %v657 = vld [vmem:[#allocation13 + $0xa8] sm:$0xff]
    %v658 = vld [vmem:[#allocation13 + $0xb0] sm:$0xff]
    %v659 = vld [vmem:[#allocation13 + $0xb8] sm:$0xff]
    %v660 = vld [vmem:[#allocation13 + $0xc0] sm:$0xff]
    %v661 = vld [vmem:[#allocation13 + $0xc8] sm:$0xff]
    %v662 = vld [vmem:[#allocation13 + $0xd0] sm:$0xff]
    %v663 = vld [vmem:[#allocation13 + $0xd8] sm:$0xff]
    %v664 = vld [vmem:[#allocation13 + $0xe0] sm:$0xff]
    %v665 = vld [vmem:[#allocation13 + $0xe8] sm:$0xff]
    %v666 = vld [vmem:[#allocation13 + $0xf0] sm:$0xff]
    %v667 = vld [vmem:[#allocation13 + $0xf8] sm:$0xff]
    %v668 = vld [vmem:[#allocation13 + $0x100] sm:$0xff]
    %v669 = vld [vmem:[#allocation13 + $0x108] sm:$0xff]
    %v670 = vld [vmem:[#allocation13 + $0x110] sm:$0xff]
    %v671 = vld [vmem:[#allocation13 + $0x118] sm:$0xff]
    %v672 = vld [vmem:[#allocation13 + $0x120] sm:$0xff]
    %v673 = vld [vmem:[#allocation13 + $0x128] sm:$0xff]
    %v674 = vld [vmem:[#allocation13 + $0x130] sm:$0xff]
    %v675 = vld [vmem:[#allocation13 + $0x138] sm:$0xff]
    %v676 = vld [vmem:[#allocation13 + $0x140] sm:$0xff]
    %v677 = vld [vmem:[#allocation13 + $0x148] sm:$0xff]
    %v678 = vld [vmem:[#allocation13 + $0x150] sm:$0xff]
    %v679 = vld [vmem:[#allocation13 + $0x158] sm:$0xff]
    %v680 = vld [vmem:[#allocation13 + $0x160] sm:$0xff]
    %v681 = vld [vmem:[#allocation13 + $0x168] sm:$0xff]
    %v682 = vld [vmem:[#allocation13 + $0x170] sm:$0xff]
    %v683 = vld [vmem:[#allocation13 + $0x178] sm:$0xff]
    %v684 = vld [vmem:[#allocation13 + $0x180] sm:$0xff]
    %v685 = vld [vmem:[#allocation13 + $0x188] sm:$0xff]
    %v686 = vld [vmem:[#allocation13 + $0x190] sm:$0xff]
    %v687 = vld [vmem:[#allocation13 + $0x198] sm:$0xff]
    %v688 = vld [vmem:[#allocation13 + $0x1a0] sm:$0xff]
    %v689 = vld [vmem:[#allocation13 + $0x1a8] sm:$0xff]
    %v690 = vld [vmem:[#allocation13 + $0x1b0] sm:$0xff]
    %v691 = vld [vmem:[#allocation13 + $0x1b8] sm:$0xff]
    %v692 = vld [vmem:[#allocation13 + $0x1c0] sm:$0xff]
    %v693 = vld [vmem:[#allocation13 + $0x1c8] sm:$0xff]
    %v694 = vld [vmem:[#allocation13 + $0x1d0] sm:$0xff]
    %v695 = vld [vmem:[#allocation13 + $0x1d8] sm:$0xff]
    %v696 = vld [vmem:[#allocation13 + $0x1e0] sm:$0xff]
    %v697 = vld [vmem:[#allocation13 + $0x1e8] sm:$0xff]
    %v698 = vld [vmem:[#allocation13 + $0x1f0] sm:$0xff]
    %v699 = vld [vmem:[#allocation13 + $0x1f8] sm:$0xff]
    %v700 = vld [vmem:[#allocation13 + $0x200] sm:$0xff]
    %v701 = vld [vmem:[#allocation13 + $0x208] sm:$0xff]
    %v702 = vld [vmem:[#allocation13 + $0x210] sm:$0xff]
    %v703 = vld [vmem:[#allocation13 + $0x218] sm:$0xff]
    %v704 = vld [vmem:[#allocation13 + $0x220] sm:$0xff]
    %v705 = vld [vmem:[#allocation13 + $0x228] sm:$0xff]
    %v706 = vld [vmem:[#allocation13 + $0x230] sm:$0xff]
    %v707 = vld [vmem:[#allocation13 + $0x238] sm:$0xff]
    %v708 = vld [vmem:[#allocation13 + $0x240] sm:$0xff]
    %v709 = vld [vmem:[#allocation13 + $0x248] sm:$0xff]
    %v710 = vld [vmem:[#allocation13 + $0x250] sm:$0xff]
    %v711 = vld [vmem:[#allocation13 + $0x258] sm:$0xff]
    %v712 = vld [vmem:[#allocation13 + $0x260] sm:$0xff]
    %v713 = vld [vmem:[#allocation13 + $0x268] sm:$0xff]
    %v714 = vld [vmem:[#allocation13 + $0x270] sm:$0xff]
    %v715 = vld [vmem:[#allocation13 + $0x278] sm:$0xff]
    %v716 = vld [vmem:[#allocation13 + $0x280] sm:$0xff]
    %v717 = vld [vmem:[#allocation13 + $0x288] sm:$0xff]
    %v718 = vld [vmem:[#allocation13 + $0x290] sm:$0xff]
    %v719 = vld [vmem:[#allocation13 + $0x298] sm:$0xff]
    %v720 = vld [vmem:[#allocation13 + $0x2a0] sm:$0xff]
    %v721 = vld [vmem:[#allocation13 + $0x2a8] sm:$0xff]
    %v722 = vld [vmem:[#allocation13 + $0x2b0] sm:$0xff]
    %v723 = vld [vmem:[#allocation13 + $0x2b8] sm:$0xff]
    %v724 = vld [vmem:[#allocation13 + $0x2c0] sm:$0xff]
    %v725 = vld [vmem:[#allocation13 + $0x2c8] sm:$0xff]
    %v726 = vld [vmem:[#allocation13 + $0x2d0] sm:$0xff]
    %v727 = vld [vmem:[#allocation13 + $0x2d8] sm:$0xff]
    %v728 = vld [vmem:[#allocation13 + $0x2e0] sm:$0xff]
    %v729 = vld [vmem:[#allocation13 + $0x2e8] sm:$0xff]
    %v730 = vld [vmem:[#allocation13 + $0x2f0] sm:$0xff]
    %v731 = vld [vmem:[#allocation13 + $0x2f8] sm:$0xff]
    %v732 = vld [vmem:[#allocation13 + $0x300] sm:$0xff]
    %v733 = vld [vmem:[#allocation13 + $0x308] sm:$0xff]
    %v734 = vld [vmem:[#allocation13 + $0x310] sm:$0xff]
    %v735 = vld [vmem:[#allocation13 + $0x318] sm:$0xff]
    %v736 = vld [vmem:[#allocation13 + $0x320] sm:$0xff]
    %v737 = vld [vmem:[#allocation13 + $0x328] sm:$0xff]
    %v738 = vld [vmem:[#allocation13 + $0x330] sm:$0xff]
    %v739 = vld [vmem:[#allocation13 + $0x338] sm:$0xff]
    %v740 = vld [vmem:[#allocation13 + $0x340] sm:$0xff]
    %v741 = vld [vmem:[#allocation13 + $0x348] sm:$0xff]
    %v742 = vld [vmem:[#allocation13 + $0x350] sm:$0xff]
    %v743 = vld [vmem:[#allocation13 + $0x358] sm:$0xff]
    %v744 = vld [vmem:[#allocation13 + $0x360] sm:$0xff]
    %v745 = vld [vmem:[#allocation13 + $0x368] sm:$0xff]
    %v746 = vld [vmem:[#allocation13 + $0x370] sm:$0xff]
    %v747 = vld [vmem:[#allocation13 + $0x378] sm:$0xff]
    %v748 = vld [vmem:[#allocation13 + $0x380] sm:$0xff]
    %v749 = vld [vmem:[#allocation13 + $0x388] sm:$0xff]
    %v750 = vld [vmem:[#allocation13 + $0x390] sm:$0xff]
    %v751 = vld [vmem:[#allocation13 + $0x398] sm:$0xff]
    %v752 = vld [vmem:[#allocation13 + $0x3a0] sm:$0xff]
    %v753 = vld [vmem:[#allocation13 + $0x3a8] sm:$0xff]
    %v754 = vld [vmem:[#allocation13 + $0x3b0] sm:$0xff]
    %v755 = vld [vmem:[#allocation13 + $0x3b8] sm:$0xff]
    %v756 = vld [vmem:[#allocation13 + $0x3c0] sm:$0xff]
    %v757 = vld [vmem:[#allocation13 + $0x3c8] sm:$0xff]
    %v758 = vld [vmem:[#allocation13 + $0x3d0] sm:$0xff]
    %v759 = vld [vmem:[#allocation13 + $0x3d8] sm:$0xff]
    %v760 = vld [vmem:[#allocation13 + $0x3e0] sm:$0xff]
    %v761 = vld [vmem:[#allocation13 + $0x3e8] sm:$0xff]
    %v762 = vld [vmem:[#allocation13 + $0x3f0] sm:$0xff]
    %v763 = vld [vmem:[#allocation13 + $0x3f8] sm:$0xff]
    %v764 = vld [vmem:[#allocation13 + $0x400] sm:$0xff]
    %v765 = vld [vmem:[#allocation13 + $0x408] sm:$0xff]
    %v766 = vld [vmem:[#allocation13 + $0x410] sm:$0xff]
    %v767 = vld [vmem:[#allocation13 + $0x418] sm:$0xff]
    %v768 = vld [vmem:[#allocation13 + $0x420] sm:$0xff]
    %v769 = vld [vmem:[#allocation13 + $0x428] sm:$0xff]
    %v770 = vld [vmem:[#allocation13 + $0x430] sm:$0xff]
    %v771 = vld [vmem:[#allocation13 + $0x438] sm:$0xff]
    %v772 = vld [vmem:[#allocation13 + $0x440] sm:$0xff]
    %v773 = vld [vmem:[#allocation13 + $0x448] sm:$0xff]
    %v774 = vld [vmem:[#allocation13 + $0x450] sm:$0xff]
    %v775 = vld [vmem:[#allocation13 + $0x458] sm:$0xff]
    %v776 = vld [vmem:[#allocation13 + $0x460] sm:$0xff]
    %v777 = vld [vmem:[#allocation13 + $0x468] sm:$0xff]
    %v778 = vld [vmem:[#allocation13 + $0x470] sm:$0xff]
    %v779 = vld [vmem:[#allocation13 + $0x478] sm:$0xff]
    %v780 = vld [vmem:[#allocation13 + $0x480] sm:$0xff]
    %v781 = vld [vmem:[#allocation13 + $0x488] sm:$0xff]
    %v782 = vld [vmem:[#allocation13 + $0x490] sm:$0xff]
    %v783 = vld [vmem:[#allocation13 + $0x498] sm:$0xff]
    %v784 = vld [vmem:[#allocation13 + $0x4a0] sm:$0xff]
    %v785 = vld [vmem:[#allocation13 + $0x4a8] sm:$0xff]
    %v786 = vld [vmem:[#allocation13 + $0x4b0] sm:$0xff]
    %v787 = vld [vmem:[#allocation13 + $0x4b8] sm:$0xff]
    %v788 = vld [vmem:[#allocation13 + $0x4c0] sm:$0xff]
    %v789 = vld [vmem:[#allocation13 + $0x4c8] sm:$0xff]
    %v790 = vld [vmem:[#allocation13 + $0x4d0] sm:$0xff]
    %v791 = vld [vmem:[#allocation13 + $0x4d8] sm:$0xff]
    %v792 = vld [vmem:[#allocation13 + $0x4e0] sm:$0xff]
    %v793 = vld [vmem:[#allocation13 + $0x4e8] sm:$0xff]
    %v794 = vld [vmem:[#allocation13 + $0x4f0] sm:$0xff]
    %v795 = vld [vmem:[#allocation13 + $0x4f8] sm:$0xff]
    %v796 = vld [vmem:[#allocation13 + $0x500] sm:$0xff]
    %v797 = vld [vmem:[#allocation13 + $0x508] sm:$0xff]
    %v798 = vld [vmem:[#allocation13 + $0x510] sm:$0xff]
    %v799 = vld [vmem:[#allocation13 + $0x518] sm:$0xff]
    %v800 = vld [vmem:[#allocation13 + $0x520] sm:$0xff]
    %v801 = vld [vmem:[#allocation13 + $0x528] sm:$0xff]
    %v802 = vld [vmem:[#allocation13 + $0x530] sm:$0xff]
    %v803 = vld [vmem:[#allocation13 + $0x538] sm:$0xff]
    %v804 = vld [vmem:[#allocation13 + $0x540] sm:$0xff]
    %v805 = vld [vmem:[#allocation13 + $0x548] sm:$0xff]
    %v806 = vld [vmem:[#allocation13 + $0x550] sm:$0xff]
    %v807 = vld [vmem:[#allocation13 + $0x558] sm:$0xff]
    %v808 = vld [vmem:[#allocation13 + $0x560] sm:$0xff]
    %v809 = vld [vmem:[#allocation13 + $0x568] sm:$0xff]
    %v810 = vld [vmem:[#allocation13 + $0x570] sm:$0xff]
    %v811 = vld [vmem:[#allocation13 + $0x578] sm:$0xff]
    %v812 = vld [vmem:[#allocation13 + $0x580] sm:$0xff]
    %v813 = vld [vmem:[#allocation13 + $0x588] sm:$0xff]
    %v814 = vld [vmem:[#allocation13 + $0x590] sm:$0xff]
    %v815 = vld [vmem:[#allocation13 + $0x598] sm:$0xff]
    %v816 = vld [vmem:[#allocation13 + $0x5a0] sm:$0xff]
    %v817 = vld [vmem:[#allocation13 + $0x5a8] sm:$0xff]
    %v818 = vld [vmem:[#allocation13 + $0x5b0] sm:$0xff]
    %v819 = vld [vmem:[#allocation13 + $0x5b8] sm:$0xff]
    %v820 = vld [vmem:[#allocation13 + $0x5c0] sm:$0xff]
    %v821 = vld [vmem:[#allocation13 + $0x5c8] sm:$0xff]
    %v822 = vld [vmem:[#allocation13 + $0x5d0] sm:$0xff]
    %v823 = vld [vmem:[#allocation13 + $0x5d8] sm:$0xff]
    %v824 = vld [vmem:[#allocation13 + $0x5e0] sm:$0xff]
    %v825 = vld [vmem:[#allocation13 + $0x5e8] sm:$0xff]
    %v826 = vld [vmem:[#allocation13 + $0x5f0] sm:$0xff]
    %v827 = vld [vmem:[#allocation13 + $0x5f8] sm:$0xff]
    %v828 = vld [vmem:[#allocation15] sm:$0xff]
    %v829 = vld [vmem:[#allocation15 + $0x8] sm:$0xf]
    %v832 = vlaneseq
    %v833 = vshrl.u32 %v832, 7
    %v834 = vsub.s32 0, %v833
    %v835 = vrot.slane %v828, %v834
    %v836 = vlaneseq
    %v837 = vshrl.u32 %v836, 7
    %v838 = vsub.s32 1, %v837
    %v839 = vrot.slane %v828, %v838
    %v840 = vlaneseq
    %v841 = vshrl.u32 %v840, 7
    %v842 = vsub.s32 2, %v841
    %v843 = vrot.slane %v828, %v842
    %v844 = vlaneseq
    %v845 = vshrl.u32 %v844, 7
    %v846 = vsub.s32 3, %v845
    %v847 = vrot.slane %v828, %v846
    %v848 = vlaneseq
    %v849 = vshrl.u32 %v848, 7
    %v850 = vsub.s32 4, %v849
    %v851 = vrot.slane %v828, %v850
    %v852 = vlaneseq
    %v853 = vshrl.u32 %v852, 7
    %v854 = vsub.s32 5, %v853
    %v855 = vrot.slane %v828, %v854
    %v856 = vlaneseq
    %v857 = vshrl.u32 %v856, 7
    %v858 = vsub.s32 6, %v857
    %v859 = vrot.slane %v828, %v858
    %v860 = vlaneseq
    %v861 = vshrl.u32 %v860, 7
    %v862 = vsub.s32 7, %v861
    %v863 = vrot.slane %v828, %v862
    %v864 = vlaneseq
    %v865 = vshrl.u32 %v864, 7
    %v866 = vsub.s32 0, %v865
    %v867 = vrot.slane %v829, %v866
    %v868 = vlaneseq
    %v869 = vshrl.u32 %v868, 7
    %v870 = vsub.s32 1, %v869
    %v871 = vrot.slane %v829, %v870
    %v872 = vlaneseq
    %v873 = vshrl.u32 %v872, 7
    %v874 = vsub.s32 2, %v873
    %v875 = vrot.slane %v829, %v874
    %v876 = vlaneseq
    %v877 = vshrl.u32 %v876, 7
    %v878 = vsub.s32 3, %v877
    %v879 = vrot.slane %v829, %v878
    %892 = vmatprep.subr.mxu0 %v637
    %893 = vmatpush1.msra.mxu0 %v636
    %894 = vmatprep.subr.mxu0 %v649
    %895 = vmatpush1.msra.mxu0 %v648
    %896 = vmatprep.subr.mxu0 %v661
    %897 = vmatpush1.msra.mxu0 %v660
    %898 = vmatprep.subr.mxu0 %v673
    %899 = vmatpush1.msra.mxu0 %v672
    %900 = vmatprep.subr.mxu0 %v685
    %901 = vmatpush1.msra.mxu0 %v684
    %902 = vmatprep.subr.mxu0 %v697
    %903 = vmatpush1.msra.mxu0 %v696
    %904 = vmatprep.subr.mxu0 %v709
    %905 = vmatpush1.msra.mxu0 %v708
    %906 = vmatprep.subr.mxu0 %v721
    %907 = vmatpush1.msra.mxu0 %v720
    %908 = vmatprep.subr.mxu0 %v733
    %909 = vmatpush1.msra.mxu0 %v732
    %910 = vmatprep.subr.mxu0 %v745
    %911 = vmatpush1.msra.mxu0 %v744
    %912 = vmatprep.subr.mxu0 %v757
    %913 = vmatpush1.msra.mxu0 %v756
    %914 = vmatprep.subr.mxu0 %v769
    %915 = vmatpush1.msra.mxu0 %v768
    %916 = vmatprep.subr.mxu0 %v781
    %917 = vmatpush1.msra.mxu0 %v780
    %918 = vmatprep.subr.mxu0 %v793
    %919 = vmatpush1.msra.mxu0 %v792
    %920 = vmatprep.subr.mxu0 %v805
    %921 = vmatpush1.msra.mxu0 %v804
    %922 = vmatprep.subr.mxu0 %v817
    %923 = vmatpush1.msra.mxu0 %v816
    %924 = vmatprep.subr.mxu0 0.0
    %925 = vmatpush1.msra.mxu0 0.0
    %926 = vmatprep.subr.mxu0 0.0
    %927 = vmatpush1.msra.mxu0 0.0
    %928 = vmatprep.subr.mxu0 0.0
    %929 = vmatpush1.msra.mxu0 0.0
    %930 = vmatprep.subr.mxu0 0.0
    %931 = vmatpush1.msra.mxu0 0.0
    %932 = vmatprep.subr.mxu0 0.0
    %933 = vmatpush1.msra.mxu0 0.0
    %934 = vmatprep.subr.mxu0 0.0
    %935 = vmatpush1.msra.mxu0 0.0
    %936 = vmatprep.subr.mxu0 0.0
    %937 = vmatpush1.msra.mxu0 0.0
    %938 = vmatprep.subr.mxu0 0.0
    %939 = vmatpush1.msra.mxu0 0.0
    %940 = vmatprep.subr.mxu0 0.0
    %941 = vmatpush1.msra.mxu0 0.0
    %942 = vmatprep.subr.mxu0 0.0
    %943 = vmatpush1.msra.mxu0 0.0
    %944 = vmatprep.subr.mxu0 0.0
    %945 = vmatpush1.msra.mxu0 0.0
    %946 = vmatprep.subr.mxu0 0.0
    %947 = vmatpush1.msra.mxu0 0.0
    %948 = vmatprep.subr.mxu0 0.0
    %949 = vmatpush1.msra.mxu0 0.0
    %950 = vmatprep.subr.mxu0 0.0
    %951 = vmatpush1.msra.mxu0 0.0
    %952 = vmatprep.subr.mxu0 0.0
    %953 = vmatpush1.msra.mxu0 0.0
    %954 = vmatprep.subr.mxu0 0.0
    %955 = vmatpush1.msra.mxu0 0.0
    %956 = vmatprep.mubr.f32.mxu0 0.0
    %957 = vmatmul.mubr.f32.gmra.mrb[0].mxu0 %v631
    %v958 = vpop.f32.mrb[0].mxu0
    %v959 = vadd.f32 %v835, %v958
    %v960 = vpop.f32.mrb[0].mxu0
    %v961 = vadd.f32 %v839, %v960
    %962 = vdwg.mxu0
    %963 = vmatprep.subr.mxu0 %v639
    %964 = vmatpush1.msra.mxu0 %v638
    %965 = vmatprep.subr.mxu0 %v651
    %966 = vmatpush1.msra.mxu0 %v650
    %967 = vmatprep.subr.mxu0 %v663
    %968 = vmatpush1.msra.mxu0 %v662
    %969 = vmatprep.subr.mxu0 %v675
    %970 = vmatpush1.msra.mxu0 %v674
    %971 = vmatprep.subr.mxu0 %v687
    %972 = vmatpush1.msra.mxu0 %v686
    %973 = vmatprep.subr.mxu0 %v699
    %974 = vmatpush1.msra.mxu0 %v698
    %975 = vmatprep.subr.mxu0 %v711
    %976 = vmatpush1.msra.mxu0 %v710
    %977 = vmatprep.subr.mxu0 %v723
    %978 = vmatpush1.msra.mxu0 %v722
    %979 = vmatprep.subr.mxu0 %v735
    %980 = vmatpush1.msra.mxu0 %v734
    %981 = vmatprep.subr.mxu0 %v747
    %982 = vmatpush1.msra.mxu0 %v746
    %983 = vmatprep.subr.mxu0 %v759
    %984 = vmatpush1.msra.mxu0 %v758
    %985 = vmatprep.subr.mxu0 %v771
    %986 = vmatpush1.msra.mxu0 %v770
    %987 = vmatprep.subr.mxu0 %v783
    %988 = vmatpush1.msra.mxu0 %v782
    %989 = vmatprep.subr.mxu0 %v795
    %990 = vmatpush1.msra.mxu0 %v794
    %991 = vmatprep.subr.mxu0 %v807
    %992 = vmatpush1.msra.mxu0 %v806
    %993 = vmatprep.subr.mxu0 %v819
    %994 = vmatpush1.msra.mxu0 %v818
    %995 = vmatprep.subr.mxu0 0.0
    %996 = vmatpush1.msra.mxu0 0.0
    %997 = vmatprep.subr.mxu0 0.0
    %998 = vmatpush1.msra.mxu0 0.0
    %999 = vmatprep.subr.mxu0 0.0
    %1000 = vmatpush1.msra.mxu0 0.0
    %1001 = vmatprep.subr.mxu0 0.0
    %1002 = vmatpush1.msra.mxu0 0.0
    %1003 = vmatprep.subr.mxu0 0.0
    %1004 = vmatpush1.msra.mxu0 0.0
    %1005 = vmatprep.subr.mxu0 0.0
    %1006 = vmatpush1.msra.mxu0 0.0
    %1007 = vmatprep.subr.mxu0 0.0
    %1008 = vmatpush1.msra.mxu0 0.0
    %1009 = vmatprep.subr.mxu0 0.0
    %1010 = vmatpush1.msra.mxu0 0.0
    %1011 = vmatprep.subr.mxu0 0.0
    %1012 = vmatpush1.msra.mxu0 0.0
    %1013 = vmatprep.subr.mxu0 0.0
    %1014 = vmatpush1.msra.mxu0 0.0
    %1015 = vmatprep.subr.mxu0 0.0
    %1016 = vmatpush1.msra.mxu0 0.0
    %1017 = vmatprep.subr.mxu0 0.0
    %1018 = vmatpush1.msra.mxu0 0.0
    %1019 = vmatprep.subr.mxu0 0.0
    %1020 = vmatpush1.msra.mxu0 0.0
    %1021 = vmatprep.subr.mxu0 0.0
    %1022 = vmatpush1.msra.mxu0 0.0
    %1023 = vmatprep.subr.mxu0 0.0
    %1024 = vmatpush1.msra.mxu0 0.0
    %1025 = vmatprep.subr.mxu0 0.0
    %1026 = vmatpush1.msra.mxu0 0.0
    %1027 = vmatprep.mubr.f32.mxu0 0.0
    %1028 = vmatmul.mubr.f32.gmra.mrb[0].mxu0 %v631
    %v1029 = vpop.f32.mrb[0].mxu0
    %v1030 = vadd.f32 %v843, %v1029
    %v1031 = vpop.f32.mrb[0].mxu0
    %v1032 = vadd.f32 %v847, %v1031
    %1033 = vdwg.mxu0
    %1034 = vmatprep.subr.mxu0 %v641
    %1035 = vmatpush1.msra.mxu0 %v640
    %1036 = vmatprep.subr.mxu0 %v653
    %1037 = vmatpush1.msra.mxu0 %v652
    %1038 = vmatprep.subr.mxu0 %v665
    %1039 = vmatpush1.msra.mxu0 %v664
    %1040 = vmatprep.subr.mxu0 %v677
    %1041 = vmatpush1.msra.mxu0 %v676
    %1042 = vmatprep.subr.mxu0 %v689
    %1043 = vmatpush1.msra.mxu0 %v688
    %1044 = vmatprep.subr.mxu0 %v701
    %1045 = vmatpush1.msra.mxu0 %v700
    %1046 = vmatprep.subr.mxu0 %v713
    %1047 = vmatpush1.msra.mxu0 %v712
    %1048 = vmatprep.subr.mxu0 %v725
    %1049 = vmatpush1.msra.mxu0 %v724
    %1050 = vmatprep.subr.mxu0 %v737
    %1051 = vmatpush1.msra.mxu0 %v736
    %1052 = vmatprep.subr.mxu0 %v749
    %1053 = vmatpush1.msra.mxu0 %v748
    %1054 = vmatprep.subr.mxu0 %v761
    %1055 = vmatpush1.msra.mxu0 %v760
    %1056 = vmatprep.subr.mxu0 %v773
    %1057 = vmatpush1.msra.mxu0 %v772
    %1058 = vmatprep.subr.mxu0 %v785
    %1059 = vmatpush1.msra.mxu0 %v784
    %1060 = vmatprep.subr.mxu0 %v797
    %1061 = vmatpush1.msra.mxu0 %v796
    %1062 = vmatprep.subr.mxu0 %v809
    %1063 = vmatpush1.msra.mxu0 %v808
    %1064 = vmatprep.subr.mxu0 %v821
    %1065 = vmatpush1.msra.mxu0 %v820
    %1066 = vmatprep.subr.mxu0 0.0
    %1067 = vmatpush1.msra.mxu0 0.0
    %1068 = vmatprep.subr.mxu0 0.0
    %1069 = vmatpush1.msra.mxu0 0.0
    %1070 = vmatprep.subr.mxu0 0.0
    %1071 = vmatpush1.msra.mxu0 0.0
    %1072 = vmatprep.subr.mxu0 0.0
    %1073 = vmatpush1.msra.mxu0 0.0
    %1074 = vmatprep.subr.mxu0 0.0
    %1075 = vmatpush1.msra.mxu0 0.0
    %1076 = vmatprep.subr.mxu0 0.0
    %1077 = vmatpush1.msra.mxu0 0.0
    %1078 = vmatprep.subr.mxu0 0.0
    %1079 = vmatpush1.msra.mxu0 0.0
    %1080 = vmatprep.subr.mxu0 0.0
    %1081 = vmatpush1.msra.mxu0 0.0
    %1082 = vmatprep.subr.mxu0 0.0
    %1083 = vmatpush1.msra.mxu0 0.0
    %1084 = vmatprep.subr.mxu0 0.0
    %1085 = vmatpush1.msra.mxu0 0.0
    %1086 = vmatprep.subr.mxu0 0.0
    %1087 = vmatpush1.msra.mxu0 0.0
    %1088 = vmatprep.subr.mxu0 0.0
    %1089 = vmatpush1.msra.mxu0 0.0
    %1090 = vmatprep.subr.mxu0 0.0
    %1091 = vmatpush1.msra.mxu0 0.0
    %1092 = vmatprep.subr.mxu0 0.0
    %1093 = vmatpush1.msra.mxu0 0.0
    %1094 = vmatprep.subr.mxu0 0.0
    %1095 = vmatpush1.msra.mxu0 0.0
    %1096 = vmatprep.subr.mxu0 0.0
    %1097 = vmatpush1.msra.mxu0 0.0
    %1098 = vmatprep.mubr.f32.mxu0 0.0
    %1099 = vmatmul.mubr.f32.gmra.mrb[0].mxu0 %v631
    %v1100 = vpop.f32.mrb[0].mxu0
    %v1101 = vadd.f32 %v851, %v1100
    %v1102 = vpop.f32.mrb[0].mxu0
    %v1103 = vadd.f32 %v855, %v1102
    %1104 = vdwg.mxu0
    %1105 = vmatprep.subr.mxu0 %v643
    %1106 = vmatpush1.msra.mxu0 %v642
    %1107 = vmatprep.subr.mxu0 %v655
    %1108 = vmatpush1.msra.mxu0 %v654
    %1109 = vmatprep.subr.mxu0 %v667
    %1110 = vmatpush1.msra.mxu0 %v666
    %1111 = vmatprep.subr.mxu0 %v679
    %1112 = vmatpush1.msra.mxu0 %v678
    %1113 = vmatprep.subr.mxu0 %v691
    %1114 = vmatpush1.msra.mxu0 %v690
    %1115 = vmatprep.subr.mxu0 %v703
    %1116 = vmatpush1.msra.mxu0 %v702
    %1117 = vmatprep.subr.mxu0 %v715
    %1118 = vmatpush1.msra.mxu0 %v714
    %1119 = vmatprep.subr.mxu0 %v727
    %1120 = vmatpush1.msra.mxu0 %v726
    %1121 = vmatprep.subr.mxu0 %v739
    %1122 = vmatpush1.msra.mxu0 %v738
    %1123 = vmatprep.subr.mxu0 %v751
    %1124 = vmatpush1.msra.mxu0 %v750
    %1125 = vmatprep.subr.mxu0 %v763
    %1126 = vmatpush1.msra.mxu0 %v762
    %1127 = vmatprep.subr.mxu0 %v775
    %1128 = vmatpush1.msra.mxu0 %v774
    %1129 = vmatprep.subr.mxu0 %v787
    %1130 = vmatpush1.msra.mxu0 %v786
    %1131 = vmatprep.subr.mxu0 %v799
    %1132 = vmatpush1.msra.mxu0 %v798
    %1133 = vmatprep.subr.mxu0 %v811
    %1134 = vmatpush1.msra.mxu0 %v810
    %1135 = vmatprep.subr.mxu0 %v823
    %1136 = vmatpush1.msra.mxu0 %v822
    %1137 = vmatprep.subr.mxu0 0.0
    %1138 = vmatpush1.msra.mxu0 0.0
    %1139 = vmatprep.subr.mxu0 0.0
    %1140 = vmatpush1.msra.mxu0 0.0
    %1141 = vmatprep.subr.mxu0 0.0
    %1142 = vmatpush1.msra.mxu0 0.0
    %1143 = vmatprep.subr.mxu0 0.0
    %1144 = vmatpush1.msra.mxu0 0.0
    %1145 = vmatprep.subr.mxu0 0.0
    %1146 = vmatpush1.msra.mxu0 0.0
    %1147 = vmatprep.subr.mxu0 0.0
    %1148 = vmatpush1.msra.mxu0 0.0
    %1149 = vmatprep.subr.mxu0 0.0
    %1150 = vmatpush1.msra.mxu0 0.0
    %1151 = vmatprep.subr.mxu0 0.0
    %1152 = vmatpush1.msra.mxu0 0.0
    %1153 = vmatprep.subr.mxu0 0.0
    %1154 = vmatpush1.msra.mxu0 0.0
    %1155 = vmatprep.subr.mxu0 0.0
    %1156 = vmatpush1.msra.mxu0 0.0
    %1157 = vmatprep.subr.mxu0 0.0
    %1158 = vmatpush1.msra.mxu0 0.0
    %1159 = vmatprep.subr.mxu0 0.0
    %1160 = vmatpush1.msra.mxu0 0.0
    %1161 = vmatprep.subr.mxu0 0.0
    %1162 = vmatpush1.msra.mxu0 0.0
    %1163 = vmatprep.subr.mxu0 0.0
    %1164 = vmatpush1.msra.mxu0 0.0
    %1165 = vmatprep.subr.mxu0 0.0
    %1166 = vmatpush1.msra.mxu0 0.0
    %1167 = vmatprep.subr.mxu0 0.0
    %1168 = vmatpush1.msra.mxu0 0.0
    %1169 = vmatprep.mubr.f32.mxu0 0.0
    %1170 = vmatmul.mubr.f32.gmra.mrb[0].mxu0 %v631
    %v1171 = vpop.f32.mrb[0].mxu0
    %v1172 = vadd.f32 %v859, %v1171
    %v1173 = vpop.f32.mrb[0].mxu0
    %v1174 = vadd.f32 %v863, %v1173
    %1175 = vdwg.mxu0
    %1176 = vmatprep.subr.mxu0 %v645
    %1177 = vmatpush1.msra.mxu0 %v644
    %1178 = vmatprep.subr.mxu0 %v657
    %1179 = vmatpush1.msra.mxu0 %v656
    %1180 = vmatprep.subr.mxu0 %v669
    %1181 = vmatpush1.msra.mxu0 %v668
    %1182 = vmatprep.subr.mxu0 %v681
    %1183 = vmatpush1.msra.mxu0 %v680
    %1184 = vmatprep.subr.mxu0 %v693
    %1185 = vmatpush1.msra.mxu0 %v692
    %1186 = vmatprep.subr.mxu0 %v705
    %1187 = vmatpush1.msra.mxu0 %v704
    %1188 = vmatprep.subr.mxu0 %v717
    %1189 = vmatpush1.msra.mxu0 %v716
    %1190 = vmatprep.subr.mxu0 %v729
    %1191 = vmatpush1.msra.mxu0 %v728
    %1192 = vmatprep.subr.mxu0 %v741
    %1193 = vmatpush1.msra.mxu0 %v740
    %1194 = vmatprep.subr.mxu0 %v753
    %1195 = vmatpush1.msra.mxu0 %v752
    %1196 = vmatprep.subr.mxu0 %v765
    %1197 = vmatpush1.msra.mxu0 %v764
    %1198 = vmatprep.subr.mxu0 %v777
    %1199 = vmatpush1.msra.mxu0 %v776
    %1200 = vmatprep.subr.mxu0 %v789
    %1201 = vmatpush1.msra.mxu0 %v788
    %1202 = vmatprep.subr.mxu0 %v801
    %1203 = vmatpush1.msra.mxu0 %v800
    %1204 = vmatprep.subr.mxu0 %v813
    %1205 = vmatpush1.msra.mxu0 %v812
    %1206 = vmatprep.subr.mxu0 %v825
    %1207 = vmatpush1.msra.mxu0 %v824
    %1208 = vmatprep.subr.mxu0 0.0
    %1209 = vmatpush1.msra.mxu0 0.0
    %1210 = vmatprep.subr.mxu0 0.0
    %1211 = vmatpush1.msra.mxu0 0.0
    %1212 = vmatprep.subr.mxu0 0.0
    %1213 = vmatpush1.msra.mxu0 0.0
    %1214 = vmatprep.subr.mxu0 0.0
    %1215 = vmatpush1.msra.mxu0 0.0
    %1216 = vmatprep.subr.mxu0 0.0
    %1217 = vmatpush1.msra.mxu0 0.0
    %1218 = vmatprep.subr.mxu0 0.0
    %1219 = vmatpush1.msra.mxu0 0.0
    %1220 = vmatprep.subr.mxu0 0.0
    %1221 = vmatpush1.msra.mxu0 0.0
    %1222 = vmatprep.subr.mxu0 0.0
    %1223 = vmatpush1.msra.mxu0 0.0
    %1224 = vmatprep.subr.mxu0 0.0
    %1225 = vmatpush1.msra.mxu0 0.0
    %1226 = vmatprep.subr.mxu0 0.0
    %1227 = vmatpush1.msra.mxu0 0.0
    %1228 = vmatprep.subr.mxu0 0.0
    %1229 = vmatpush1.msra.mxu0 0.0
    %1230 = vmatprep.subr.mxu0 0.0
    %1231 = vmatpush1.msra.mxu0 0.0
    %1232 = vmatprep.subr.mxu0 0.0
    %1233 = vmatpush1.msra.mxu0 0.0
    %1234 = vmatprep.subr.mxu0 0.0
    %1235 = vmatpush1.msra.mxu0 0.0
    %1236 = vmatprep.subr.mxu0 0.0
    %1237 = vmatpush1.msra.mxu0 0.0
    %1238 = vmatprep.subr.mxu0 0.0
    %1239 = vmatpush1.msra.mxu0 0.0
    %1240 = vmatprep.mubr.f32.mxu0 0.0
    %1241 = vmatmul.mubr.f32.gmra.mrb[0].mxu0 %v631
    %v1242 = vpop.f32.mrb[0].mxu0
    %v1243 = vadd.f32 %v867, %v1242
    %v1244 = vpop.f32.mrb[0].mxu0
    %v1245 = vadd.f32 %v871, %v1244
    %1246 = vdwg.mxu0
    %1247 = vmatprep.subr.mxu0 %v647
    %1248 = vmatpush1.msra.mxu0 %v646
    %1249 = vmatprep.subr.mxu0 %v659
    %1250 = vmatpush1.msra.mxu0 %v658
    %1251 = vmatprep.subr.mxu0 %v671
    %1252 = vmatpush1.msra.mxu0 %v670
    %1253 = vmatprep.subr.mxu0 %v683
    %1254 = vmatpush1.msra.mxu0 %v682
    %1255 = vmatprep.subr.mxu0 %v695
    %1256 = vmatpush1.msra.mxu0 %v694
    %1257 = vmatprep.subr.mxu0 %v707
    %1258 = vmatpush1.msra.mxu0 %v706
    %1259 = vmatprep.subr.mxu0 %v719
    %1260 = vmatpush1.msra.mxu0 %v718
    %1261 = vmatprep.subr.mxu0 %v731
    %1262 = vmatpush1.msra.mxu0 %v730
    %1263 = vmatprep.subr.mxu0 %v743
    %1264 = vmatpush1.msra.mxu0 %v742
    %1265 = vmatprep.subr.mxu0 %v755
    %1266 = vmatpush1.msra.mxu0 %v754
    %1267 = vmatprep.subr.mxu0 %v767
    %1268 = vmatpush1.msra.mxu0 %v766
    %1269 = vmatprep.subr.mxu0 %v779
    %1270 = vmatpush1.msra.mxu0 %v778
    %1271 = vmatprep.subr.mxu0 %v791
    %1272 = vmatpush1.msra.mxu0 %v790
    %1273 = vmatprep.subr.mxu0 %v803
    %1274 = vmatpush1.msra.mxu0 %v802
    %1275 = vmatprep.subr.mxu0 %v815
    %1276 = vmatpush1.msra.mxu0 %v814
    %1277 = vmatprep.subr.mxu0 %v827
    %1278 = vmatpush1.msra.mxu0 %v826
    %1279 = vmatprep.subr.mxu0 0.0
    %1280 = vmatpush1.msra.mxu0 0.0
    %1281 = vmatprep.subr.mxu0 0.0
    %1282 = vmatpush1.msra.mxu0 0.0
    %1283 = vmatprep.subr.mxu0 0.0
    %1284 = vmatpush1.msra.mxu0 0.0
    %1285 = vmatprep.subr.mxu0 0.0
    %1286 = vmatpush1.msra.mxu0 0.0
    %1287 = vmatprep.subr.mxu0 0.0
    %1288 = vmatpush1.msra.mxu0 0.0
    %1289 = vmatprep.subr.mxu0 0.0
    %1290 = vmatpush1.msra.mxu0 0.0
    %1291 = vmatprep.subr.mxu0 0.0
    %1292 = vmatpush1.msra.mxu0 0.0
    %1293 = vmatprep.subr.mxu0 0.0
    %1294 = vmatpush1.msra.mxu0 0.0
    %1295 = vmatprep.subr.mxu0 0.0
    %1296 = vmatpush1.msra.mxu0 0.0
    %1297 = vmatprep.subr.mxu0 0.0
    %1298 = vmatpush1.msra.mxu0 0.0
    %1299 = vmatprep.subr.mxu0 0.0
    %1300 = vmatpush1.msra.mxu0 0.0
    %1301 = vmatprep.subr.mxu0 0.0
    %1302 = vmatpush1.msra.mxu0 0.0
    %1303 = vmatprep.subr.mxu0 0.0
    %1304 = vmatpush1.msra.mxu0 0.0
    %1305 = vmatprep.subr.mxu0 0.0
    %1306 = vmatpush1.msra.mxu0 0.0
    %1307 = vmatprep.subr.mxu0 0.0
    %1308 = vmatpush1.msra.mxu0 0.0
    %1309 = vmatprep.subr.mxu0 0.0
    %1310 = vmatpush1.msra.mxu0 0.0
    %1311 = vmatprep.mubr.f32.mxu0 0.0
    %1312 = vmatmul.mubr.f32.gmra.mrb[0].mxu0 %v631
    %v1313 = vpop.f32.mrb[0].mxu0
    %v1314 = vadd.f32 %v875, %v1313
    %v1315 = vpop.f32.mrb[0].mxu0
    %v1316 = vadd.f32 %v879, %v1315
    %1317 = vdwg.mxu0
    %1318 = vmatprep.subr.mxu0 0.0
    %1319 = vmatpush1.xpose.msra.mxu0 %v961
    %1320 = vmatprep.subr.mxu0 0.0
    %1321 = vmatpush1.xpose.msra.mxu0 0.0
    %1322 = vmatprep.subr.mxu0 0.0
    %1323 = vmatpush1.xpose.msra.mxu0 0.0
    %1324 = vmatprep.subr.mxu0 0.0
    %1325 = vmatpush1.xpose.msra.mxu0 0.0
    %1326 = vmatprep.subr.mxu0 0.0
    %1327 = vmatpush1.xpose.msra.mxu0 0.0
    %1328 = vmatprep.subr.mxu0 0.0
    %1329 = vmatpush1.xpose.msra.mxu0 0.0
    %1330 = vmatprep.subr.mxu0 0.0
    %1331 = vmatpush1.xpose.msra.mxu0 0.0
    %1332 = vmatprep.subr.mxu0 0.0
    %1333 = vmatpush1.xpose.msra.mxu0 0.0
    %1334 = vmatprep.subr.mxu0 0.0
    %1335 = vmatpush1.xpose.msra.mxu0 0.0
    %1336 = vmatprep.subr.mxu0 0.0
    %1337 = vmatpush1.xpose.msra.mxu0 0.0
    %1338 = vmatprep.subr.mxu0 0.0
    %1339 = vmatpush1.xpose.msra.mxu0 0.0
    %1340 = vmatprep.subr.mxu0 0.0
    %1341 = vmatpush1.xpose.msra.mxu0 0.0
    %1342 = vmatprep.subr.mxu0 0.0
    %1343 = vmatpush1.xpose.msra.mxu0 0.0
    %1344 = vmatprep.subr.mxu0 0.0
    %1345 = vmatpush1.xpose.msra.mxu0 0.0
    %1346 = vmatprep.subr.mxu0 0.0
    %1347 = vmatpush1.xpose.msra.mxu0 0.0
    %1348 = vmatprep.subr.mxu0 0.0
    %1349 = vmatpush1.xpose.msra.mxu0 0.0
    %1350 = vmatprep.subr.mxu0 0.0
    %1351 = vmatpush1.xpose.msra.mxu0 0.0
    %1352 = vmatprep.subr.mxu0 0.0
    %1353 = vmatpush1.xpose.msra.mxu0 0.0
    %1354 = vmatprep.subr.mxu0 0.0
    %1355 = vmatpush1.xpose.msra.mxu0 0.0
    %1356 = vmatprep.subr.mxu0 0.0
    %1357 = vmatpush1.xpose.msra.mxu0 0.0
    %1358 = vmatprep.subr.mxu0 0.0
    %1359 = vmatpush1.xpose.msra.mxu0 0.0
    %1360 = vmatprep.subr.mxu0 0.0
    %1361 = vmatpush1.xpose.msra.mxu0 0.0
    %1362 = vmatprep.subr.mxu0 0.0
    %1363 = vmatpush1.xpose.msra.mxu0 0.0
    %1364 = vmatprep.subr.mxu0 0.0
    %1365 = vmatpush1.xpose.msra.mxu0 0.0
    %1366 = vmatprep.subr.mxu0 0.0
    %1367 = vmatpush1.xpose.msra.mxu0 0.0
    %1368 = vmatprep.subr.mxu0 0.0
    %1369 = vmatpush1.xpose.msra.mxu0 0.0
    %1370 = vmatprep.subr.mxu0 0.0
    %1371 = vmatpush1.xpose.msra.mxu0 0.0
    %1372 = vmatprep.subr.mxu0 0.0
    %1373 = vmatpush1.xpose.msra.mxu0 0.0
    %1374 = vmatprep.subr.mxu0 0.0
    %1375 = vmatpush1.xpose.msra.mxu0 0.0
    %1376 = vmatprep.subr.mxu0 0.0
    %1377 = vmatpush1.xpose.msra.mxu0 0.0
    %1378 = vmatprep.subr.mxu0 0.0
    %1379 = vmatpush1.xpose.msra.mxu0 0.0
    %1380 = vmatprep.subr.mxu0 0.0
    %1381 = vmatpush1.xpose.msra.mxu0 0.0
    %1382 = vmatprep.mubr.f32.mxu0 0.0
    %1383 = vmatmul.mubr.f32.gmra.mrb[0].mxu0 %v959
    %v1384 = vpop.f32.mrb[0].mxu0
    %v1385 = vadd.f32 %v635, %v1384
    %v1386 = vpop.f32.mrb[0].mxu0
    %1387 = vdwg.mxu0
    %vm1388 = vcmask 9216
    %v1389 = vsel %vm1388, %v1385, -inf
    %1390 = vmax.xlane.f32.xlu0 %v1389
    %v1391 = vpop.xlane.xlu0 %1390
    %v1392 = vsub.f32 %v1385, %v1391
    %v1393 = vmul.f32 %v1392, 1.442695
    %v1394 = vpow.pop %v1393
    %v1395 = vsel %vm1388, %v1394, 0.0
    %1396 = vadd.xlane.f32.xlu0 %v1395
    %v1397 = vpop.xlane.xlu0 %1396
    %v1398 = vrcp.pop %v1397
    %v1399 = vmul.f32 %v1394, %v1398
    %vm1400 = vcmask 15360
    %v1402 = vsel %vm1400, %v1399, 0
    %vm1404 = vcmask 1041408
    %v1406 = vsel %vm1404, %v1030, 0
    %1408 = vmatprep.subr.mxu0 0.0
    %1409 = vmatpush1.msra.mxu0 %v1406
    %1410 = vmatprep.subr.mxu0 0.0
    %1411 = vmatpush1.msra.mxu0 0.0
    %1412 = vmatprep.subr.mxu0 0.0
    %1413 = vmatpush1.msra.mxu0 0.0
    %1414 = vmatprep.subr.mxu0 0.0
    %1415 = vmatpush1.msra.mxu0 0.0
    %1416 = vmatprep.subr.mxu0 0.0
    %1417 = vmatpush1.msra.mxu0 0.0
    %1418 = vmatprep.subr.mxu0 0.0
    %1419 = vmatpush1.msra.mxu0 0.0
    %1420 = vmatprep.subr.mxu0 0.0
    %1421 = vmatpush1.msra.mxu0 0.0
    %1422 = vmatprep.subr.mxu0 0.0
    %1423 = vmatpush1.msra.mxu0 0.0
    %1424 = vmatprep.subr.mxu0 0.0
    %1425 = vmatpush1.msra.mxu0 0.0
    %1426 = vmatprep.subr.mxu0 0.0
    %1427 = vmatpush1.msra.mxu0 0.0
    %1428 = vmatprep.subr.mxu0 0.0
    %1429 = vmatpush1.msra.mxu0 0.0
    %1430 = vmatprep.subr.mxu0 0.0
    %1431 = vmatpush1.msra.mxu0 0.0
    %1432 = vmatprep.subr.mxu0 0.0
    %1433 = vmatpush1.msra.mxu0 0.0
    %1434 = vmatprep.subr.mxu0 0.0
    %1435 = vmatpush1.msra.mxu0 0.0
    %1436 = vmatprep.subr.mxu0 0.0
    %1437 = vmatpush1.msra.mxu0 0.0
    %1438 = vmatprep.subr.mxu0 0.0
    %1439 = vmatpush1.msra.mxu0 0.0
    %1440 = vmatprep.subr.mxu0 0.0
    %1441 = vmatpush1.msra.mxu0 0.0
    %1442 = vmatprep.subr.mxu0 0.0
    %1443 = vmatpush1.msra.mxu0 0.0
    %1444 = vmatprep.subr.mxu0 0.0
    %1445 = vmatpush1.msra.mxu0 0.0
    %1446 = vmatprep.subr.mxu0 0.0
    %1447 = vmatpush1.msra.mxu0 0.0
    %1448 = vmatprep.subr.mxu0 0.0
    %1449 = vmatpush1.msra.mxu0 0.0
    %1450 = vmatprep.subr.mxu0 0.0
    %1451 = vmatpush1.msra.mxu0 0.0
    %1452 = vmatprep.subr.mxu0 0.0
    %1453 = vmatpush1.msra.mxu0 0.0
    %1454 = vmatprep.subr.mxu0 0.0
    %1455 = vmatpush1.msra.mxu0 0.0
    %1456 = vmatprep.subr.mxu0 0.0
    %1457 = vmatpush1.msra.mxu0 0.0
    %1458 = vmatprep.subr.mxu0 0.0
    %1459 = vmatpush1.msra.mxu0 0.0
    %1460 = vmatprep.subr.mxu0 0.0
    %1461 = vmatpush1.msra.mxu0 0.0
    %1462 = vmatprep.subr.mxu0 0.0
    %1463 = vmatpush1.msra.mxu0 0.0
    %1464 = vmatprep.subr.mxu0 0.0
    %1465 = vmatpush1.msra.mxu0 0.0
    %1466 = vmatprep.subr.mxu0 0.0
    %1467 = vmatpush1.msra.mxu0 0.0
    %1468 = vmatprep.subr.mxu0 0.0
    %1469 = vmatpush1.msra.mxu0 0.0
    %1470 = vmatprep.subr.mxu0 0.0
    %1471 = vmatpush1.msra.mxu0 0.0
    %1472 = vmatprep.mubr.f32.mxu0 0.0
    %1473 = vmatmul.mubr.f32.gmra.mrb[0].mxu0 %v1402
    %v1474 = vpop.f32.mrb[0].mxu0
    %v1475 = vadd.f32 0.0, %v1474
    %v1476 = vpop.f32.mrb[0].mxu0
    %1477 = vdwg.mxu0
    %v1478 = vld [vmem:[#allocation16] sm:$0xff]
    %v1479 = vld [vmem:[#allocation16 + $0x8] sm:$0xff]
    %v1480 = vld [vmem:[#allocation16 + $0x10] sm:$0xff]
    %v1481 = vld [vmem:[#allocation16 + $0x18] sm:$0xff]
    %v1482 = vld [vmem:[#allocation16 + $0x20] sm:$0xff]
    %v1483 = vld [vmem:[#allocation16 + $0x28] sm:$0xff]
    %v1484 = vld [vmem:[#allocation16 + $0x30] sm:$0xff]
    %v1485 = vld [vmem:[#allocation16 + $0x38] sm:$0xff]
    %v1486 = vld [vmem:[#allocation16 + $0x40] sm:$0xff]
    %v1487 = vld [vmem:[#allocation16 + $0x48] sm:$0xff]
    %v1488 = vld [vmem:[#allocation16 + $0x50] sm:$0xff]
    %v1489 = vld [vmem:[#allocation16 + $0x58] sm:$0xff]
    %v1490 = vld [vmem:[#allocation16 + $0x60] sm:$0xff]
    %v1491 = vld [vmem:[#allocation16 + $0x68] sm:$0xff]
    %v1492 = vld [vmem:[#allocation16 + $0x70] sm:$0xff]
    %v1493 = vld [vmem:[#allocation16 + $0x78] sm:$0xff]
    %1494 = vmatprep.subr.mxu0 0.0
    %1495 = vmatpush1.xpose.msra.mxu0 %v1101
    %1496 = vmatprep.subr.mxu0 0.0
    %1497 = vmatpush1.xpose.msra.mxu0 0.0
    %1498 = vmatprep.subr.mxu0 0.0
    %1499 = vmatpush1.xpose.msra.mxu0 0.0
    %1500 = vmatprep.subr.mxu0 0.0
    %1501 = vmatpush1.xpose.msra.mxu0 0.0
    %1502 = vmatprep.subr.mxu0 0.0
    %1503 = vmatpush1.xpose.msra.mxu0 0.0
    %1504 = vmatprep.subr.mxu0 0.0
    %1505 = vmatpush1.xpose.msra.mxu0 0.0
    %1506 = vmatprep.subr.mxu0 0.0
    %1507 = vmatpush1.xpose.msra.mxu0 0.0
    %1508 = vmatprep.subr.mxu0 0.0
    %1509 = vmatpush1.xpose.msra.mxu0 0.0
    %1510 = vmatprep.subr.mxu0 0.0
    %1511 = vmatpush1.xpose.msra.mxu0 0.0
    %1512 = vmatprep.subr.mxu0 0.0
    %1513 = vmatpush1.xpose.msra.mxu0 0.0
    %1514 = vmatprep.subr.mxu0 0.0
    %1515 = vmatpush1.xpose.msra.mxu0 0.0
    %1516 = vmatprep.subr.mxu0 0.0
    %1517 = vmatpush1.xpose.msra.mxu0 0.0
    %1518 = vmatprep.subr.mxu0 0.0
    %1519 = vmatpush1.xpose.msra.mxu0 0.0
    %1520 = vmatprep.subr.mxu0 0.0
    %1521 = vmatpush1.xpose.msra.mxu0 0.0
    %1522 = vmatprep.subr.mxu0 0.0
    %1523 = vmatpush1.xpose.msra.mxu0 0.0
    %1524 = vmatprep.subr.mxu0 0.0
    %1525 = vmatpush1.xpose.msra.mxu0 0.0
    %1526 = vmatprep.subr.mxu0 0.0
    %1527 = vmatpush1.xpose.msra.mxu0 0.0
    %1528 = vmatprep.subr.mxu0 0.0
    %1529 = vmatpush1.xpose.msra.mxu0 0.0
    %1530 = vmatprep.subr.mxu0 0.0
    %1531 = vmatpush1.xpose.msra.mxu0 0.0
    %1532 = vmatprep.subr.mxu0 0.0
    %1533 = vmatpush1.xpose.msra.mxu0 0.0
    %1534 = vmatprep.subr.mxu0 0.0
    %1535 = vmatpush1.xpose.msra.mxu0 0.0
    %1536 = vmatprep.subr.mxu0 0.0
    %1537 = vmatpush1.xpose.msra.mxu0 0.0
    %1538 = vmatprep.subr.mxu0 0.0
    %1539 = vmatpush1.xpose.msra.mxu0 0.0
    %1540 = vmatprep.subr.mxu0 0.0
    %1541 = vmatpush1.xpose.msra.mxu0 0.0
    %1542 = vmatprep.subr.mxu0 0.0
    %1543 = vmatpush1.xpose.msra.mxu0 0.0
    %1544 = vmatprep.subr.mxu0 0.0
    %1545 = vmatpush1.xpose.msra.mxu0 0.0
    %1546 = vmatprep.subr.mxu0 0.0
    %1547 = vmatpush1.xpose.msra.mxu0 0.0
    %1548 = vmatprep.subr.mxu0 0.0
    %1549 = vmatpush1.xpose.msra.mxu0 0.0
    %1550 = vmatprep.subr.mxu0 0.0
    %1551 = vmatpush1.xpose.msra.mxu0 0.0
    %1552 = vmatprep.subr.mxu0 0.0
    %1553 = vmatpush1.xpose.msra.mxu0 0.0
    %1554 = vmatprep.subr.mxu0 0.0
    %1555 = vmatpush1.xpose.msra.mxu0 0.0
    %1556 = vmatprep.subr.mxu0 0.0
    %1557 = vmatpush1.xpose.msra.mxu0 0.0
    %1558 = vmatprep.mubr.f32.mxu0 0.0
    %1559 = vmatmul.mubr.f32.gmra.mrb[0].mxu0 %v1032
    %v1560 = vpop.f32.mrb[0].mxu0
    %v1561 = vadd.f32 %v635, %v1560
    %v1562 = vpop.f32.mrb[0].mxu0
    %1563 = vdwg.mxu0
    %v1564 = vsel %vm1388, %v1561, -inf
    %1565 = vmax.xlane.f32.xlu0 %v1564
    %v1566 = vpop.xlane.xlu0 %1565
    %v1567 = vsub.f32 %v1561, %v1566
    %v1568 = vmul.f32 %v1567, 1.442695
    %v1569 = vpow.pop %v1568
    %v1570 = vsel %vm1388, %v1569, 0.0
    %1571 = vadd.xlane.f32.xlu0 %v1570
    %v1572 = vpop.xlane.xlu0 %1571
    %v1573 = vrcp.pop %v1572
    %v1574 = vmul.f32 %v1569, %v1573
    %v1576 = vsel %vm1400, %v1574, 0
    %v1579 = vsel %vm1404, %v1103, 0
    %1581 = vmatprep.subr.mxu0 0.0
    %1582 = vmatpush1.msra.mxu0 %v1579
    %1583 = vmatprep.subr.mxu0 0.0
    %1584 = vmatpush1.msra.mxu0 0.0
    %1585 = vmatprep.subr.mxu0 0.0
    %1586 = vmatpush1.msra.mxu0 0.0
    %1587 = vmatprep.subr.mxu0 0.0
    %1588 = vmatpush1.msra.mxu0 0.0
    %1589 = vmatprep.subr.mxu0 0.0
    %1590 = vmatpush1.msra.mxu0 0.0
    %1591 = vmatprep.subr.mxu0 0.0
    %1592 = vmatpush1.msra.mxu0 0.0
    %1593 = vmatprep.subr.mxu0 0.0
    %1594 = vmatpush1.msra.mxu0 0.0
    %1595 = vmatprep.subr.mxu0 0.0
    %1596 = vmatpush1.msra.mxu0 0.0
    %1597 = vmatprep.subr.mxu0 0.0
    %1598 = vmatpush1.msra.mxu0 0.0
    %1599 = vmatprep.subr.mxu0 0.0
    %1600 = vmatpush1.msra.mxu0 0.0
    %1601 = vmatprep.subr.mxu0 0.0
    %1602 = vmatpush1.msra.mxu0 0.0
    %1603 = vmatprep.subr.mxu0 0.0
    %1604 = vmatpush1.msra.mxu0 0.0
    %1605 = vmatprep.subr.mxu0 0.0
    %1606 = vmatpush1.msra.mxu0 0.0
    %1607 = vmatprep.subr.mxu0 0.0
    %1608 = vmatpush1.msra.mxu0 0.0
    %1609 = vmatprep.subr.mxu0 0.0
    %1610 = vmatpush1.msra.mxu0 0.0
    %1611 = vmatprep.subr.mxu0 0.0
    %1612 = vmatpush1.msra.mxu0 0.0
    %1613 = vmatprep.subr.mxu0 0.0
    %1614 = vmatpush1.msra.mxu0 0.0
    %1615 = vmatprep.subr.mxu0 0.0
    %1616 = vmatpush1.msra.mxu0 0.0
    %1617 = vmatprep.subr.mxu0 0.0
    %1618 = vmatpush1.msra.mxu0 0.0
    %1619 = vmatprep.subr.mxu0 0.0
    %1620 = vmatpush1.msra.mxu0 0.0
    %1621 = vmatprep.subr.mxu0 0.0
    %1622 = vmatpush1.msra.mxu0 0.0
    %1623 = vmatprep.subr.mxu0 0.0
    %1624 = vmatpush1.msra.mxu0 0.0
    %1625 = vmatprep.subr.mxu0 0.0
    %1626 = vmatpush1.msra.mxu0 0.0
    %1627 = vmatprep.subr.mxu0 0.0
    %1628 = vmatpush1.msra.mxu0 0.0
    %1629 = vmatprep.subr.mxu0 0.0
    %1630 = vmatpush1.msra.mxu0 0.0
    %1631 = vmatprep.subr.mxu0 0.0
    %1632 = vmatpush1.msra.mxu0 0.0
    %1633 = vmatprep.subr.mxu0 0.0
    %1634 = vmatpush1.msra.mxu0 0.0
    %1635 = vmatprep.subr.mxu0 0.0
    %1636 = vmatpush1.msra.mxu0 0.0
    %1637 = vmatprep.subr.mxu0 0.0
    %1638 = vmatpush1.msra.mxu0 0.0
    %1639 = vmatprep.subr.mxu0 0.0
    %1640 = vmatpush1.msra.mxu0 0.0
    %1641 = vmatprep.subr.mxu0 0.0
    %1642 = vmatpush1.msra.mxu0 0.0
    %1643 = vmatprep.subr.mxu0 0.0
    %1644 = vmatpush1.msra.mxu0 0.0
    %1645 = vmatprep.mubr.f32.mxu0 0.0
    %1646 = vmatmul.mubr.f32.gmra.mrb[0].mxu0 %v1576
    %v1647 = vpop.f32.mrb[0].mxu0
    %v1648 = vadd.f32 0.0, %v1647
    %v1649 = vpop.f32.mrb[0].mxu0
    %1650 = vdwg.mxu0
    %s1651 = scalar_lea.vmem [#allocation16], 128
    %v1652 = vld [vmem:[%s1651] sm:$0xff]
    %v1653 = vld [vmem:[%s1651 + $0x8] sm:$0xff]
    %v1654 = vld [vmem:[%s1651 + $0x10] sm:$0xff]
    %v1655 = vld [vmem:[%s1651 + $0x18] sm:$0xff]
    %v1656 = vld [vmem:[%s1651 + $0x20] sm:$0xff]
    %v1657 = vld [vmem:[%s1651 + $0x28] sm:$0xff]
    %v1658 = vld [vmem:[%s1651 + $0x30] sm:$0xff]
    %v1659 = vld [vmem:[%s1651 + $0x38] sm:$0xff]
    %v1660 = vld [vmem:[%s1651 + $0x40] sm:$0xff]
    %v1661 = vld [vmem:[%s1651 + $0x48] sm:$0xff]
    %v1662 = vld [vmem:[%s1651 + $0x50] sm:$0xff]
    %v1663 = vld [vmem:[%s1651 + $0x58] sm:$0xff]
    %v1664 = vld [vmem:[%s1651 + $0x60] sm:$0xff]
    %v1665 = vld [vmem:[%s1651 + $0x68] sm:$0xff]
    %v1666 = vld [vmem:[%s1651 + $0x70] sm:$0xff]
    %v1667 = vld [vmem:[%s1651 + $0x78] sm:$0xff]
    %1668 = vmatprep.subr.mxu0 0.0
    %1669 = vmatpush1.msra.mxu0 %v1652
    %1670 = vmatprep.subr.mxu0 0.0
    %1671 = vmatpush1.msra.mxu0 %v1653
    %1672 = vmatprep.subr.mxu0 0.0
    %1673 = vmatpush1.msra.mxu0 %v1654
    %1674 = vmatprep.subr.mxu0 0.0
    %1675 = vmatpush1.msra.mxu0 %v1655
    %1676 = vmatprep.subr.mxu0 0.0
    %1677 = vmatpush1.msra.mxu0 %v1656
    %1678 = vmatprep.subr.mxu0 0.0
    %1679 = vmatpush1.msra.mxu0 %v1657
    %1680 = vmatprep.subr.mxu0 0.0
    %1681 = vmatpush1.msra.mxu0 %v1658
    %1682 = vmatprep.subr.mxu0 0.0
    %1683 = vmatpush1.msra.mxu0 %v1659
    %1684 = vmatprep.subr.mxu0 0.0
    %1685 = vmatpush1.msra.mxu0 %v1660
    %1686 = vmatprep.subr.mxu0 0.0
    %1687 = vmatpush1.msra.mxu0 %v1661
    %1688 = vmatprep.subr.mxu0 0.0
    %1689 = vmatpush1.msra.mxu0 %v1662
    %1690 = vmatprep.subr.mxu0 0.0
    %1691 = vmatpush1.msra.mxu0 %v1663
    %1692 = vmatprep.subr.mxu0 0.0
    %1693 = vmatpush1.msra.mxu0 %v1664
    %1694 = vmatprep.subr.mxu0 0.0
    %1695 = vmatpush1.msra.mxu0 %v1665
    %1696 = vmatprep.subr.mxu0 0.0
    %1697 = vmatpush1.msra.mxu0 %v1666
    %1698 = vmatprep.subr.mxu0 0.0
    %1699 = vmatpush1.msra.mxu0 %v1667
    %1700 = vmatprep.subr.mxu0 0.0
    %1701 = vmatpush1.msra.mxu0 0.0
    %1702 = vmatprep.subr.mxu0 0.0
    %1703 = vmatpush1.msra.mxu0 0.0
    %1704 = vmatprep.subr.mxu0 0.0
    %1705 = vmatpush1.msra.mxu0 0.0
    %1706 = vmatprep.subr.mxu0 0.0
    %1707 = vmatpush1.msra.mxu0 0.0
    %1708 = vmatprep.subr.mxu0 0.0
    %1709 = vmatpush1.msra.mxu0 0.0
    %1710 = vmatprep.subr.mxu0 0.0
    %1711 = vmatpush1.msra.mxu0 0.0
    %1712 = vmatprep.subr.mxu0 0.0
    %1713 = vmatpush1.msra.mxu0 0.0
    %1714 = vmatprep.subr.mxu0 0.0
    %1715 = vmatpush1.msra.mxu0 0.0
    %1716 = vmatprep.subr.mxu0 0.0
    %1717 = vmatpush1.msra.mxu0 0.0
    %1718 = vmatprep.subr.mxu0 0.0
    %1719 = vmatpush1.msra.mxu0 0.0
    %1720 = vmatprep.subr.mxu0 0.0
    %1721 = vmatpush1.msra.mxu0 0.0
    %1722 = vmatprep.subr.mxu0 0.0
    %1723 = vmatpush1.msra.mxu0 0.0
    %1724 = vmatprep.subr.mxu0 0.0
    %1725 = vmatpush1.msra.mxu0 0.0
    %1726 = vmatprep.subr.mxu0 0.0
    %1727 = vmatpush1.msra.mxu0 0.0
    %1728 = vmatprep.subr.mxu0 0.0
    %1729 = vmatpush1.msra.mxu0 0.0
    %1730 = vmatprep.subr.mxu0 0.0
    %1731 = vmatpush1.msra.mxu0 0.0
    %1732 = vmatprep.mubr.f32.mxu0 0.0
    %1733 = vmatmul.mubr.f32.gmra.mrb[0].mxu0 %v1648
    %v1734 = vpop.f32.mrb[0].mxu0
    %v1735 = vadd.f32 0.0, %v1734
    %v1736 = vpop.f32.mrb[0].mxu0
    %1737 = vdwg.mxu0
    %1738 = vmatprep.subr.mxu0 0.0
    %1739 = vmatpush1.msra.mxu0 %v1478
    %1740 = vmatprep.subr.mxu0 0.0
    %1741 = vmatpush1.msra.mxu0 %v1479
    %1742 = vmatprep.subr.mxu0 0.0
    %1743 = vmatpush1.msra.mxu0 %v1480
    %1744 = vmatprep.subr.mxu0 0.0
    %1745 = vmatpush1.msra.mxu0 %v1481
    %1746 = vmatprep.subr.mxu0 0.0
    %1747 = vmatpush1.msra.mxu0 %v1482
    %1748 = vmatprep.subr.mxu0 0.0
    %1749 = vmatpush1.msra.mxu0 %v1483
    %1750 = vmatprep.subr.mxu0 0.0
    %1751 = vmatpush1.msra.mxu0 %v1484
    %1752 = vmatprep.subr.mxu0 0.0
    %1753 = vmatpush1.msra.mxu0 %v1485
    %1754 = vmatprep.subr.mxu0 0.0
    %1755 = vmatpush1.msra.mxu0 %v1486
    %1756 = vmatprep.subr.mxu0 0.0
    %1757 = vmatpush1.msra.mxu0 %v1487
    %1758 = vmatprep.subr.mxu0 0.0
    %1759 = vmatpush1.msra.mxu0 %v1488
    %1760 = vmatprep.subr.mxu0 0.0
    %1761 = vmatpush1.msra.mxu0 %v1489
    %1762 = vmatprep.subr.mxu0 0.0
    %1763 = vmatpush1.msra.mxu0 %v1490
    %1764 = vmatprep.subr.mxu0 0.0
    %1765 = vmatpush1.msra.mxu0 %v1491
    %1766 = vmatprep.subr.mxu0 0.0
    %1767 = vmatpush1.msra.mxu0 %v1492
    %1768 = vmatprep.subr.mxu0 0.0
    %1769 = vmatpush1.msra.mxu0 %v1493
    %1770 = vmatprep.subr.mxu0 0.0
    %1771 = vmatpush1.msra.mxu0 0.0
    %1772 = vmatprep.subr.mxu0 0.0
    %1773 = vmatpush1.msra.mxu0 0.0
    %1774 = vmatprep.subr.mxu0 0.0
    %1775 = vmatpush1.msra.mxu0 0.0
    %1776 = vmatprep.subr.mxu0 0.0
    %1777 = vmatpush1.msra.mxu0 0.0
    %1778 = vmatprep.subr.mxu0 0.0
    %1779 = vmatpush1.msra.mxu0 0.0
    %1780 = vmatprep.subr.mxu0 0.0
    %1781 = vmatpush1.msra.mxu0 0.0
    %1782 = vmatprep.subr.mxu0 0.0
    %1783 = vmatpush1.msra.mxu0 0.0
    %1784 = vmatprep.subr.mxu0 0.0
    %1785 = vmatpush1.msra.mxu0 0.0
    %1786 = vmatprep.subr.mxu0 0.0
    %1787 = vmatpush1.msra.mxu0 0.0
    %1788 = vmatprep.subr.mxu0 0.0
    %1789 = vmatpush1.msra.mxu0 0.0
    %1790 = vmatprep.subr.mxu0 0.0
    %1791 = vmatpush1.msra.mxu0 0.0
    %1792 = vmatprep.subr.mxu0 0.0
    %1793 = vmatpush1.msra.mxu0 0.0
    %1794 = vmatprep.subr.mxu0 0.0
    %1795 = vmatpush1.msra.mxu0 0.0
    %1796 = vmatprep.subr.mxu0 0.0
    %1797 = vmatpush1.msra.mxu0 0.0
    %1798 = vmatprep.subr.mxu0 0.0
    %1799 = vmatpush1.msra.mxu0 0.0
    %1800 = vmatprep.subr.mxu0 0.0
    %1801 = vmatpush1.msra.mxu0 0.0
    %1802 = vmatprep.mubr.f32.mxu0 0.0
    %1803 = vmatmul.mubr.f32.gmra.mrb[0].mxu0 %v1475
    %v1804 = vpop.f32.mrb[0].mxu0
    %v1805 = vadd.f32 %v1735, %v1804
    %v1806 = vpop.f32.mrb[0].mxu0
    %1807 = vdwg.mxu0
    %1808 = vmatprep.subr.mxu0 0.0
    %1809 = vmatpush1.xpose.msra.mxu0 %v1174
    %1810 = vmatprep.subr.mxu0 0.0
    %1811 = vmatpush1.xpose.msra.mxu0 0.0
    %1812 = vmatprep.subr.mxu0 0.0
    %1813 = vmatpush1.xpose.msra.mxu0 0.0
    %1814 = vmatprep.subr.mxu0 0.0
    %1815 = vmatpush1.xpose.msra.mxu0 0.0
    %1816 = vmatprep.subr.mxu0 0.0
    %1817 = vmatpush1.xpose.msra.mxu0 0.0
    %1818 = vmatprep.subr.mxu0 0.0
    %1819 = vmatpush1.xpose.msra.mxu0 0.0
    %1820 = vmatprep.subr.mxu0 0.0
    %1821 = vmatpush1.xpose.msra.mxu0 0.0
    %1822 = vmatprep.subr.mxu0 0.0
    %1823 = vmatpush1.xpose.msra.mxu0 0.0
    %1824 = vmatprep.subr.mxu0 0.0
    %1825 = vmatpush1.xpose.msra.mxu0 0.0
    %1826 = vmatprep.subr.mxu0 0.0
    %1827 = vmatpush1.xpose.msra.mxu0 0.0
    %1828 = vmatprep.subr.mxu0 0.0
    %1829 = vmatpush1.xpose.msra.mxu0 0.0
    %1830 = vmatprep.subr.mxu0 0.0
    %1831 = vmatpush1.xpose.msra.mxu0 0.0
    %1832 = vmatprep.subr.mxu0 0.0
    %1833 = vmatpush1.xpose.msra.mxu0 0.0
    %1834 = vmatprep.subr.mxu0 0.0
    %1835 = vmatpush1.xpose.msra.mxu0 0.0
    %1836 = vmatprep.subr.mxu0 0.0
    %1837 = vmatpush1.xpose.msra.mxu0 0.0
    %1838 = vmatprep.subr.mxu0 0.0
    %1839 = vmatpush1.xpose.msra.mxu0 0.0
    %1840 = vmatprep.subr.mxu0 0.0
    %1841 = vmatpush1.xpose.msra.mxu0 0.0
    %1842 = vmatprep.subr.mxu0 0.0
    %1843 = vmatpush1.xpose.msra.mxu0 0.0
    %1844 = vmatprep.subr.mxu0 0.0
    %1845 = vmatpush1.xpose.msra.mxu0 0.0
    %1846 = vmatprep.subr.mxu0 0.0
    %1847 = vmatpush1.xpose.msra.mxu0 0.0
    %1848 = vmatprep.subr.mxu0 0.0
    %1849 = vmatpush1.xpose.msra.mxu0 0.0
    %1850 = vmatprep.subr.mxu0 0.0
    %1851 = vmatpush1.xpose.msra.mxu0 0.0
    %1852 = vmatprep.subr.mxu0 0.0
    %1853 = vmatpush1.xpose.msra.mxu0 0.0
    %1854 = vmatprep.subr.mxu0 0.0
    %1855 = vmatpush1.xpose.msra.mxu0 0.0
    %1856 = vmatprep.subr.mxu0 0.0
    %1857 = vmatpush1.xpose.msra.mxu0 0.0
    %1858 = vmatprep.subr.mxu0 0.0
    %1859 = vmatpush1.xpose.msra.mxu0 0.0
    %1860 = vmatprep.subr.mxu0 0.0
    %1861 = vmatpush1.xpose.msra.mxu0 0.0
    %1862 = vmatprep.subr.mxu0 0.0
    %1863 = vmatpush1.xpose.msra.mxu0 0.0
    %1864 = vmatprep.subr.mxu0 0.0
    %1865 = vmatpush1.xpose.msra.mxu0 0.0
    %1866 = vmatprep.subr.mxu0 0.0
    %1867 = vmatpush1.xpose.msra.mxu0 0.0
    %1868 = vmatprep.subr.mxu0 0.0
    %1869 = vmatpush1.xpose.msra.mxu0 0.0
    %1870 = vmatprep.subr.mxu0 0.0
    %1871 = vmatpush1.xpose.msra.mxu0 0.0
    %1872 = vmatprep.mubr.f32.mxu0 0.0
    %1873 = vmatmul.mubr.f32.gmra.mrb[0].mxu0 %v1172
    %v1874 = vpop.f32.mrb[0].mxu0
    %v1875 = vadd.f32 %v635, %v1874
    %v1876 = vpop.f32.mrb[0].mxu0
    %1877 = vdwg.mxu0
    %v1878 = vsel %vm1388, %v1875, -inf
    %1879 = vmax.xlane.f32.xlu0 %v1878
    %v1880 = vpop.xlane.xlu0 %1879
    %v1881 = vsub.f32 %v1875, %v1880
    %v1882 = vmul.f32 %v1881, 1.442695
    %v1883 = vpow.pop %v1882
    %v1884 = vsel %vm1388, %v1883, 0.0
    %1885 = vadd.xlane.f32.xlu0 %v1884
    %v1886 = vpop.xlane.xlu0 %1885
    %v1887 = vrcp.pop %v1886
    %v1888 = vmul.f32 %v1883, %v1887
    %v1890 = vsel %vm1400, %v1888, 0
    %v1893 = vsel %vm1404, %v1243, 0
    %1895 = vmatprep.subr.mxu0 0.0
    %1896 = vmatpush1.msra.mxu0 %v1893
    %1897 = vmatprep.subr.mxu0 0.0
    %1898 = vmatpush1.msra.mxu0 0.0
    %1899 = vmatprep.subr.mxu0 0.0
    %1900 = vmatpush1.msra.mxu0 0.0
    %1901 = vmatprep.subr.mxu0 0.0
    %1902 = vmatpush1.msra.mxu0 0.0
    %1903 = vmatprep.subr.mxu0 0.0
    %1904 = vmatpush1.msra.mxu0 0.0
    %1905 = vmatprep.subr.mxu0 0.0
    %1906 = vmatpush1.msra.mxu0 0.0
    %1907 = vmatprep.subr.mxu0 0.0
    %1908 = vmatpush1.msra.mxu0 0.0
    %1909 = vmatprep.subr.mxu0 0.0
    %1910 = vmatpush1.msra.mxu0 0.0
    %1911 = vmatprep.subr.mxu0 0.0
    %1912 = vmatpush1.msra.mxu0 0.0
    %1913 = vmatprep.subr.mxu0 0.0
    %1914 = vmatpush1.msra.mxu0 0.0
    %1915 = vmatprep.subr.mxu0 0.0
    %1916 = vmatpush1.msra.mxu0 0.0
    %1917 = vmatprep.subr.mxu0 0.0
    %1918 = vmatpush1.msra.mxu0 0.0
    %1919 = vmatprep.subr.mxu0 0.0
    %1920 = vmatpush1.msra.mxu0 0.0
    %1921 = vmatprep.subr.mxu0 0.0
    %1922 = vmatpush1.msra.mxu0 0.0
    %1923 = vmatprep.subr.mxu0 0.0
    %1924 = vmatpush1.msra.mxu0 0.0
    %1925 = vmatprep.subr.mxu0 0.0
    %1926 = vmatpush1.msra.mxu0 0.0
    %1927 = vmatprep.subr.mxu0 0.0
    %1928 = vmatpush1.msra.mxu0 0.0
    %1929 = vmatprep.subr.mxu0 0.0
    %1930 = vmatpush1.msra.mxu0 0.0
    %1931 = vmatprep.subr.mxu0 0.0
    %1932 = vmatpush1.msra.mxu0 0.0
    %1933 = vmatprep.subr.mxu0 0.0
    %1934 = vmatpush1.msra.mxu0 0.0
    %1935 = vmatprep.subr.mxu0 0.0
    %1936 = vmatpush1.msra.mxu0 0.0
    %1937 = vmatprep.subr.mxu0 0.0
    %1938 = vmatpush1.msra.mxu0 0.0
    %1939 = vmatprep.subr.mxu0 0.0
    %1940 = vmatpush1.msra.mxu0 0.0
    %1941 = vmatprep.subr.mxu0 0.0
    %1942 = vmatpush1.msra.mxu0 0.0
    %1943 = vmatprep.subr.mxu0 0.0
    %1944 = vmatpush1.msra.mxu0 0.0
    %1945 = vmatprep.subr.mxu0 0.0
    %1946 = vmatpush1.msra.mxu0 0.0
    %1947 = vmatprep.subr.mxu0 0.0
    %1948 = vmatpush1.msra.mxu0 0.0
    %1949 = vmatprep.subr.mxu0 0.0
    %1950 = vmatpush1.msra.mxu0 0.0
    %1951 = vmatprep.subr.mxu0 0.0
    %1952 = vmatpush1.msra.mxu0 0.0
    %1953 = vmatprep.subr.mxu0 0.0
    %1954 = vmatpush1.msra.mxu0 0.0
    %1955 = vmatprep.subr.mxu0 0.0
    %1956 = vmatpush1.msra.mxu0 0.0
    %1957 = vmatprep.subr.mxu0 0.0
    %1958 = vmatpush1.msra.mxu0 0.0
    %1959 = vmatprep.mubr.f32.mxu0 0.0
    %1960 = vmatmul.mubr.f32.gmra.mrb[0].mxu0 %v1890
    %v1961 = vpop.f32.mrb[0].mxu0
    %v1962 = vadd.f32 0.0, %v1961
    %v1963 = vpop.f32.mrb[0].mxu0
    %1964 = vdwg.mxu0
    %s1965 = scalar_lea.vmem [#allocation16], 256
    %v1966 = vld [vmem:[%s1965] sm:$0xff]
    %v1967 = vld [vmem:[%s1965 + $0x8] sm:$0xff]
    %v1968 = vld [vmem:[%s1965 + $0x10] sm:$0xff]
    %v1969 = vld [vmem:[%s1965 + $0x18] sm:$0xff]
    %v1970 = vld [vmem:[%s1965 + $0x20] sm:$0xff]
    %v1971 = vld [vmem:[%s1965 + $0x28] sm:$0xff]
    %v1972 = vld [vmem:[%s1965 + $0x30] sm:$0xff]
    %v1973 = vld [vmem:[%s1965 + $0x38] sm:$0xff]
    %v1974 = vld [vmem:[%s1965 + $0x40] sm:$0xff]
    %v1975 = vld [vmem:[%s1965 + $0x48] sm:$0xff]
    %v1976 = vld [vmem:[%s1965 + $0x50] sm:$0xff]
    %v1977 = vld [vmem:[%s1965 + $0x58] sm:$0xff]
    %v1978 = vld [vmem:[%s1965 + $0x60] sm:$0xff]
    %v1979 = vld [vmem:[%s1965 + $0x68] sm:$0xff]
    %v1980 = vld [vmem:[%s1965 + $0x70] sm:$0xff]
    %v1981 = vld [vmem:[%s1965 + $0x78] sm:$0xff]
    %1982 = vmatprep.subr.mxu0 0.0
    %1983 = vmatpush1.msra.mxu0 %v1966
    %1984 = vmatprep.subr.mxu0 0.0
    %1985 = vmatpush1.msra.mxu0 %v1967
    %1986 = vmatprep.subr.mxu0 0.0
    %1987 = vmatpush1.msra.mxu0 %v1968
    %1988 = vmatprep.subr.mxu0 0.0
    %1989 = vmatpush1.msra.mxu0 %v1969
    %1990 = vmatprep.subr.mxu0 0.0
    %1991 = vmatpush1.msra.mxu0 %v1970
    %1992 = vmatprep.subr.mxu0 0.0
    %1993 = vmatpush1.msra.mxu0 %v1971
    %1994 = vmatprep.subr.mxu0 0.0
    %1995 = vmatpush1.msra.mxu0 %v1972
    %1996 = vmatprep.subr.mxu0 0.0
    %1997 = vmatpush1.msra.mxu0 %v1973
    %1998 = vmatprep.subr.mxu0 0.0
    %1999 = vmatpush1.msra.mxu0 %v1974
    %2000 = vmatprep.subr.mxu0 0.0
    %2001 = vmatpush1.msra.mxu0 %v1975
    %2002 = vmatprep.subr.mxu0 0.0
    %2003 = vmatpush1.msra.mxu0 %v1976
    %2004 = vmatprep.subr.mxu0 0.0
    %2005 = vmatpush1.msra.mxu0 %v1977
    %2006 = vmatprep.subr.mxu0 0.0
    %2007 = vmatpush1.msra.mxu0 %v1978
    %2008 = vmatprep.subr.mxu0 0.0
    %2009 = vmatpush1.msra.mxu0 %v1979
    %2010 = vmatprep.subr.mxu0 0.0
    %2011 = vmatpush1.msra.mxu0 %v1980
    %2012 = vmatprep.subr.mxu0 0.0
    %2013 = vmatpush1.msra.mxu0 %v1981
    %2014 = vmatprep.subr.mxu0 0.0
    %2015 = vmatpush1.msra.mxu0 0.0
    %2016 = vmatprep.subr.mxu0 0.0
    %2017 = vmatpush1.msra.mxu0 0.0
    %2018 = vmatprep.subr.mxu0 0.0
    %2019 = vmatpush1.msra.mxu0 0.0
    %2020 = vmatprep.subr.mxu0 0.0
    %2021 = vmatpush1.msra.mxu0 0.0
    %2022 = vmatprep.subr.mxu0 0.0
    %2023 = vmatpush1.msra.mxu0 0.0
    %2024 = vmatprep.subr.mxu0 0.0
    %2025 = vmatpush1.msra.mxu0 0.0
    %2026 = vmatprep.subr.mxu0 0.0
    %2027 = vmatpush1.msra.mxu0 0.0
    %2028 = vmatprep.subr.mxu0 0.0
    %2029 = vmatpush1.msra.mxu0 0.0
    %2030 = vmatprep.subr.mxu0 0.0
    %2031 = vmatpush1.msra.mxu0 0.0
    %2032 = vmatprep.subr.mxu0 0.0
    %2033 = vmatpush1.msra.mxu0 0.0
    %2034 = vmatprep.subr.mxu0 0.0
    %2035 = vmatpush1.msra.mxu0 0.0
    %2036 = vmatprep.subr.mxu0 0.0
    %2037 = vmatpush1.msra.mxu0 0.0
    %2038 = vmatprep.subr.mxu0 0.0
    %2039 = vmatpush1.msra.mxu0 0.0
    %2040 = vmatprep.subr.mxu0 0.0
    %2041 = vmatpush1.msra.mxu0 0.0
    %2042 = vmatprep.subr.mxu0 0.0
    %2043 = vmatpush1.msra.mxu0 0.0
    %2044 = vmatprep.subr.mxu0 0.0
    %2045 = vmatpush1.msra.mxu0 0.0
    %2046 = vmatprep.mubr.f32.mxu0 0.0
    %2047 = vmatmul.mubr.f32.gmra.mrb[0].mxu0 %v1962
    %v2048 = vpop.f32.mrb[0].mxu0
    %v2049 = vadd.f32 0.0, %v2048
    %v2050 = vpop.f32.mrb[0].mxu0
    %2051 = vdwg.mxu0
    %v2052 = vadd.f32 %v1805, %v2049
    %2053 = vmatprep.subr.mxu0 0.0
    %2054 = vmatpush1.xpose.msra.mxu0 %v1314
    %2055 = vmatprep.subr.mxu0 0.0
    %2056 = vmatpush1.xpose.msra.mxu0 0.0
    %2057 = vmatprep.subr.mxu0 0.0
    %2058 = vmatpush1.xpose.msra.mxu0 0.0
    %2059 = vmatprep.subr.mxu0 0.0
    %2060 = vmatpush1.xpose.msra.mxu0 0.0
    %2061 = vmatprep.subr.mxu0 0.0
    %2062 = vmatpush1.xpose.msra.mxu0 0.0
    %2063 = vmatprep.subr.mxu0 0.0
    %2064 = vmatpush1.xpose.msra.mxu0 0.0
    %2065 = vmatprep.subr.mxu0 0.0
    %2066 = vmatpush1.xpose.msra.mxu0 0.0
    %2067 = vmatprep.subr.mxu0 0.0
    %2068 = vmatpush1.xpose.msra.mxu0 0.0
    %2069 = vmatprep.subr.mxu0 0.0
    %2070 = vmatpush1.xpose.msra.mxu0 0.0
    %2071 = vmatprep.subr.mxu0 0.0
    %2072 = vmatpush1.xpose.msra.mxu0 0.0
    %2073 = vmatprep.subr.mxu0 0.0
    %2074 = vmatpush1.xpose.msra.mxu0 0.0
    %2075 = vmatprep.subr.mxu0 0.0
    %2076 = vmatpush1.xpose.msra.mxu0 0.0
    %2077 = vmatprep.subr.mxu0 0.0
    %2078 = vmatpush1.xpose.msra.mxu0 0.0
    %2079 = vmatprep.subr.mxu0 0.0
    %2080 = vmatpush1.xpose.msra.mxu0 0.0
    %2081 = vmatprep.subr.mxu0 0.0
    %2082 = vmatpush1.xpose.msra.mxu0 0.0
    %2083 = vmatprep.subr.mxu0 0.0
    %2084 = vmatpush1.xpose.msra.mxu0 0.0
    %2085 = vmatprep.subr.mxu0 0.0
    %2086 = vmatpush1.xpose.msra.mxu0 0.0
    %2087 = vmatprep.subr.mxu0 0.0
    %2088 = vmatpush1.xpose.msra.mxu0 0.0
    %2089 = vmatprep.subr.mxu0 0.0
    %2090 = vmatpush1.xpose.msra.mxu0 0.0
    %2091 = vmatprep.subr.mxu0 0.0
    %2092 = vmatpush1.xpose.msra.mxu0 0.0
    %2093 = vmatprep.subr.mxu0 0.0
    %2094 = vmatpush1.xpose.msra.mxu0 0.0
    %2095 = vmatprep.subr.mxu0 0.0
    %2096 = vmatpush1.xpose.msra.mxu0 0.0
    %2097 = vmatprep.subr.mxu0 0.0
    %2098 = vmatpush1.xpose.msra.mxu0 0.0
    %2099 = vmatprep.subr.mxu0 0.0
    %2100 = vmatpush1.xpose.msra.mxu0 0.0
    %2101 = vmatprep.subr.mxu0 0.0
    %2102 = vmatpush1.xpose.msra.mxu0 0.0
    %2103 = vmatprep.subr.mxu0 0.0
    %2104 = vmatpush1.xpose.msra.mxu0 0.0
    %2105 = vmatprep.subr.mxu0 0.0
    %2106 = vmatpush1.xpose.msra.mxu0 0.0
    %2107 = vmatprep.subr.mxu0 0.0
    %2108 = vmatpush1.xpose.msra.mxu0 0.0
    %2109 = vmatprep.subr.mxu0 0.0
    %2110 = vmatpush1.xpose.msra.mxu0 0.0
    %2111 = vmatprep.subr.mxu0 0.0
    %2112 = vmatpush1.xpose.msra.mxu0 0.0
    %2113 = vmatprep.subr.mxu0 0.0
    %2114 = vmatpush1.xpose.msra.mxu0 0.0
    %2115 = vmatprep.subr.mxu0 0.0
    %2116 = vmatpush1.xpose.msra.mxu0 0.0
    %2117 = vmatprep.mubr.f32.mxu0 0.0
    %2118 = vmatmul.mubr.f32.gmra.mrb[0].mxu0 %v1245
    %v2119 = vpop.f32.mrb[0].mxu0
    %v2120 = vadd.f32 %v635, %v2119
    %v2121 = vpop.f32.mrb[0].mxu0
    %2122 = vdwg.mxu0
    %v2123 = vsel %vm1388, %v2120, -inf
    %2124 = vmax.xlane.f32.xlu0 %v2123
    %v2125 = vpop.xlane.xlu0 %2124
    %v2126 = vsub.f32 %v2120, %v2125
    %v2127 = vmul.f32 %v2126, 1.442695
    %v2128 = vpow.pop %v2127
    %v2129 = vsel %vm1388, %v2128, 0.0
    %2130 = vadd.xlane.f32.xlu0 %v2129
    %v2131 = vpop.xlane.xlu0 %2130
    %v2132 = vrcp.pop %v2131
    %v2133 = vmul.f32 %v2128, %v2132
    %v2135 = vsel %vm1400, %v2133, 0
    %v2138 = vsel %vm1404, %v1316, 0
    %2140 = vmatprep.subr.mxu0 0.0
    %2141 = vmatpush1.msra.mxu0 %v2138
    %2142 = vmatprep.subr.mxu0 0.0
    %2143 = vmatpush1.msra.mxu0 0.0
    %2144 = vmatprep.subr.mxu0 0.0
    %2145 = vmatpush1.msra.mxu0 0.0
    %2146 = vmatprep.subr.mxu0 0.0
    %2147 = vmatpush1.msra.mxu0 0.0
    %2148 = vmatprep.subr.mxu0 0.0
    %2149 = vmatpush1.msra.mxu0 0.0
    %2150 = vmatprep.subr.mxu0 0.0
    %2151 = vmatpush1.msra.mxu0 0.0
    %2152 = vmatprep.subr.mxu0 0.0
    %2153 = vmatpush1.msra.mxu0 0.0
    %2154 = vmatprep.subr.mxu0 0.0
    %2155 = vmatpush1.msra.mxu0 0.0
    %2156 = vmatprep.subr.mxu0 0.0
    %2157 = vmatpush1.msra.mxu0 0.0
    %2158 = vmatprep.subr.mxu0 0.0
    %2159 = vmatpush1.msra.mxu0 0.0
    %2160 = vmatprep.subr.mxu0 0.0
    %2161 = vmatpush1.msra.mxu0 0.0
    %2162 = vmatprep.subr.mxu0 0.0
    %2163 = vmatpush1.msra.mxu0 0.0
    %2164 = vmatprep.subr.mxu0 0.0
    %2165 = vmatpush1.msra.mxu0 0.0
    %2166 = vmatprep.subr.mxu0 0.0
    %2167 = vmatpush1.msra.mxu0 0.0
    %2168 = vmatprep.subr.mxu0 0.0
    %2169 = vmatpush1.msra.mxu0 0.0
    %2170 = vmatprep.subr.mxu0 0.0
    %2171 = vmatpush1.msra.mxu0 0.0
    %2172 = vmatprep.subr.mxu0 0.0
    %2173 = vmatpush1.msra.mxu0 0.0
    %2174 = vmatprep.subr.mxu0 0.0
    %2175 = vmatpush1.msra.mxu0 0.0
    %2176 = vmatprep.subr.mxu0 0.0
    %2177 = vmatpush1.msra.mxu0 0.0
    %2178 = vmatprep.subr.mxu0 0.0
    %2179 = vmatpush1.msra.mxu0 0.0
    %2180 = vmatprep.subr.mxu0 0.0
    %2181 = vmatpush1.msra.mxu0 0.0
    %2182 = vmatprep.subr.mxu0 0.0
    %2183 = vmatpush1.msra.mxu0 0.0
    %2184 = vmatprep.subr.mxu0 0.0
    %2185 = vmatpush1.msra.mxu0 0.0
    %2186 = vmatprep.subr.mxu0 0.0
    %2187 = vmatpush1.msra.mxu0 0.0
    %2188 = vmatprep.subr.mxu0 0.0
    %2189 = vmatpush1.msra.mxu0 0.0
    %2190 = vmatprep.subr.mxu0 0.0
    %2191 = vmatpush1.msra.mxu0 0.0
    %2192 = vmatprep.subr.mxu0 0.0
    %2193 = vmatpush1.msra.mxu0 0.0
    %2194 = vmatprep.subr.mxu0 0.0
    %2195 = vmatpush1.msra.mxu0 0.0
    %2196 = vmatprep.subr.mxu0 0.0
    %2197 = vmatpush1.msra.mxu0 0.0
    %2198 = vmatprep.subr.mxu0 0.0
    %2199 = vmatpush1.msra.mxu0 0.0
    %2200 = vmatprep.subr.mxu0 0.0
    %2201 = vmatpush1.msra.mxu0 0.0
    %2202 = vmatprep.subr.mxu0 0.0
    %2203 = vmatpush1.msra.mxu0 0.0
    %2204 = vmatprep.mubr.f32.mxu0 0.0
    %2205 = vmatmul.mubr.f32.gmra.mrb[0].mxu0 %v2135
    %v2206 = vpop.f32.mrb[0].mxu0
    %v2207 = vadd.f32 0.0, %v2206
    %v2208 = vpop.f32.mrb[0].mxu0
    %2209 = vdwg.mxu0
    %s2210 = scalar_lea.vmem [#allocation16], 384
    %v2211 = vld [vmem:[%s2210] sm:$0xff]
    %v2212 = vld [vmem:[%s2210 + $0x8] sm:$0xff]
    %v2213 = vld [vmem:[%s2210 + $0x10] sm:$0xff]
    %v2214 = vld [vmem:[%s2210 + $0x18] sm:$0xff]
    %v2215 = vld [vmem:[%s2210 + $0x20] sm:$0xff]
    %v2216 = vld [vmem:[%s2210 + $0x28] sm:$0xff]
    %v2217 = vld [vmem:[%s2210 + $0x30] sm:$0xff]
    %v2218 = vld [vmem:[%s2210 + $0x38] sm:$0xff]
    %v2219 = vld [vmem:[%s2210 + $0x40] sm:$0xff]
    %v2220 = vld [vmem:[%s2210 + $0x48] sm:$0xff]
    %v2221 = vld [vmem:[%s2210 + $0x50] sm:$0xff]
    %v2222 = vld [vmem:[%s2210 + $0x58] sm:$0xff]
    %v2223 = vld [vmem:[%s2210 + $0x60] sm:$0xff]
    %v2224 = vld [vmem:[%s2210 + $0x68] sm:$0xff]
    %v2225 = vld [vmem:[%s2210 + $0x70] sm:$0xff]
    %v2226 = vld [vmem:[%s2210 + $0x78] sm:$0xff]
    %2227 = vmatprep.subr.mxu0 0.0
    %2228 = vmatpush1.msra.mxu0 %v2211
    %2229 = vmatprep.subr.mxu0 0.0
    %2230 = vmatpush1.msra.mxu0 %v2212
    %2231 = vmatprep.subr.mxu0 0.0
    %2232 = vmatpush1.msra.mxu0 %v2213
    %2233 = vmatprep.subr.mxu0 0.0
    %2234 = vmatpush1.msra.mxu0 %v2214
    %2235 = vmatprep.subr.mxu0 0.0
    %2236 = vmatpush1.msra.mxu0 %v2215
    %2237 = vmatprep.subr.mxu0 0.0
    %2238 = vmatpush1.msra.mxu0 %v2216
    %2239 = vmatprep.subr.mxu0 0.0
    %2240 = vmatpush1.msra.mxu0 %v2217
    %2241 = vmatprep.subr.mxu0 0.0
    %2242 = vmatpush1.msra.mxu0 %v2218
    %2243 = vmatprep.subr.mxu0 0.0
    %2244 = vmatpush1.msra.mxu0 %v2219
    %2245 = vmatprep.subr.mxu0 0.0
    %2246 = vmatpush1.msra.mxu0 %v2220
    %2247 = vmatprep.subr.mxu0 0.0
    %2248 = vmatpush1.msra.mxu0 %v2221
    %2249 = vmatprep.subr.mxu0 0.0
    %2250 = vmatpush1.msra.mxu0 %v2222
    %2251 = vmatprep.subr.mxu0 0.0
    %2252 = vmatpush1.msra.mxu0 %v2223
    %2253 = vmatprep.subr.mxu0 0.0
    %2254 = vmatpush1.msra.mxu0 %v2224
    %2255 = vmatprep.subr.mxu0 0.0
    %2256 = vmatpush1.msra.mxu0 %v2225
    %2257 = vmatprep.subr.mxu0 0.0
    %2258 = vmatpush1.msra.mxu0 %v2226
    %2259 = vmatprep.subr.mxu0 0.0
    %2260 = vmatpush1.msra.mxu0 0.0
    %2261 = vmatprep.subr.mxu0 0.0
    %2262 = vmatpush1.msra.mxu0 0.0
    %2263 = vmatprep.subr.mxu0 0.0
    %2264 = vmatpush1.msra.mxu0 0.0
    %2265 = vmatprep.subr.mxu0 0.0
    %2266 = vmatpush1.msra.mxu0 0.0
    %2267 = vmatprep.subr.mxu0 0.0
    %2268 = vmatpush1.msra.mxu0 0.0
    %2269 = vmatprep.subr.mxu0 0.0
    %2270 = vmatpush1.msra.mxu0 0.0
    %2271 = vmatprep.subr.mxu0 0.0
    %2272 = vmatpush1.msra.mxu0 0.0
    %2273 = vmatprep.subr.mxu0 0.0
    %2274 = vmatpush1.msra.mxu0 0.0
    %2275 = vmatprep.subr.mxu0 0.0
    %2276 = vmatpush1.msra.mxu0 0.0
    %2277 = vmatprep.subr.mxu0 0.0
    %2278 = vmatpush1.msra.mxu0 0.0
    %2279 = vmatprep.subr.mxu0 0.0
    %2280 = vmatpush1.msra.mxu0 0.0
    %2281 = vmatprep.subr.mxu0 0.0
    %2282 = vmatpush1.msra.mxu0 0.0
    %2283 = vmatprep.subr.mxu0 0.0
    %2284 = vmatpush1.msra.mxu0 0.0
    %2285 = vmatprep.subr.mxu0 0.0
    %2286 = vmatpush1.msra.mxu0 0.0
    %2287 = vmatprep.subr.mxu0 0.0
    %2288 = vmatpush1.msra.mxu0 0.0
    %2289 = vmatprep.subr.mxu0 0.0
    %2290 = vmatpush1.msra.mxu0 0.0
    %2291 = vmatprep.mubr.f32.mxu0 0.0
    %2292 = vmatmul.mubr.f32.gmra.mrb[0].mxu0 %v2207
    %v2293 = vpop.f32.mrb[0].mxu0
    %v2294 = vadd.f32 0.0, %v2293
    %v2295 = vpop.f32.mrb[0].mxu0
    %2296 = vdwg.mxu0
    %v2297 = vadd.f32 %v2052, %v2294
    %v2298 = vld [vmem:[#allocation18] sm:$0x1]
    %v2300 = vlaneseq
    %v2301 = vshrl.u32 %v2300, 7
    %v2302 = vsub.s32 0, %v2301
    %v2303 = vrot.slane %v2298, %v2302
    %v2305 = vadd.f32 %v2297, %v2303
    %v2306 = vadd.f32 %v631, %v2305
    %v2307 = vld [vmem:[#allocation19] sm:$0x1]
    %v2308 = vld [vmem:[#allocation21] sm:$0x1]
    %v2309 = vsel %vm1404, %v2306, 0.0
    %2310 = vadd.xlane.f32.xlu0 %v2309
    %v2311 = vpop.xlane.xlu0 %2310
    %v2312 = vmul.f32 %v2311, 0.03125
    %v2313 = vsub.f32 %v2306, %v2312
    %v2314 = vmul.f32 %v2313, %v338
    %v2315 = vmul.f32 %v2314, %v2314
    %v2316 = vsel %vm1404, %v2315, 0.0
    %2317 = vadd.xlane.f32.xlu0 %v2316
    %v2318 = vpop.xlane.xlu0 %2317
    %v2319 = vmul.f32 %v2318, 0.03125
    %v2320 = vadd.f32 %v2319, 1e-05
    %v2321 = vrsqrt.pop %v2320
    %v2322 = vmul.f32 %v2314, %v2321
    %v2324 = vlaneseq
    %v2325 = vshrl.u32 %v2324, 7
    %v2326 = vsub.s32 0, %v2325
    %v2327 = vrot.slane %v2307, %v2326
    %v2329 = vmul.f32 %v2322, %v2327
    %v2331 = vlaneseq
    %v2332 = vshrl.u32 %v2331, 7
    %v2333 = vsub.s32 0, %v2332
    %v2334 = vrot.slane %v2308, %v2333
    %v2336 = vadd.f32 %v2329, %v2334
    %v2337 = vld [vmem:[#allocation22] sm:$0xff]
    %v2338 = vld [vmem:[#allocation22 + $0x8] sm:$0xff]
    %v2339 = vld [vmem:[#allocation22 + $0x10] sm:$0xff]
    %v2340 = vld [vmem:[#allocation22 + $0x18] sm:$0xff]
    %v2341 = vld [vmem:[#allocation22 + $0x20] sm:$0xff]
    %v2342 = vld [vmem:[#allocation22 + $0x28] sm:$0xff]
    %v2343 = vld [vmem:[#allocation22 + $0x30] sm:$0xff]
    %v2344 = vld [vmem:[#allocation22 + $0x38] sm:$0xff]
    %v2345 = vld [vmem:[#allocation22 + $0x40] sm:$0xff]
    %v2346 = vld [vmem:[#allocation22 + $0x48] sm:$0xff]
    %v2347 = vld [vmem:[#allocation22 + $0x50] sm:$0xff]
    %v2348 = vld [vmem:[#allocation22 + $0x58] sm:$0xff]
    %v2349 = vld [vmem:[#allocation22 + $0x60] sm:$0xff]
    %v2350 = vld [vmem:[#allocation22 + $0x68] sm:$0xff]
    %v2351 = vld [vmem:[#allocation22 + $0x70] sm:$0xff]
    %v2352 = vld [vmem:[#allocation22 + $0x78] sm:$0xff]
    %v2353 = vld [vmem:[#allocation24] sm:$0x1]
    %v2355 = vlaneseq
    %v2356 = vshrl.u32 %v2355, 7
    %v2357 = vsub.s32 0, %v2356
    %v2358 = vrot.slane %v2353, %v2357
    %2360 = vmatprep.subr.mxu0 0.0
    %2361 = vmatpush1.msra.mxu0 %v2337
    %2362 = vmatprep.subr.mxu0 0.0
    %2363 = vmatpush1.msra.mxu0 %v2338
    %2364 = vmatprep.subr.mxu0 0.0
    %2365 = vmatpush1.msra.mxu0 %v2339
    %2366 = vmatprep.subr.mxu0 0.0
    %2367 = vmatpush1.msra.mxu0 %v2340
    %2368 = vmatprep.subr.mxu0 0.0
    %2369 = vmatpush1.msra.mxu0 %v2341
    %2370 = vmatprep.subr.mxu0 0.0
    %2371 = vmatpush1.msra.mxu0 %v2342
    %2372 = vmatprep.subr.mxu0 0.0
    %2373 = vmatpush1.msra.mxu0 %v2343
    %2374 = vmatprep.subr.mxu0 0.0
    %2375 = vmatpush1.msra.mxu0 %v2344
    %2376 = vmatprep.subr.mxu0 0.0
    %2377 = vmatpush1.msra.mxu0 %v2345
    %2378 = vmatprep.subr.mxu0 0.0
    %2379 = vmatpush1.msra.mxu0 %v2346
    %2380 = vmatprep.subr.mxu0 0.0
    %2381 = vmatpush1.msra.mxu0 %v2347
    %2382 = vmatprep.subr.mxu0 0.0
    %2383 = vmatpush1.msra.mxu0 %v2348
    %2384 = vmatprep.subr.mxu0 0.0
    %2385 = vmatpush1.msra.mxu0 %v2349
    %2386 = vmatprep.subr.mxu0 0.0
    %2387 = vmatpush1.msra.mxu0 %v2350
    %2388 = vmatprep.subr.mxu0 0.0
    %2389 = vmatpush1.msra.mxu0 %v2351
    %2390 = vmatprep.subr.mxu0 0.0
    %2391 = vmatpush1.msra.mxu0 %v2352
    %2392 = vmatprep.subr.mxu0 0.0
    %2393 = vmatpush1.msra.mxu0 0.0
    %2394 = vmatprep.subr.mxu0 0.0
    %2395 = vmatpush1.msra.mxu0 0.0
    %2396 = vmatprep.subr.mxu0 0.0
    %2397 = vmatpush1.msra.mxu0 0.0
    %2398 = vmatprep.subr.mxu0 0.0
    %2399 = vmatpush1.msra.mxu0 0.0
    %2400 = vmatprep.subr.mxu0 0.0
    %2401 = vmatpush1.msra.mxu0 0.0
    %2402 = vmatprep.subr.mxu0 0.0
    %2403 = vmatpush1.msra.mxu0 0.0
    %2404 = vmatprep.subr.mxu0 0.0
    %2405 = vmatpush1.msra.mxu0 0.0
    %2406 = vmatprep.subr.mxu0 0.0
    %2407 = vmatpush1.msra.mxu0 0.0
    %2408 = vmatprep.subr.mxu0 0.0
    %2409 = vmatpush1.msra.mxu0 0.0
    %2410 = vmatprep.subr.mxu0 0.0
    %2411 = vmatpush1.msra.mxu0 0.0
    %2412 = vmatprep.subr.mxu0 0.0
    %2413 = vmatpush1.msra.mxu0 0.0
    %2414 = vmatprep.subr.mxu0 0.0
    %2415 = vmatpush1.msra.mxu0 0.0
    %2416 = vmatprep.subr.mxu0 0.0
    %2417 = vmatpush1.msra.mxu0 0.0
    %2418 = vmatprep.subr.mxu0 0.0
    %2419 = vmatpush1.msra.mxu0 0.0
    %2420 = vmatprep.subr.mxu0 0.0
    %2421 = vmatpush1.msra.mxu0 0.0
    %2422 = vmatprep.subr.mxu0 0.0
    %2423 = vmatpush1.msra.mxu0 0.0
    %2424 = vmatprep.mubr.f32.mxu0 0.0
    %2425 = vmatmul.mubr.f32.gmra.mrb[0].mxu0 %v2336
    %v2426 = vpop.f32.mrb[0].mxu0
    %v2427 = vadd.f32 %v2358, %v2426
    %v2428 = vpop.f32.mrb[0].mxu0
    %2429 = vdwg.mxu0
    %v2430 = vmax.f32 %v2427, 0.0
    %v2431 = vld [vmem:[#allocation25] sm:$0xff]
    %v2432 = vld [vmem:[#allocation25 + $0x8] sm:$0xff]
    %v2433 = vld [vmem:[#allocation25 + $0x10] sm:$0xff]
    %v2434 = vld [vmem:[#allocation25 + $0x18] sm:$0xff]
    %v2435 = vld [vmem:[#allocation25 + $0x20] sm:$0xff]
    %v2436 = vld [vmem:[#allocation25 + $0x28] sm:$0xff]
    %v2437 = vld [vmem:[#allocation25 + $0x30] sm:$0xff]
    %v2438 = vld [vmem:[#allocation25 + $0x38] sm:$0xff]
    %v2439 = vld [vmem:[#allocation25 + $0x40] sm:$0xff]
    %v2440 = vld [vmem:[#allocation25 + $0x48] sm:$0xff]
    %v2441 = vld [vmem:[#allocation25 + $0x50] sm:$0xff]
    %v2442 = vld [vmem:[#allocation25 + $0x58] sm:$0xff]
    %v2443 = vld [vmem:[#allocation25 + $0x60] sm:$0xff]
    %v2444 = vld [vmem:[#allocation25 + $0x68] sm:$0xff]
    %v2445 = vld [vmem:[#allocation25 + $0x70] sm:$0xff]
    %v2446 = vld [vmem:[#allocation25 + $0x78] sm:$0xff]
    %v2447 = vld [vmem:[#allocation27] sm:$0x1]
    %v2449 = vlaneseq
    %v2450 = vshrl.u32 %v2449, 7
    %v2451 = vsub.s32 0, %v2450
    %v2452 = vrot.slane %v2447, %v2451
    %2454 = vmatprep.subr.mxu0 0.0
    %2455 = vmatpush1.msra.mxu0 %v2431
    %2456 = vmatprep.subr.mxu0 0.0
    %2457 = vmatpush1.msra.mxu0 %v2432
    %2458 = vmatprep.subr.mxu0 0.0
    %2459 = vmatpush1.msra.mxu0 %v2433
    %2460 = vmatprep.subr.mxu0 0.0
    %2461 = vmatpush1.msra.mxu0 %v2434
    %2462 = vmatprep.subr.mxu0 0.0
    %2463 = vmatpush1.msra.mxu0 %v2435
    %2464 = vmatprep.subr.mxu0 0.0
    %2465 = vmatpush1.msra.mxu0 %v2436
    %2466 = vmatprep.subr.mxu0 0.0
    %2467 = vmatpush1.msra.mxu0 %v2437
    %2468 = vmatprep.subr.mxu0 0.0
    %2469 = vmatpush1.msra.mxu0 %v2438
    %2470 = vmatprep.subr.mxu0 0.0
    %2471 = vmatpush1.msra.mxu0 %v2439
    %2472 = vmatprep.subr.mxu0 0.0
    %2473 = vmatpush1.msra.mxu0 %v2440
    %2474 = vmatprep.subr.mxu0 0.0
    %2475 = vmatpush1.msra.mxu0 %v2441
    %2476 = vmatprep.subr.mxu0 0.0
    %2477 = vmatpush1.msra.mxu0 %v2442
    %2478 = vmatprep.subr.mxu0 0.0
    %2479 = vmatpush1.msra.mxu0 %v2443
    %2480 = vmatprep.subr.mxu0 0.0
    %2481 = vmatpush1.msra.mxu0 %v2444
    %2482 = vmatprep.subr.mxu0 0.0
    %2483 = vmatpush1.msra.mxu0 %v2445
    %2484 = vmatprep.subr.mxu0 0.0
    %2485 = vmatpush1.msra.mxu0 %v2446
    %2486 = vmatprep.subr.mxu0 0.0
    %2487 = vmatpush1.msra.mxu0 0.0
    %2488 = vmatprep.subr.mxu0 0.0
    %2489 = vmatpush1.msra.mxu0 0.0
    %2490 = vmatprep.subr.mxu0 0.0
    %2491 = vmatpush1.msra.mxu0 0.0
    %2492 = vmatprep.subr.mxu0 0.0
    %2493 = vmatpush1.msra.mxu0 0.0
    %2494 = vmatprep.subr.mxu0 0.0
    %2495 = vmatpush1.msra.mxu0 0.0
    %2496 = vmatprep.subr.mxu0 0.0
    %2497 = vmatpush1.msra.mxu0 0.0
    %2498 = vmatprep.subr.mxu0 0.0
    %2499 = vmatpush1.msra.mxu0 0.0
    %2500 = vmatprep.subr.mxu0 0.0
    %2501 = vmatpush1.msra.mxu0 0.0
    %2502 = vmatprep.subr.mxu0 0.0
    %2503 = vmatpush1.msra.mxu0 0.0
    %2504 = vmatprep.subr.mxu0 0.0
    %2505 = vmatpush1.msra.mxu0 0.0
    %2506 = vmatprep.subr.mxu0 0.0
    %2507 = vmatpush1.msra.mxu0 0.0
    %2508 = vmatprep.subr.mxu0 0.0
    %2509 = vmatpush1.msra.mxu0 0.0
    %2510 = vmatprep.subr.mxu0 0.0
    %2511 = vmatpush1.msra.mxu0 0.0
    %2512 = vmatprep.subr.mxu0 0.0
    %2513 = vmatpush1.msra.mxu0 0.0
    %2514 = vmatprep.subr.mxu0 0.0
    %2515 = vmatpush1.msra.mxu0 0.0
    %2516 = vmatprep.subr.mxu0 0.0
    %2517 = vmatpush1.msra.mxu0 0.0
    %2518 = vmatprep.mubr.f32.mxu0 0.0
    %2519 = vmatmul.mubr.f32.gmra.mrb[0].mxu0 %v2430
    %v2520 = vpop.f32.mrb[0].mxu0
    %v2521 = vadd.f32 %v2452, %v2520
    %v2522 = vpop.f32.mrb[0].mxu0
    %2523 = vdwg.mxu0
    %v2524 = vadd.f32 %v2336, %v2521
    %v2525 = vld [vmem:[#allocation28] sm:$0x1]
    %v2526 = vld [vmem:[#allocation30] sm:$0x1]
    %v2527 = vsel %vm1404, %v2524, 0.0
    %2528 = vadd.xlane.f32.xlu0 %v2527
    %v2529 = vpop.xlane.xlu0 %2528
    %v2530 = vmul.f32 %v2529, 0.03125
    %v2531 = vsub.f32 %v2524, %v2530
    %v2532 = vmul.f32 %v2531, %v338
    %v2533 = vmul.f32 %v2532, %v2532
    %v2534 = vsel %vm1404, %v2533, 0.0
    %2535 = vadd.xlane.f32.xlu0 %v2534
    %v2536 = vpop.xlane.xlu0 %2535
    %v2537 = vmul.f32 %v2536, 0.03125
    %v2538 = vadd.f32 %v2537, 1e-05
    %v2539 = vrsqrt.pop %v2538
    %v2540 = vmul.f32 %v2532, %v2539
    %v2542 = vlaneseq
    %v2543 = vshrl.u32 %v2542, 7
    %v2544 = vsub.s32 0, %v2543
    %v2545 = vrot.slane %v2525, %v2544
    %v2547 = vmul.f32 %v2540, %v2545
    %v2549 = vlaneseq
    %v2550 = vshrl.u32 %v2549, 7
    %v2551 = vsub.s32 0, %v2550
    %v2552 = vrot.slane %v2526, %v2551
    %v2554 = vadd.f32 %v2547, %v2552
    %s2555 = scalar_lea.vmem [#allocation13], 1536
    %v2556 = vld [vmem:[%s2555] sm:$0xff]
    %v2557 = vld [vmem:[%s2555 + $0x8] sm:$0xff]
    %v2558 = vld [vmem:[%s2555 + $0x10] sm:$0xff]
    %v2559 = vld [vmem:[%s2555 + $0x18] sm:$0xff]
    %v2560 = vld [vmem:[%s2555 + $0x20] sm:$0xff]
    %v2561 = vld [vmem:[%s2555 + $0x28] sm:$0xff]
    %v2562 = vld [vmem:[%s2555 + $0x30] sm:$0xff]
    %v2563 = vld [vmem:[%s2555 + $0x38] sm:$0xff]
    %v2564 = vld [vmem:[%s2555 + $0x40] sm:$0xff]
    %v2565 = vld [vmem:[%s2555 + $0x48] sm:$0xff]
    %v2566 = vld [vmem:[%s2555 + $0x50] sm:$0xff]
    %v2567 = vld [vmem:[%s2555 + $0x58] sm:$0xff]
    %v2568 = vld [vmem:[%s2555 + $0x60] sm:$0xff]
    %v2569 = vld [vmem:[%s2555 + $0x68] sm:$0xff]
    %v2570 = vld [vmem:[%s2555 + $0x70] sm:$0xff]
    %v2571 = vld [vmem:[%s2555 + $0x78] sm:$0xff]
    %v2572 = vld [vmem:[%s2555 + $0x80] sm:$0xff]
    %v2573 = vld [vmem:[%s2555 + $0x88] sm:$0xff]
    %v2574 = vld [vmem:[%s2555 + $0x90] sm:$0xff]
    %v2575 = vld [vmem:[%s2555 + $0x98] sm:$0xff]
    %v2576 = vld [vmem:[%s2555 + $0xa0] sm:$0xff]
    %v2577 = vld [vmem:[%s2555 + $0xa8] sm:$0xff]
    %v2578 = vld [vmem:[%s2555 + $0xb0] sm:$0xff]
    %v2579 = vld [vmem:[%s2555 + $0xb8] sm:$0xff]
    %v2580 = vld [vmem:[%s2555 + $0xc0] sm:$0xff]
    %v2581 = vld [vmem:[%s2555 + $0xc8] sm:$0xff]
    %v2582 = vld [vmem:[%s2555 + $0xd0] sm:$0xff]
    %v2583 = vld [vmem:[%s2555 + $0xd8] sm:$0xff]
    %v2584 = vld [vmem:[%s2555 + $0xe0] sm:$0xff]
    %v2585 = vld [vmem:[%s2555 + $0xe8] sm:$0xff]
    %v2586 = vld [vmem:[%s2555 + $0xf0] sm:$0xff]
    %v2587 = vld [vmem:[%s2555 + $0xf8] sm:$0xff]
    %v2588 = vld [vmem:[%s2555 + $0x100] sm:$0xff]
    %v2589 = vld [vmem:[%s2555 + $0x108] sm:$0xff]
    %v2590 = vld [vmem:[%s2555 + $0x110] sm:$0xff]
    %v2591 = vld [vmem:[%s2555 + $0x118] sm:$0xff]
    %v2592 = vld [vmem:[%s2555 + $0x120] sm:$0xff]
    %v2593 = vld [vmem:[%s2555 + $0x128] sm:$0xff]
    %v2594 = vld [vmem:[%s2555 + $0x130] sm:$0xff]
    %v2595 = vld [vmem:[%s2555 + $0x138] sm:$0xff]
    %v2596 = vld [vmem:[%s2555 + $0x140] sm:$0xff]
    %v2597 = vld [vmem:[%s2555 + $0x148] sm:$0xff]
    %v2598 = vld [vmem:[%s2555 + $0x150] sm:$0xff]
    %v2599 = vld [vmem:[%s2555 + $0x158] sm:$0xff]
    %v2600 = vld [vmem:[%s2555 + $0x160] sm:$0xff]
    %v2601 = vld [vmem:[%s2555 + $0x168] sm:$0xff]
    %v2602 = vld [vmem:[%s2555 + $0x170] sm:$0xff]
    %v2603 = vld [vmem:[%s2555 + $0x178] sm:$0xff]
    %v2604 = vld [vmem:[%s2555 + $0x180] sm:$0xff]
    %v2605 = vld [vmem:[%s2555 + $0x188] sm:$0xff]
    %v2606 = vld [vmem:[%s2555 + $0x190] sm:$0xff]
    %v2607 = vld [vmem:[%s2555 + $0x198] sm:$0xff]
    %v2608 = vld [vmem:[%s2555 + $0x1a0] sm:$0xff]
    %v2609 = vld [vmem:[%s2555 + $0x1a8] sm:$0xff]
    %v2610 = vld [vmem:[%s2555 + $0x1b0] sm:$0xff]
    %v2611 = vld [vmem:[%s2555 + $0x1b8] sm:$0xff]
    %v2612 = vld [vmem:[%s2555 + $0x1c0] sm:$0xff]
    %v2613 = vld [vmem:[%s2555 + $0x1c8] sm:$0xff]
    %v2614 = vld [vmem:[%s2555 + $0x1d0] sm:$0xff]
    %v2615 = vld [vmem:[%s2555 + $0x1d8] sm:$0xff]
    %v2616 = vld [vmem:[%s2555 + $0x1e0] sm:$0xff]
    %v2617 = vld [vmem:[%s2555 + $0x1e8] sm:$0xff]
    %v2618 = vld [vmem:[%s2555 + $0x1f0] sm:$0xff]
    %v2619 = vld [vmem:[%s2555 + $0x1f8] sm:$0xff]
    %v2620 = vld [vmem:[%s2555 + $0x200] sm:$0xff]
    %v2621 = vld [vmem:[%s2555 + $0x208] sm:$0xff]
    %v2622 = vld [vmem:[%s2555 + $0x210] sm:$0xff]
    %v2623 = vld [vmem:[%s2555 + $0x218] sm:$0xff]
    %v2624 = vld [vmem:[%s2555 + $0x220] sm:$0xff]
    %v2625 = vld [vmem:[%s2555 + $0x228] sm:$0xff]
    %v2626 = vld [vmem:[%s2555 + $0x230] sm:$0xff]
    %v2627 = vld [vmem:[%s2555 + $0x238] sm:$0xff]
    %v2628 = vld [vmem:[%s2555 + $0x240] sm:$0xff]
    %v2629 = vld [vmem:[%s2555 + $0x248] sm:$0xff]
    %v2630 = vld [vmem:[%s2555 + $0x250] sm:$0xff]
    %v2631 = vld [vmem:[%s2555 + $0x258] sm:$0xff]
    %v2632 = vld [vmem:[%s2555 + $0x260] sm:$0xff]
    %v2633 = vld [vmem:[%s2555 + $0x268] sm:$0xff]
    %v2634 = vld [vmem:[%s2555 + $0x270] sm:$0xff]
    %v2635 = vld [vmem:[%s2555 + $0x278] sm:$0xff]
    %v2636 = vld [vmem:[%s2555 + $0x280] sm:$0xff]
    %v2637 = vld [vmem:[%s2555 + $0x288] sm:$0xff]
    %v2638 = vld [vmem:[%s2555 + $0x290] sm:$0xff]
    %v2639 = vld [vmem:[%s2555 + $0x298] sm:$0xff]
    %v2640 = vld [vmem:[%s2555 + $0x2a0] sm:$0xff]
    %v2641 = vld [vmem:[%s2555 + $0x2a8] sm:$0xff]
    %v2642 = vld [vmem:[%s2555 + $0x2b0] sm:$0xff]
    %v2643 = vld [vmem:[%s2555 + $0x2b8] sm:$0xff]
    %v2644 = vld [vmem:[%s2555 + $0x2c0] sm:$0xff]
    %v2645 = vld [vmem:[%s2555 + $0x2c8] sm:$0xff]
    %v2646 = vld [vmem:[%s2555 + $0x2d0] sm:$0xff]
    %v2647 = vld [vmem:[%s2555 + $0x2d8] sm:$0xff]
    %v2648 = vld [vmem:[%s2555 + $0x2e0] sm:$0xff]
    %v2649 = vld [vmem:[%s2555 + $0x2e8] sm:$0xff]
    %v2650 = vld [vmem:[%s2555 + $0x2f0] sm:$0xff]
    %v2651 = vld [vmem:[%s2555 + $0x2f8] sm:$0xff]
    %v2652 = vld [vmem:[%s2555 + $0x300] sm:$0xff]
    %v2653 = vld [vmem:[%s2555 + $0x308] sm:$0xff]
    %v2654 = vld [vmem:[%s2555 + $0x310] sm:$0xff]
    %v2655 = vld [vmem:[%s2555 + $0x318] sm:$0xff]
    %v2656 = vld [vmem:[%s2555 + $0x320] sm:$0xff]
    %v2657 = vld [vmem:[%s2555 + $0x328] sm:$0xff]
    %v2658 = vld [vmem:[%s2555 + $0x330] sm:$0xff]
    %v2659 = vld [vmem:[%s2555 + $0x338] sm:$0xff]
    %v2660 = vld [vmem:[%s2555 + $0x340] sm:$0xff]
    %v2661 = vld [vmem:[%s2555 + $0x348] sm:$0xff]
    %v2662 = vld [vmem:[%s2555 + $0x350] sm:$0xff]
    %v2663 = vld [vmem:[%s2555 + $0x358] sm:$0xff]
    %v2664 = vld [vmem:[%s2555 + $0x360] sm:$0xff]
    %v2665 = vld [vmem:[%s2555 + $0x368] sm:$0xff]
    %v2666 = vld [vmem:[%s2555 + $0x370] sm:$0xff]
    %v2667 = vld [vmem:[%s2555 + $0x378] sm:$0xff]
    %v2668 = vld [vmem:[%s2555 + $0x380] sm:$0xff]
    %v2669 = vld [vmem:[%s2555 + $0x388] sm:$0xff]
    %v2670 = vld [vmem:[%s2555 + $0x390] sm:$0xff]
    %v2671 = vld [vmem:[%s2555 + $0x398] sm:$0xff]
    %v2672 = vld [vmem:[%s2555 + $0x3a0] sm:$0xff]
    %v2673 = vld [vmem:[%s2555 + $0x3a8] sm:$0xff]
    %v2674 = vld [vmem:[%s2555 + $0x3b0] sm:$0xff]
    %v2675 = vld [vmem:[%s2555 + $0x3b8] sm:$0xff]
    %v2676 = vld [vmem:[%s2555 + $0x3c0] sm:$0xff]
    %v2677 = vld [vmem:[%s2555 + $0x3c8] sm:$0xff]
    %v2678 = vld [vmem:[%s2555 + $0x3d0] sm:$0xff]
    %v2679 = vld [vmem:[%s2555 + $0x3d8] sm:$0xff]
    %v2680 = vld [vmem:[%s2555 + $0x3e0] sm:$0xff]
    %v2681 = vld [vmem:[%s2555 + $0x3e8] sm:$0xff]
    %v2682 = vld [vmem:[%s2555 + $0x3f0] sm:$0xff]
    %v2683 = vld [vmem:[%s2555 + $0x3f8] sm:$0xff]
    %v2684 = vld [vmem:[%s2555 + $0x400] sm:$0xff]
    %v2685 = vld [vmem:[%s2555 + $0x408] sm:$0xff]
    %v2686 = vld [vmem:[%s2555 + $0x410] sm:$0xff]
    %v2687 = vld [vmem:[%s2555 + $0x418] sm:$0xff]
    %v2688 = vld [vmem:[%s2555 + $0x420] sm:$0xff]
    %v2689 = vld [vmem:[%s2555 + $0x428] sm:$0xff]
    %v2690 = vld [vmem:[%s2555 + $0x430] sm:$0xff]
    %v2691 = vld [vmem:[%s2555 + $0x438] sm:$0xff]
    %v2692 = vld [vmem:[%s2555 + $0x440] sm:$0xff]
    %v2693 = vld [vmem:[%s2555 + $0x448] sm:$0xff]
    %v2694 = vld [vmem:[%s2555 + $0x450] sm:$0xff]
    %v2695 = vld [vmem:[%s2555 + $0x458] sm:$0xff]
    %v2696 = vld [vmem:[%s2555 + $0x460] sm:$0xff]
    %v2697 = vld [vmem:[%s2555 + $0x468] sm:$0xff]
    %v2698 = vld [vmem:[%s2555 + $0x470] sm:$0xff]
    %v2699 = vld [vmem:[%s2555 + $0x478] sm:$0xff]
    %v2700 = vld [vmem:[%s2555 + $0x480] sm:$0xff]
    %v2701 = vld [vmem:[%s2555 + $0x488] sm:$0xff]
    %v2702 = vld [vmem:[%s2555 + $0x490] sm:$0xff]
    %v2703 = vld [vmem:[%s2555 + $0x498] sm:$0xff]
    %v2704 = vld [vmem:[%s2555 + $0x4a0] sm:$0xff]
    %v2705 = vld [vmem:[%s2555 + $0x4a8] sm:$0xff]
    %v2706 = vld [vmem:[%s2555 + $0x4b0] sm:$0xff]
    %v2707 = vld [vmem:[%s2555 + $0x4b8] sm:$0xff]
    %v2708 = vld [vmem:[%s2555 + $0x4c0] sm:$0xff]
    %v2709 = vld [vmem:[%s2555 + $0x4c8] sm:$0xff]
    %v2710 = vld [vmem:[%s2555 + $0x4d0] sm:$0xff]
    %v2711 = vld [vmem:[%s2555 + $0x4d8] sm:$0xff]
    %v2712 = vld [vmem:[%s2555 + $0x4e0] sm:$0xff]
    %v2713 = vld [vmem:[%s2555 + $0x4e8] sm:$0xff]
    %v2714 = vld [vmem:[%s2555 + $0x4f0] sm:$0xff]
    %v2715 = vld [vmem:[%s2555 + $0x4f8] sm:$0xff]
    %v2716 = vld [vmem:[%s2555 + $0x500] sm:$0xff]
    %v2717 = vld [vmem:[%s2555 + $0x508] sm:$0xff]
    %v2718 = vld [vmem:[%s2555 + $0x510] sm:$0xff]
    %v2719 = vld [vmem:[%s2555 + $0x518] sm:$0xff]
    %v2720 = vld [vmem:[%s2555 + $0x520] sm:$0xff]
    %v2721 = vld [vmem:[%s2555 + $0x528] sm:$0xff]
    %v2722 = vld [vmem:[%s2555 + $0x530] sm:$0xff]
    %v2723 = vld [vmem:[%s2555 + $0x538] sm:$0xff]
    %v2724 = vld [vmem:[%s2555 + $0x540] sm:$0xff]
    %v2725 = vld [vmem:[%s2555 + $0x548] sm:$0xff]
    %v2726 = vld [vmem:[%s2555 + $0x550] sm:$0xff]
    %v2727 = vld [vmem:[%s2555 + $0x558] sm:$0xff]
    %v2728 = vld [vmem:[%s2555 + $0x560] sm:$0xff]
    %v2729 = vld [vmem:[%s2555 + $0x568] sm:$0xff]
    %v2730 = vld [vmem:[%s2555 + $0x570] sm:$0xff]
    %v2731 = vld [vmem:[%s2555 + $0x578] sm:$0xff]
    %v2732 = vld [vmem:[%s2555 + $0x580] sm:$0xff]
    %v2733 = vld [vmem:[%s2555 + $0x588] sm:$0xff]
    %v2734 = vld [vmem:[%s2555 + $0x590] sm:$0xff]
    %v2735 = vld [vmem:[%s2555 + $0x598] sm:$0xff]
    %v2736 = vld [vmem:[%s2555 + $0x5a0] sm:$0xff]
    %v2737 = vld [vmem:[%s2555 + $0x5a8] sm:$0xff]
    %v2738 = vld [vmem:[%s2555 + $0x5b0] sm:$0xff]
    %v2739 = vld [vmem:[%s2555 + $0x5b8] sm:$0xff]
    %v2740 = vld [vmem:[%s2555 + $0x5c0] sm:$0xff]
    %v2741 = vld [vmem:[%s2555 + $0x5c8] sm:$0xff]
    %v2742 = vld [vmem:[%s2555 + $0x5d0] sm:$0xff]
    %v2743 = vld [vmem:[%s2555 + $0x5d8] sm:$0xff]
    %v2744 = vld [vmem:[%s2555 + $0x5e0] sm:$0xff]
    %v2745 = vld [vmem:[%s2555 + $0x5e8] sm:$0xff]
    %v2746 = vld [vmem:[%s2555 + $0x5f0] sm:$0xff]
    %v2747 = vld [vmem:[%s2555 + $0x5f8] sm:$0xff]
    %s2748 = scalar_lea.vmem [#allocation15], 12
    %v2749 = vld [vmem:[%s2748] sm:$0xff]
    %v2750 = vld [vmem:[%s2748 + $0x8] sm:$0xf]
    %v2753 = vlaneseq
    %v2754 = vshrl.u32 %v2753, 7
    %v2755 = vsub.s32 0, %v2754
    %v2756 = vrot.slane %v2749, %v2755
    %v2757 = vlaneseq
    %v2758 = vshrl.u32 %v2757, 7
    %v2759 = vsub.s32 1, %v2758
    %v2760 = vrot.slane %v2749, %v2759
    %v2761 = vlaneseq
    %v2762 = vshrl.u32 %v2761, 7
    %v2763 = vsub.s32 2, %v2762
    %v2764 = vrot.slane %v2749, %v2763
    %v2765 = vlaneseq
    %v2766 = vshrl.u32 %v2765, 7
    %v2767 = vsub.s32 3, %v2766
    %v2768 = vrot.slane %v2749, %v2767
    %v2769 = vlaneseq
    %v2770 = vshrl.u32 %v2769, 7
    %v2771 = vsub.s32 4, %v2770
    %v2772 = vrot.slane %v2749, %v2771
    %v2773 = vlaneseq
    %v2774 = vshrl.u32 %v2773, 7
    %v2775 = vsub.s32 5, %v2774
    %v2776 = vrot.slane %v2749, %v2775
    %v2777 = vlaneseq
    %v2778 = vshrl.u32 %v2777, 7
    %v2779 = vsub.s32 6, %v2778
    %v2780 = vrot.slane %v2749, %v2779
    %v2781 = vlaneseq
    %v2782 = vshrl.u32 %v2781, 7
    %v2783 = vsub.s32 7, %v2782
    %v2784 = vrot.slane %v2749, %v2783
    %v2785 = vlaneseq
    %v2786 = vshrl.u32 %v2785, 7
    %v2787 = vsub.s32 0, %v2786
    %v2788 = vrot.slane %v2750, %v2787
    %v2789 = vlaneseq
    %v2790 = vshrl.u32 %v2789, 7
    %v2791 = vsub.s32 1, %v2790
    %v2792 = vrot.slane %v2750, %v2791
    %v2793 = vlaneseq
    %v2794 = vshrl.u32 %v2793, 7
    %v2795 = vsub.s32 2, %v2794
    %v2796 = vrot.slane %v2750, %v2795
    %v2797 = vlaneseq
    %v2798 = vshrl.u32 %v2797, 7
    %v2799 = vsub.s32 3, %v2798
    %v2800 = vrot.slane %v2750, %v2799
    %2813 = vmatprep.subr.mxu0 %v2557
    %2814 = vmatpush1.msra.mxu0 %v2556
    %2815 = vmatprep.subr.mxu0 %v2569
    %2816 = vmatpush1.msra.mxu0 %v2568
    %2817 = vmatprep.subr.mxu0 %v2581
    %2818 = vmatpush1.msra.mxu0 %v2580
    %2819 = vmatprep.subr.mxu0 %v2593
    %2820 = vmatpush1.msra.mxu0 %v2592
    %2821 = vmatprep.subr.mxu0 %v2605
    %2822 = vmatpush1.msra.mxu0 %v2604
    %2823 = vmatprep.subr.mxu0 %v2617
    %2824 = vmatpush1.msra.mxu0 %v2616
    %2825 = vmatprep.subr.mxu0 %v2629
    %2826 = vmatpush1.msra.mxu0 %v2628
    %2827 = vmatprep.subr.mxu0 %v2641
    %2828 = vmatpush1.msra.mxu0 %v2640
    %2829 = vmatprep.subr.mxu0 %v2653
    %2830 = vmatpush1.msra.mxu0 %v2652
    %2831 = vmatprep.subr.mxu0 %v2665
    %2832 = vmatpush1.msra.mxu0 %v2664
    %2833 = vmatprep.subr.mxu0 %v2677
    %2834 = vmatpush1.msra.mxu0 %v2676
    %2835 = vmatprep.subr.mxu0 %v2689
    %2836 = vmatpush1.msra.mxu0 %v2688
    %2837 = vmatprep.subr.mxu0 %v2701
    %2838 = vmatpush1.msra.mxu0 %v2700
    %2839 = vmatprep.subr.mxu0 %v2713
    %2840 = vmatpush1.msra.mxu0 %v2712
    %2841 = vmatprep.subr.mxu0 %v2725
    %2842 = vmatpush1.msra.mxu0 %v2724
    %2843 = vmatprep.subr.mxu0 %v2737
    %2844 = vmatpush1.msra.mxu0 %v2736
    %2845 = vmatprep.subr.mxu0 0.0
    %2846 = vmatpush1.msra.mxu0 0.0
    %2847 = vmatprep.subr.mxu0 0.0
    %2848 = vmatpush1.msra.mxu0 0.0
    %2849 = vmatprep.subr.mxu0 0.0
    %2850 = vmatpush1.msra.mxu0 0.0
    %2851 = vmatprep.subr.mxu0 0.0
    %2852 = vmatpush1.msra.mxu0 0.0
    %2853 = vmatprep.subr.mxu0 0.0
    %2854 = vmatpush1.msra.mxu0 0.0
    %2855 = vmatprep.subr.mxu0 0.0
    %2856 = vmatpush1.msra.mxu0 0.0
    %2857 = vmatprep.subr.mxu0 0.0
    %2858 = vmatpush1.msra.mxu0 0.0
    %2859 = vmatprep.subr.mxu0 0.0
    %2860 = vmatpush1.msra.mxu0 0.0
    %2861 = vmatprep.subr.mxu0 0.0
    %2862 = vmatpush1.msra.mxu0 0.0
    %2863 = vmatprep.subr.mxu0 0.0
    %2864 = vmatpush1.msra.mxu0 0.0
    %2865 = vmatprep.subr.mxu0 0.0
    %2866 = vmatpush1.msra.mxu0 0.0
    %2867 = vmatprep.subr.mxu0 0.0
    %2868 = vmatpush1.msra.mxu0 0.0
    %2869 = vmatprep.subr.mxu0 0.0
    %2870 = vmatpush1.msra.mxu0 0.0
    %2871 = vmatprep.subr.mxu0 0.0
    %2872 = vmatpush1.msra.mxu0 0.0
    %2873 = vmatprep.subr.mxu0 0.0
    %2874 = vmatpush1.msra.mxu0 0.0
    %2875 = vmatprep.subr.mxu0 0.0
    %2876 = vmatpush1.msra.mxu0 0.0
    %2877 = vmatprep.mubr.f32.mxu0 0.0
    %2878 = vmatmul.mubr.f32.gmra.mrb[0].mxu0 %v2554
    %v2879 = vpop.f32.mrb[0].mxu0
    %v2880 = vadd.f32 %v2756, %v2879
    %v2881 = vpop.f32.mrb[0].mxu0
    %v2882 = vadd.f32 %v2760, %v2881
    %2883 = vdwg.mxu0
    %2884 = vmatprep.subr.mxu0 %v2559
    %2885 = vmatpush1.msra.mxu0 %v2558
    %2886 = vmatprep.subr.mxu0 %v2571
    %2887 = vmatpush1.msra.mxu0 %v2570
    %2888 = vmatprep.subr.mxu0 %v2583
    %2889 = vmatpush1.msra.mxu0 %v2582
    %2890 = vmatprep.subr.mxu0 %v2595
    %2891 = vmatpush1.msra.mxu0 %v2594
    %2892 = vmatprep.subr.mxu0 %v2607
    %2893 = vmatpush1.msra.mxu0 %v2606
    %2894 = vmatprep.subr.mxu0 %v2619
    %2895 = vmatpush1.msra.mxu0 %v2618
    %2896 = vmatprep.subr.mxu0 %v2631
    %2897 = vmatpush1.msra.mxu0 %v2630
    %2898 = vmatprep.subr.mxu0 %v2643
    %2899 = vmatpush1.msra.mxu0 %v2642
    %2900 = vmatprep.subr.mxu0 %v2655
    %2901 = vmatpush1.msra.mxu0 %v2654
    %2902 = vmatprep.subr.mxu0 %v2667
    %2903 = vmatpush1.msra.mxu0 %v2666
    %2904 = vmatprep.subr.mxu0 %v2679
    %2905 = vmatpush1.msra.mxu0 %v2678
    %2906 = vmatprep.subr.mxu0 %v2691
    %2907 = vmatpush1.msra.mxu0 %v2690
    %2908 = vmatprep.subr.mxu0 %v2703
    %2909 = vmatpush1.msra.mxu0 %v2702
    %2910 = vmatprep.subr.mxu0 %v2715
    %2911 = vmatpush1.msra.mxu0 %v2714
    %2912 = vmatprep.subr.mxu0 %v2727
    %2913 = vmatpush1.msra.mxu0 %v2726
    %2914 = vmatprep.subr.mxu0 %v2739
    %2915 = vmatpush1.msra.mxu0 %v2738
    %2916 = vmatprep.subr.mxu0 0.0
    %2917 = vmatpush1.msra.mxu0 0.0
    %2918 = vmatprep.subr.mxu0 0.0
    %2919 = vmatpush1.msra.mxu0 0.0
    %2920 = vmatprep.subr.mxu0 0.0
    %2921 = vmatpush1.msra.mxu0 0.0
    %2922 = vmatprep.subr.mxu0 0.0
    %2923 = vmatpush1.msra.mxu0 0.0
    %2924 = vmatprep.subr.mxu0 0.0
    %2925 = vmatpush1.msra.mxu0 0.0
    %2926 = vmatprep.subr.mxu0 0.0
    %2927 = vmatpush1.msra.mxu0 0.0
    %2928 = vmatprep.subr.mxu0 0.0
    %2929 = vmatpush1.msra.mxu0 0.0
    %2930 = vmatprep.subr.mxu0 0.0
    %2931 = vmatpush1.msra.mxu0 0.0
    %2932 = vmatprep.subr.mxu0 0.0
    %2933 = vmatpush1.msra.mxu0 0.0
    %2934 = vmatprep.subr.mxu0 0.0
    %2935 = vmatpush1.msra.mxu0 0.0
    %2936 = vmatprep.subr.mxu0 0.0
    %2937 = vmatpush1.msra.mxu0 0.0
    %2938 = vmatprep.subr.mxu0 0.0
    %2939 = vmatpush1.msra.mxu0 0.0
    %2940 = vmatprep.subr.mxu0 0.0
    %2941 = vmatpush1.msra.mxu0 0.0
    %2942 = vmatprep.subr.mxu0 0.0
    %2943 = vmatpush1.msra.mxu0 0.0
    %2944 = vmatprep.subr.mxu0 0.0
    %2945 = vmatpush1.msra.mxu0 0.0
    %2946 = vmatprep.subr.mxu0 0.0
    %2947 = vmatpush1.msra.mxu0 0.0
    %2948 = vmatprep.mubr.f32.mxu0 0.0
    %2949 = vmatmul.mubr.f32.gmra.mrb[0].mxu0 %v2554
    %v2950 = vpop.f32.mrb[0].mxu0
    %v2951 = vadd.f32 %v2764, %v2950
    %v2952 = vpop.f32.mrb[0].mxu0
    %v2953 = vadd.f32 %v2768, %v2952
    %2954 = vdwg.mxu0
    %2955 = vmatprep.subr.mxu0 %v2561
    %2956 = vmatpush1.msra.mxu0 %v2560
    %2957 = vmatprep.subr.mxu0 %v2573
    %2958 = vmatpush1.msra.mxu0 %v2572
    %2959 = vmatprep.subr.mxu0 %v2585
    %2960 = vmatpush1.msra.mxu0 %v2584
    %2961 = vmatprep.subr.mxu0 %v2597
    %2962 = vmatpush1.msra.mxu0 %v2596
    %2963 = vmatprep.subr.mxu0 %v2609
    %2964 = vmatpush1.msra.mxu0 %v2608
    %2965 = vmatprep.subr.mxu0 %v2621
    %2966 = vmatpush1.msra.mxu0 %v2620
    %2967 = vmatprep.subr.mxu0 %v2633
    %2968 = vmatpush1.msra.mxu0 %v2632
    %2969 = vmatprep.subr.mxu0 %v2645
    %2970 = vmatpush1.msra.mxu0 %v2644
    %2971 = vmatprep.subr.mxu0 %v2657
    %2972 = vmatpush1.msra.mxu0 %v2656
    %2973 = vmatprep.subr.mxu0 %v2669
    %2974 = vmatpush1.msra.mxu0 %v2668
    %2975 = vmatprep.subr.mxu0 %v2681
    %2976 = vmatpush1.msra.mxu0 %v2680
    %2977 = vmatprep.subr.mxu0 %v2693
    %2978 = vmatpush1.msra.mxu0 %v2692
    %2979 = vmatprep.subr.mxu0 %v2705
    %2980 = vmatpush1.msra.mxu0 %v2704
    %2981 = vmatprep.subr.mxu0 %v2717
    %2982 = vmatpush1.msra.mxu0 %v2716
    %2983 = vmatprep.subr.mxu0 %v2729
    %2984 = vmatpush1.msra.mxu0 %v2728
    %2985 = vmatprep.subr.mxu0 %v2741
    %2986 = vmatpush1.msra.mxu0 %v2740
    %2987 = vmatprep.subr.mxu0 0.0
    %2988 = vmatpush1.msra.mxu0 0.0
    %2989 = vmatprep.subr.mxu0 0.0
    %2990 = vmatpush1.msra.mxu0 0.0
    %2991 = vmatprep.subr.mxu0 0.0
    %2992 = vmatpush1.msra.mxu0 0.0
    %2993 = vmatprep.subr.mxu0 0.0
    %2994 = vmatpush1.msra.mxu0 0.0
    %2995 = vmatprep.subr.mxu0 0.0
    %2996 = vmatpush1.msra.mxu0 0.0
    %2997 = vmatprep.subr.mxu0 0.0
    %2998 = vmatpush1.msra.mxu0 0.0
    %2999 = vmatprep.subr.mxu0 0.0
    %3000 = vmatpush1.msra.mxu0 0.0
    %3001 = vmatprep.subr.mxu0 0.0
    %3002 = vmatpush1.msra.mxu0 0.0
    %3003 = vmatprep.subr.mxu0 0.0
    %3004 = vmatpush1.msra.mxu0 0.0
    %3005 = vmatprep.subr.mxu0 0.0
    %3006 = vmatpush1.msra.mxu0 0.0
    %3007 = vmatprep.subr.mxu0 0.0
    %3008 = vmatpush1.msra.mxu0 0.0
    %3009 = vmatprep.subr.mxu0 0.0
    %3010 = vmatpush1.msra.mxu0 0.0
    %3011 = vmatprep.subr.mxu0 0.0
    %3012 = vmatpush1.msra.mxu0 0.0
    %3013 = vmatprep.subr.mxu0 0.0
    %3014 = vmatpush1.msra.mxu0 0.0
    %3015 = vmatprep.subr.mxu0 0.0
    %3016 = vmatpush1.msra.mxu0 0.0
    %3017 = vmatprep.subr.mxu0 0.0
    %3018 = vmatpush1.msra.mxu0 0.0
    %3019 = vmatprep.mubr.f32.mxu0 0.0
    %3020 = vmatmul.mubr.f32.gmra.mrb[0].mxu0 %v2554
    %v3021 = vpop.f32.mrb[0].mxu0
    %v3022 = vadd.f32 %v2772, %v3021
    %v3023 = vpop.f32.mrb[0].mxu0
    %v3024 = vadd.f32 %v2776, %v3023
    %3025 = vdwg.mxu0
    %3026 = vmatprep.subr.mxu0 %v2563
    %3027 = vmatpush1.msra.mxu0 %v2562
    %3028 = vmatprep.subr.mxu0 %v2575
    %3029 = vmatpush1.msra.mxu0 %v2574
    %3030 = vmatprep.subr.mxu0 %v2587
    %3031 = vmatpush1.msra.mxu0 %v2586
    %3032 = vmatprep.subr.mxu0 %v2599
    %3033 = vmatpush1.msra.mxu0 %v2598
    %3034 = vmatprep.subr.mxu0 %v2611
    %3035 = vmatpush1.msra.mxu0 %v2610
    %3036 = vmatprep.subr.mxu0 %v2623
    %3037 = vmatpush1.msra.mxu0 %v2622
    %3038 = vmatprep.subr.mxu0 %v2635
    %3039 = vmatpush1.msra.mxu0 %v2634
    %3040 = vmatprep.subr.mxu0 %v2647
    %3041 = vmatpush1.msra.mxu0 %v2646
    %3042 = vmatprep.subr.mxu0 %v2659
    %3043 = vmatpush1.msra.mxu0 %v2658
    %3044 = vmatprep.subr.mxu0 %v2671
    %3045 = vmatpush1.msra.mxu0 %v2670
    %3046 = vmatprep.subr.mxu0 %v2683
    %3047 = vmatpush1.msra.mxu0 %v2682
    %3048 = vmatprep.subr.mxu0 %v2695
    %3049 = vmatpush1.msra.mxu0 %v2694
    %3050 = vmatprep.subr.mxu0 %v2707
    %3051 = vmatpush1.msra.mxu0 %v2706
    %3052 = vmatprep.subr.mxu0 %v2719
    %3053 = vmatpush1.msra.mxu0 %v2718
    %3054 = vmatprep.subr.mxu0 %v2731
    %3055 = vmatpush1.msra.mxu0 %v2730
    %3056 = vmatprep.subr.mxu0 %v2743
    %3057 = vmatpush1.msra.mxu0 %v2742
    %3058 = vmatprep.subr.mxu0 0.0
    %3059 = vmatpush1.msra.mxu0 0.0
    %3060 = vmatprep.subr.mxu0 0.0
    %3061 = vmatpush1.msra.mxu0 0.0
    %3062 = vmatprep.subr.mxu0 0.0
    %3063 = vmatpush1.msra.mxu0 0.0
    %3064 = vmatprep.subr.mxu0 0.0
    %3065 = vmatpush1.msra.mxu0 0.0
    %3066 = vmatprep.subr.mxu0 0.0
    %3067 = vmatpush1.msra.mxu0 0.0
    %3068 = vmatprep.subr.mxu0 0.0
    %3069 = vmatpush1.msra.mxu0 0.0
    %3070 = vmatprep.subr.mxu0 0.0
    %3071 = vmatpush1.msra.mxu0 0.0
    %3072 = vmatprep.subr.mxu0 0.0
    %3073 = vmatpush1.msra.mxu0 0.0
    %3074 = vmatprep.subr.mxu0 0.0
    %3075 = vmatpush1.msra.mxu0 0.0
    %3076 = vmatprep.subr.mxu0 0.0
    %3077 = vmatpush1.msra.mxu0 0.0
    %3078 = vmatprep.subr.mxu0 0.0
    %3079 = vmatpush1.msra.mxu0 0.0
    %3080 = vmatprep.subr.mxu0 0.0
    %3081 = vmatpush1.msra.mxu0 0.0
    %3082 = vmatprep.subr.mxu0 0.0
    %3083 = vmatpush1.msra.mxu0 0.0
    %3084 = vmatprep.subr.mxu0 0.0
    %3085 = vmatpush1.msra.mxu0 0.0
    %3086 = vmatprep.subr.mxu0 0.0
    %3087 = vmatpush1.msra.mxu0 0.0
    %3088 = vmatprep.subr.mxu0 0.0
    %3089 = vmatpush1.msra.mxu0 0.0
    %3090 = vmatprep.mubr.f32.mxu0 0.0
    %3091 = vmatmul.mubr.f32.gmra.mrb[0].mxu0 %v2554
    %v3092 = vpop.f32.mrb[0].mxu0
    %v3093 = vadd.f32 %v2780, %v3092
    %v3094 = vpop.f32.mrb[0].mxu0
    %v3095 = vadd.f32 %v2784, %v3094
    %3096 = vdwg.mxu0
    %3097 = vmatprep.subr.mxu0 %v2565
    %3098 = vmatpush1.msra.mxu0 %v2564
    %3099 = vmatprep.subr.mxu0 %v2577
    %3100 = vmatpush1.msra.mxu0 %v2576
    %3101 = vmatprep.subr.mxu0 %v2589
    %3102 = vmatpush1.msra.mxu0 %v2588
    %3103 = vmatprep.subr.mxu0 %v2601
    %3104 = vmatpush1.msra.mxu0 %v2600
    %3105 = vmatprep.subr.mxu0 %v2613
    %3106 = vmatpush1.msra.mxu0 %v2612
    %3107 = vmatprep.subr.mxu0 %v2625
    %3108 = vmatpush1.msra.mxu0 %v2624
    %3109 = vmatprep.subr.mxu0 %v2637
    %3110 = vmatpush1.msra.mxu0 %v2636
    %3111 = vmatprep.subr.mxu0 %v2649
    %3112 = vmatpush1.msra.mxu0 %v2648
    %3113 = vmatprep.subr.mxu0 %v2661
    %3114 = vmatpush1.msra.mxu0 %v2660
    %3115 = vmatprep.subr.mxu0 %v2673
    %3116 = vmatpush1.msra.mxu0 %v2672
    %3117 = vmatprep.subr.mxu0 %v2685
    %3118 = vmatpush1.msra.mxu0 %v2684
    %3119 = vmatprep.subr.mxu0 %v2697
    %3120 = vmatpush1.msra.mxu0 %v2696
    %3121 = vmatprep.subr.mxu0 %v2709
    %3122 = vmatpush1.msra.mxu0 %v2708
    %3123 = vmatprep.subr.mxu0 %v2721
    %3124 = vmatpush1.msra.mxu0 %v2720
    %3125 = vmatprep.subr.mxu0 %v2733
    %3126 = vmatpush1.msra.mxu0 %v2732
    %3127 = vmatprep.subr.mxu0 %v2745
    %3128 = vmatpush1.msra.mxu0 %v2744
    %3129 = vmatprep.subr.mxu0 0.0
    %3130 = vmatpush1.msra.mxu0 0.0
    %3131 = vmatprep.subr.mxu0 0.0
    %3132 = vmatpush1.msra.mxu0 0.0
    %3133 = vmatprep.subr.mxu0 0.0
    %3134 = vmatpush1.msra.mxu0 0.0
    %3135 = vmatprep.subr.mxu0 0.0
    %3136 = vmatpush1.msra.mxu0 0.0
    %3137 = vmatprep.subr.mxu0 0.0
    %3138 = vmatpush1.msra.mxu0 0.0
    %3139 = vmatprep.subr.mxu0 0.0
    %3140 = vmatpush1.msra.mxu0 0.0
    %3141 = vmatprep.subr.mxu0 0.0
    %3142 = vmatpush1.msra.mxu0 0.0
    %3143 = vmatprep.subr.mxu0 0.0
    %3144 = vmatpush1.msra.mxu0 0.0
    %3145 = vmatprep.subr.mxu0 0.0
    %3146 = vmatpush1.msra.mxu0 0.0
    %3147 = vmatprep.subr.mxu0 0.0
    %3148 = vmatpush1.msra.mxu0 0.0
    %3149 = vmatprep.subr.mxu0 0.0
    %3150 = vmatpush1.msra.mxu0 0.0
    %3151 = vmatprep.subr.mxu0 0.0
    %3152 = vmatpush1.msra.mxu0 0.0
    %3153 = vmatprep.subr.mxu0 0.0
    %3154 = vmatpush1.msra.mxu0 0.0
    %3155 = vmatprep.subr.mxu0 0.0
    %3156 = vmatpush1.msra.mxu0 0.0
    %3157 = vmatprep.subr.mxu0 0.0
    %3158 = vmatpush1.msra.mxu0 0.0
    %3159 = vmatprep.subr.mxu0 0.0
    %3160 = vmatpush1.msra.mxu0 0.0
    %3161 = vmatprep.mubr.f32.mxu0 0.0
    %3162 = vmatmul.mubr.f32.gmra.mrb[0].mxu0 %v2554
    %v3163 = vpop.f32.mrb[0].mxu0
    %v3164 = vadd.f32 %v2788, %v3163
    %v3165 = vpop.f32.mrb[0].mxu0
    %v3166 = vadd.f32 %v2792, %v3165
    %3167 = vdwg.mxu0
    %3168 = vmatprep.subr.mxu0 %v2567
    %3169 = vmatpush1.msra.mxu0 %v2566
    %3170 = vmatprep.subr.mxu0 %v2579
    %3171 = vmatpush1.msra.mxu0 %v2578
    %3172 = vmatprep.subr.mxu0 %v2591
    %3173 = vmatpush1.msra.mxu0 %v2590
    %3174 = vmatprep.subr.mxu0 %v2603
    %3175 = vmatpush1.msra.mxu0 %v2602
    %3176 = vmatprep.subr.mxu0 %v2615
    %3177 = vmatpush1.msra.mxu0 %v2614
    %3178 = vmatprep.subr.mxu0 %v2627
    %3179 = vmatpush1.msra.mxu0 %v2626
    %3180 = vmatprep.subr.mxu0 %v2639
    %3181 = vmatpush1.msra.mxu0 %v2638
    %3182 = vmatprep.subr.mxu0 %v2651
    %3183 = vmatpush1.msra.mxu0 %v2650
    %3184 = vmatprep.subr.mxu0 %v2663
    %3185 = vmatpush1.msra.mxu0 %v2662
    %3186 = vmatprep.subr.mxu0 %v2675
    %3187 = vmatpush1.msra.mxu0 %v2674
    %3188 = vmatprep.subr.mxu0 %v2687
    %3189 = vmatpush1.msra.mxu0 %v2686
    %3190 = vmatprep.subr.mxu0 %v2699
    %3191 = vmatpush1.msra.mxu0 %v2698
    %3192 = vmatprep.subr.mxu0 %v2711
    %3193 = vmatpush1.msra.mxu0 %v2710
    %3194 = vmatprep.subr.mxu0 %v2723
    %3195 = vmatpush1.msra.mxu0 %v2722
    %3196 = vmatprep.subr.mxu0 %v2735
    %3197 = vmatpush1.msra.mxu0 %v2734
    %3198 = vmatprep.subr.mxu0 %v2747
    %3199 = vmatpush1.msra.mxu0 %v2746
    %3200 = vmatprep.subr.mxu0 0.0
    %3201 = vmatpush1.msra.mxu0 0.0
    %3202 = vmatprep.subr.mxu0 0.0
    %3203 = vmatpush1.msra.mxu0 0.0
    %3204 = vmatprep.subr.mxu0 0.0
    %3205 = vmatpush1.msra.mxu0 0.0
    %3206 = vmatprep.subr.mxu0 0.0
    %3207 = vmatpush1.msra.mxu0 0.0
    %3208 = vmatprep.subr.mxu0 0.0
    %3209 = vmatpush1.msra.mxu0 0.0
    %3210 = vmatprep.subr.mxu0 0.0
    %3211 = vmatpush1.msra.mxu0 0.0
    %3212 = vmatprep.subr.mxu0 0.0
    %3213 = vmatpush1.msra.mxu0 0.0
    %3214 = vmatprep.subr.mxu0 0.0
    %3215 = vmatpush1.msra.mxu0 0.0
    %3216 = vmatprep.subr.mxu0 0.0
    %3217 = vmatpush1.msra.mxu0 0.0
    %3218 = vmatprep.subr.mxu0 0.0
    %3219 = vmatpush1.msra.mxu0 0.0
    %3220 = vmatprep.subr.mxu0 0.0
    %3221 = vmatpush1.msra.mxu0 0.0
    %3222 = vmatprep.subr.mxu0 0.0
    %3223 = vmatpush1.msra.mxu0 0.0
    %3224 = vmatprep.subr.mxu0 0.0
    %3225 = vmatpush1.msra.mxu0 0.0
    %3226 = vmatprep.subr.mxu0 0.0
    %3227 = vmatpush1.msra.mxu0 0.0
    %3228 = vmatprep.subr.mxu0 0.0
    %3229 = vmatpush1.msra.mxu0 0.0
    %3230 = vmatprep.subr.mxu0 0.0
    %3231 = vmatpush1.msra.mxu0 0.0
    %3232 = vmatprep.mubr.f32.mxu0 0.0
    %3233 = vmatmul.mubr.f32.gmra.mrb[0].mxu0 %v2554
    %v3234 = vpop.f32.mrb[0].mxu0
    %v3235 = vadd.f32 %v2796, %v3234
    %v3236 = vpop.f32.mrb[0].mxu0
    %v3237 = vadd.f32 %v2800, %v3236
    %3238 = vdwg.mxu0
    %3239 = vmatprep.subr.mxu0 0.0
    %3240 = vmatpush1.xpose.msra.mxu0 %v2882
    %3241 = vmatprep.subr.mxu0 0.0
    %3242 = vmatpush1.xpose.msra.mxu0 0.0
    %3243 = vmatprep.subr.mxu0 0.0
    %3244 = vmatpush1.xpose.msra.mxu0 0.0
    %3245 = vmatprep.subr.mxu0 0.0
    %3246 = vmatpush1.xpose.msra.mxu0 0.0
    %3247 = vmatprep.subr.mxu0 0.0
    %3248 = vmatpush1.xpose.msra.mxu0 0.0
    %3249 = vmatprep.subr.mxu0 0.0
    %3250 = vmatpush1.xpose.msra.mxu0 0.0
    %3251 = vmatprep.subr.mxu0 0.0
    %3252 = vmatpush1.xpose.msra.mxu0 0.0
    %3253 = vmatprep.subr.mxu0 0.0
    %3254 = vmatpush1.xpose.msra.mxu0 0.0
    %3255 = vmatprep.subr.mxu0 0.0
    %3256 = vmatpush1.xpose.msra.mxu0 0.0
    %3257 = vmatprep.subr.mxu0 0.0
    %3258 = vmatpush1.xpose.msra.mxu0 0.0
    %3259 = vmatprep.subr.mxu0 0.0
    %3260 = vmatpush1.xpose.msra.mxu0 0.0
    %3261 = vmatprep.subr.mxu0 0.0
    %3262 = vmatpush1.xpose.msra.mxu0 0.0
    %3263 = vmatprep.subr.mxu0 0.0
    %3264 = vmatpush1.xpose.msra.mxu0 0.0
    %3265 = vmatprep.subr.mxu0 0.0
    %3266 = vmatpush1.xpose.msra.mxu0 0.0
    %3267 = vmatprep.subr.mxu0 0.0
    %3268 = vmatpush1.xpose.msra.mxu0 0.0
    %3269 = vmatprep.subr.mxu0 0.0
    %3270 = vmatpush1.xpose.msra.mxu0 0.0
    %3271 = vmatprep.subr.mxu0 0.0
    %3272 = vmatpush1.xpose.msra.mxu0 0.0
    %3273 = vmatprep.subr.mxu0 0.0
    %3274 = vmatpush1.xpose.msra.mxu0 0.0
    %3275 = vmatprep.subr.mxu0 0.0
    %3276 = vmatpush1.xpose.msra.mxu0 0.0
    %3277 = vmatprep.subr.mxu0 0.0
    %3278 = vmatpush1.xpose.msra.mxu0 0.0
    %3279 = vmatprep.subr.mxu0 0.0
    %3280 = vmatpush1.xpose.msra.mxu0 0.0
    %3281 = vmatprep.subr.mxu0 0.0
    %3282 = vmatpush1.xpose.msra.mxu0 0.0
    %3283 = vmatprep.subr.mxu0 0.0
    %3284 = vmatpush1.xpose.msra.mxu0 0.0
    %3285 = vmatprep.subr.mxu0 0.0
    %3286 = vmatpush1.xpose.msra.mxu0 0.0
    %3287 = vmatprep.subr.mxu0 0.0
    %3288 = vmatpush1.xpose.msra.mxu0 0.0
    %3289 = vmatprep.subr.mxu0 0.0
    %3290 = vmatpush1.xpose.msra.mxu0 0.0
    %3291 = vmatprep.subr.mxu0 0.0
    %3292 = vmatpush1.xpose.msra.mxu0 0.0
    %3293 = vmatprep.subr.mxu0 0.0
    %3294 = vmatpush1.xpose.msra.mxu0 0.0
    %3295 = vmatprep.subr.mxu0 0.0
    %3296 = vmatpush1.xpose.msra.mxu0 0.0
    %3297 = vmatprep.subr.mxu0 0.0
    %3298 = vmatpush1.xpose.msra.mxu0 0.0
    %3299 = vmatprep.subr.mxu0 0.0
    %3300 = vmatpush1.xpose.msra.mxu0 0.0
    %3301 = vmatprep.subr.mxu0 0.0
    %3302 = vmatpush1.xpose.msra.mxu0 0.0
    %3303 = vmatprep.mubr.f32.mxu0 0.0
    %3304 = vmatmul.mubr.f32.gmra.mrb[0].mxu0 %v2880
    %v3305 = vpop.f32.mrb[0].mxu0
    %v3306 = vadd.f32 %v635, %v3305
    %v3307 = vpop.f32.mrb[0].mxu0
    %3308 = vdwg.mxu0
    %v3309 = vsel %vm1388, %v3306, -inf
    %3310 = vmax.xlane.f32.xlu0 %v3309
    %v3311 = vpop.xlane.xlu0 %3310
    %v3312 = vsub.f32 %v3306, %v3311
    %v3313 = vmul.f32 %v3312, 1.442695
    %v3314 = vpow.pop %v3313
    %v3315 = vsel %vm1388, %v3314, 0.0
    %3316 = vadd.xlane.f32.xlu0 %v3315
    %v3317 = vpop.xlane.xlu0 %3316
    %v3318 = vrcp.pop %v3317
    %v3319 = vmul.f32 %v3314, %v3318
    %v3321 = vsel %vm1400, %v3319, 0
    %v3324 = vsel %vm1404, %v2951, 0
    %3326 = vmatprep.subr.mxu0 0.0
    %3327 = vmatpush1.msra.mxu0 %v3324
    %3328 = vmatprep.subr.mxu0 0.0
    %3329 = vmatpush1.msra.mxu0 0.0
    %3330 = vmatprep.subr.mxu0 0.0
    %3331 = vmatpush1.msra.mxu0 0.0
    %3332 = vmatprep.subr.mxu0 0.0
    %3333 = vmatpush1.msra.mxu0 0.0
    %3334 = vmatprep.subr.mxu0 0.0
    %3335 = vmatpush1.msra.mxu0 0.0
    %3336 = vmatprep.subr.mxu0 0.0
    %3337 = vmatpush1.msra.mxu0 0.0
    %3338 = vmatprep.subr.mxu0 0.0
    %3339 = vmatpush1.msra.mxu0 0.0
    %3340 = vmatprep.subr.mxu0 0.0
    %3341 = vmatpush1.msra.mxu0 0.0
    %3342 = vmatprep.subr.mxu0 0.0
    %3343 = vmatpush1.msra.mxu0 0.0
    %3344 = vmatprep.subr.mxu0 0.0
    %3345 = vmatpush1.msra.mxu0 0.0
    %3346 = vmatprep.subr.mxu0 0.0
    %3347 = vmatpush1.msra.mxu0 0.0
    %3348 = vmatprep.subr.mxu0 0.0
    %3349 = vmatpush1.msra.mxu0 0.0
    %3350 = vmatprep.subr.mxu0 0.0
    %3351 = vmatpush1.msra.mxu0 0.0
    %3352 = vmatprep.subr.mxu0 0.0
    %3353 = vmatpush1.msra.mxu0 0.0
    %3354 = vmatprep.subr.mxu0 0.0
    %3355 = vmatpush1.msra.mxu0 0.0
    %3356 = vmatprep.subr.mxu0 0.0
    %3357 = vmatpush1.msra.mxu0 0.0
    %3358 = vmatprep.subr.mxu0 0.0
    %3359 = vmatpush1.msra.mxu0 0.0
    %3360 = vmatprep.subr.mxu0 0.0
    %3361 = vmatpush1.msra.mxu0 0.0
    %3362 = vmatprep.subr.mxu0 0.0
    %3363 = vmatpush1.msra.mxu0 0.0
    %3364 = vmatprep.subr.mxu0 0.0
    %3365 = vmatpush1.msra.mxu0 0.0
    %3366 = vmatprep.subr.mxu0 0.0
    %3367 = vmatpush1.msra.mxu0 0.0
    %3368 = vmatprep.subr.mxu0 0.0
    %3369 = vmatpush1.msra.mxu0 0.0
    %3370 = vmatprep.subr.mxu0 0.0
    %3371 = vmatpush1.msra.mxu0 0.0
    %3372 = vmatprep.subr.mxu0 0.0
    %3373 = vmatpush1.msra.mxu0 0.0
    %3374 = vmatprep.subr.mxu0 0.0
    %3375 = vmatpush1.msra.mxu0 0.0
    %3376 = vmatprep.subr.mxu0 0.0
    %3377 = vmatpush1.msra.mxu0 0.0
    %3378 = vmatprep.subr.mxu0 0.0
    %3379 = vmatpush1.msra.mxu0 0.0
    %3380 = vmatprep.subr.mxu0 0.0
    %3381 = vmatpush1.msra.mxu0 0.0
    %3382 = vmatprep.subr.mxu0 0.0
    %3383 = vmatpush1.msra.mxu0 0.0
    %3384 = vmatprep.subr.mxu0 0.0
    %3385 = vmatpush1.msra.mxu0 0.0
    %3386 = vmatprep.subr.mxu0 0.0
    %3387 = vmatpush1.msra.mxu0 0.0
    %3388 = vmatprep.subr.mxu0 0.0
    %3389 = vmatpush1.msra.mxu0 0.0
    %3390 = vmatprep.mubr.f32.mxu0 0.0
    %3391 = vmatmul.mubr.f32.gmra.mrb[0].mxu0 %v3321
    %v3392 = vpop.f32.mrb[0].mxu0
    %v3393 = vadd.f32 0.0, %v3392
    %v3394 = vpop.f32.mrb[0].mxu0
    %3395 = vdwg.mxu0
    %s3396 = scalar_lea.vmem [#allocation16], 512
    %v3397 = vld [vmem:[%s3396] sm:$0xff]
    %v3398 = vld [vmem:[%s3396 + $0x8] sm:$0xff]
    %v3399 = vld [vmem:[%s3396 + $0x10] sm:$0xff]
    %v3400 = vld [vmem:[%s3396 + $0x18] sm:$0xff]
    %v3401 = vld [vmem:[%s3396 + $0x20] sm:$0xff]
    %v3402 = vld [vmem:[%s3396 + $0x28] sm:$0xff]
    %v3403 = vld [vmem:[%s3396 + $0x30] sm:$0xff]
    %v3404 = vld [vmem:[%s3396 + $0x38] sm:$0xff]
    %v3405 = vld [vmem:[%s3396 + $0x40] sm:$0xff]
    %v3406 = vld [vmem:[%s3396 + $0x48] sm:$0xff]
    %v3407 = vld [vmem:[%s3396 + $0x50] sm:$0xff]
    %v3408 = vld [vmem:[%s3396 + $0x58] sm:$0xff]
    %v3409 = vld [vmem:[%s3396 + $0x60] sm:$0xff]
    %v3410 = vld [vmem:[%s3396 + $0x68] sm:$0xff]
    %v3411 = vld [vmem:[%s3396 + $0x70] sm:$0xff]
    %v3412 = vld [vmem:[%s3396 + $0x78] sm:$0xff]
    %3413 = vmatprep.subr.mxu0 0.0
    %3414 = vmatpush1.xpose.msra.mxu0 %v3022
    %3415 = vmatprep.subr.mxu0 0.0
    %3416 = vmatpush1.xpose.msra.mxu0 0.0
    %3417 = vmatprep.subr.mxu0 0.0
    %3418 = vmatpush1.xpose.msra.mxu0 0.0
    %3419 = vmatprep.subr.mxu0 0.0
    %3420 = vmatpush1.xpose.msra.mxu0 0.0
    %3421 = vmatprep.subr.mxu0 0.0
    %3422 = vmatpush1.xpose.msra.mxu0 0.0
    %3423 = vmatprep.subr.mxu0 0.0
    %3424 = vmatpush1.xpose.msra.mxu0 0.0
    %3425 = vmatprep.subr.mxu0 0.0
    %3426 = vmatpush1.xpose.msra.mxu0 0.0
    %3427 = vmatprep.subr.mxu0 0.0
    %3428 = vmatpush1.xpose.msra.mxu0 0.0
    %3429 = vmatprep.subr.mxu0 0.0
    %3430 = vmatpush1.xpose.msra.mxu0 0.0
    %3431 = vmatprep.subr.mxu0 0.0
    %3432 = vmatpush1.xpose.msra.mxu0 0.0
    %3433 = vmatprep.subr.mxu0 0.0
    %3434 = vmatpush1.xpose.msra.mxu0 0.0
    %3435 = vmatprep.subr.mxu0 0.0
    %3436 = vmatpush1.xpose.msra.mxu0 0.0
    %3437 = vmatprep.subr.mxu0 0.0
    %3438 = vmatpush1.xpose.msra.mxu0 0.0
    %3439 = vmatprep.subr.mxu0 0.0
    %3440 = vmatpush1.xpose.msra.mxu0 0.0
    %3441 = vmatprep.subr.mxu0 0.0
    %3442 = vmatpush1.xpose.msra.mxu0 0.0
    %3443 = vmatprep.subr.mxu0 0.0
    %3444 = vmatpush1.xpose.msra.mxu0 0.0
    %3445 = vmatprep.subr.mxu0 0.0
    %3446 = vmatpush1.xpose.msra.mxu0 0.0
    %3447 = vmatprep.subr.mxu0 0.0
    %3448 = vmatpush1.xpose.msra.mxu0 0.0
    %3449 = vmatprep.subr.mxu0 0.0
    %3450 = vmatpush1.xpose.msra.mxu0 0.0
    %3451 = vmatprep.subr.mxu0 0.0
    %3452 = vmatpush1.xpose.msra.mxu0 0.0
    %3453 = vmatprep.subr.mxu0 0.0
    %3454 = vmatpush1.xpose.msra.mxu0 0.0
    %3455 = vmatprep.subr.mxu0 0.0
    %3456 = vmatpush1.xpose.msra.mxu0 0.0
    %3457 = vmatprep.subr.mxu0 0.0
    %3458 = vmatpush1.xpose.msra.mxu0 0.0
    %3459 = vmatprep.subr.mxu0 0.0
    %3460 = vmatpush1.xpose.msra.mxu0 0.0
    %3461 = vmatprep.subr.mxu0 0.0
    %3462 = vmatpush1.xpose.msra.mxu0 0.0
    %3463 = vmatprep.subr.mxu0 0.0
    %3464 = vmatpush1.xpose.msra.mxu0 0.0
    %3465 = vmatprep.subr.mxu0 0.0
    %3466 = vmatpush1.xpose.msra.mxu0 0.0
    %3467 = vmatprep.subr.mxu0 0.0
    %3468 = vmatpush1.xpose.msra.mxu0 0.0
    %3469 = vmatprep.subr.mxu0 0.0
    %3470 = vmatpush1.xpose.msra.mxu0 0.0
    %3471 = vmatprep.subr.mxu0 0.0
    %3472 = vmatpush1.xpose.msra.mxu0 0.0
    %3473 = vmatprep.subr.mxu0 0.0
    %3474 = vmatpush1.xpose.msra.mxu0 0.0
    %3475 = vmatprep.subr.mxu0 0.0
    %3476 = vmatpush1.xpose.msra.mxu0 0.0
    %3477 = vmatprep.mubr.f32.mxu0 0.0
    %3478 = vmatmul.mubr.f32.gmra.mrb[0].mxu0 %v2953
    %v3479 = vpop.f32.mrb[0].mxu0
    %v3480 = vadd.f32 %v635, %v3479
    %v3481 = vpop.f32.mrb[0].mxu0
    %3482 = vdwg.mxu0
    %v3483 = vsel %vm1388, %v3480, -inf
    %3484 = vmax.xlane.f32.xlu0 %v3483
    %v3485 = vpop.xlane.xlu0 %3484
    %v3486 = vsub.f32 %v3480, %v3485
    %v3487 = vmul.f32 %v3486, 1.442695
    %v3488 = vpow.pop %v3487
    %v3489 = vsel %vm1388, %v3488, 0.0
    %3490 = vadd.xlane.f32.xlu0 %v3489
    %v3491 = vpop.xlane.xlu0 %3490
    %v3492 = vrcp.pop %v3491
    %v3493 = vmul.f32 %v3488, %v3492
    %v3495 = vsel %vm1400, %v3493, 0
    %v3498 = vsel %vm1404, %v3024, 0
    %3500 = vmatprep.subr.mxu0 0.0
    %3501 = vmatpush1.msra.mxu0 %v3498
    %3502 = vmatprep.subr.mxu0 0.0
    %3503 = vmatpush1.msra.mxu0 0.0
    %3504 = vmatprep.subr.mxu0 0.0
    %3505 = vmatpush1.msra.mxu0 0.0
    %3506 = vmatprep.subr.mxu0 0.0
    %3507 = vmatpush1.msra.mxu0 0.0
    %3508 = vmatprep.subr.mxu0 0.0
    %3509 = vmatpush1.msra.mxu0 0.0
    %3510 = vmatprep.subr.mxu0 0.0
    %3511 = vmatpush1.msra.mxu0 0.0
    %3512 = vmatprep.subr.mxu0 0.0
    %3513 = vmatpush1.msra.mxu0 0.0
    %3514 = vmatprep.subr.mxu0 0.0
    %3515 = vmatpush1.msra.mxu0 0.0
    %3516 = vmatprep.subr.mxu0 0.0
    %3517 = vmatpush1.msra.mxu0 0.0
    %3518 = vmatprep.subr.mxu0 0.0
    %3519 = vmatpush1.msra.mxu0 0.0
    %3520 = vmatprep.subr.mxu0 0.0
    %3521 = vmatpush1.msra.mxu0 0.0
    %3522 = vmatprep.subr.mxu0 0.0
    %3523 = vmatpush1.msra.mxu0 0.0
    %3524 = vmatprep.subr.mxu0 0.0
    %3525 = vmatpush1.msra.mxu0 0.0
    %3526 = vmatprep.subr.mxu0 0.0
    %3527 = vmatpush1.msra.mxu0 0.0
    %3528 = vmatprep.subr.mxu0 0.0
    %3529 = vmatpush1.msra.mxu0 0.0
    %3530 = vmatprep.subr.mxu0 0.0
    %3531 = vmatpush1.msra.mxu0 0.0
    %3532 = vmatprep.subr.mxu0 0.0
    %3533 = vmatpush1.msra.mxu0 0.0
    %3534 = vmatprep.subr.mxu0 0.0
    %3535 = vmatpush1.msra.mxu0 0.0
    %3536 = vmatprep.subr.mxu0 0.0
    %3537 = vmatpush1.msra.mxu0 0.0
    %3538 = vmatprep.subr.mxu0 0.0
    %3539 = vmatpush1.msra.mxu0 0.0
    %3540 = vmatprep.subr.mxu0 0.0
    %3541 = vmatpush1.msra.mxu0 0.0
    %3542 = vmatprep.subr.mxu0 0.0
    %3543 = vmatpush1.msra.mxu0 0.0
    %3544 = vmatprep.subr.mxu0 0.0
    %3545 = vmatpush1.msra.mxu0 0.0
    %3546 = vmatprep.subr.mxu0 0.0
    %3547 = vmatpush1.msra.mxu0 0.0
    %3548 = vmatprep.subr.mxu0 0.0
    %3549 = vmatpush1.msra.mxu0 0.0
    %3550 = vmatprep.subr.mxu0 0.0
    %3551 = vmatpush1.msra.mxu0 0.0
    %3552 = vmatprep.subr.mxu0 0.0
    %3553 = vmatpush1.msra.mxu0 0.0
    %3554 = vmatprep.subr.mxu0 0.0
    %3555 = vmatpush1.msra.mxu0 0.0
    %3556 = vmatprep.subr.mxu0 0.0
    %3557 = vmatpush1.msra.mxu0 0.0
    %3558 = vmatprep.subr.mxu0 0.0
    %3559 = vmatpush1.msra.mxu0 0.0
    %3560 = vmatprep.subr.mxu0 0.0
    %3561 = vmatpush1.msra.mxu0 0.0
    %3562 = vmatprep.subr.mxu0 0.0
    %3563 = vmatpush1.msra.mxu0 0.0
    %3564 = vmatprep.mubr.f32.mxu0 0.0
    %3565 = vmatmul.mubr.f32.gmra.mrb[0].mxu0 %v3495
    %v3566 = vpop.f32.mrb[0].mxu0
    %v3567 = vadd.f32 0.0, %v3566
    %v3568 = vpop.f32.mrb[0].mxu0
    %3569 = vdwg.mxu0
    %s3570 = scalar_lea.vmem [#allocation16], 640
    %v3571 = vld [vmem:[%s3570] sm:$0xff]
    %v3572 = vld [vmem:[%s3570 + $0x8] sm:$0xff]
    %v3573 = vld [vmem:[%s3570 + $0x10] sm:$0xff]
    %v3574 = vld [vmem:[%s3570 + $0x18] sm:$0xff]
    %v3575 = vld [vmem:[%s3570 + $0x20] sm:$0xff]
    %v3576 = vld [vmem:[%s3570 + $0x28] sm:$0xff]
    %v3577 = vld [vmem:[%s3570 + $0x30] sm:$0xff]
    %v3578 = vld [vmem:[%s3570 + $0x38] sm:$0xff]
    %v3579 = vld [vmem:[%s3570 + $0x40] sm:$0xff]
    %v3580 = vld [vmem:[%s3570 + $0x48] sm:$0xff]
    %v3581 = vld [vmem:[%s3570 + $0x50] sm:$0xff]
    %v3582 = vld [vmem:[%s3570 + $0x58] sm:$0xff]
    %v3583 = vld [vmem:[%s3570 + $0x60] sm:$0xff]
    %v3584 = vld [vmem:[%s3570 + $0x68] sm:$0xff]
    %v3585 = vld [vmem:[%s3570 + $0x70] sm:$0xff]
    %v3586 = vld [vmem:[%s3570 + $0x78] sm:$0xff]
    %3587 = vmatprep.subr.mxu0 0.0
    %3588 = vmatpush1.msra.mxu0 %v3571
    %3589 = vmatprep.subr.mxu0 0.0
    %3590 = vmatpush1.msra.mxu0 %v3572
    %3591 = vmatprep.subr.mxu0 0.0
    %3592 = vmatpush1.msra.mxu0 %v3573
    %3593 = vmatprep.subr.mxu0 0.0
    %3594 = vmatpush1.msra.mxu0 %v3574
    %3595 = vmatprep.subr.mxu0 0.0
    %3596 = vmatpush1.msra.mxu0 %v3575
    %3597 = vmatprep.subr.mxu0 0.0
    %3598 = vmatpush1.msra.mxu0 %v3576
    %3599 = vmatprep.subr.mxu0 0.0
    %3600 = vmatpush1.msra.mxu0 %v3577
    %3601 = vmatprep.subr.mxu0 0.0
    %3602 = vmatpush1.msra.mxu0 %v3578
    %3603 = vmatprep.subr.mxu0 0.0
    %3604 = vmatpush1.msra.mxu0 %v3579
    %3605 = vmatprep.subr.mxu0 0.0
    %3606 = vmatpush1.msra.mxu0 %v3580
    %3607 = vmatprep.subr.mxu0 0.0
    %3608 = vmatpush1.msra.mxu0 %v3581
    %3609 = vmatprep.subr.mxu0 0.0
    %3610 = vmatpush1.msra.mxu0 %v3582
    %3611 = vmatprep.subr.mxu0 0.0
    %3612 = vmatpush1.msra.mxu0 %v3583
    %3613 = vmatprep.subr.mxu0 0.0
    %3614 = vmatpush1.msra.mxu0 %v3584
    %3615 = vmatprep.subr.mxu0 0.0
    %3616 = vmatpush1.msra.mxu0 %v3585
    %3617 = vmatprep.subr.mxu0 0.0
    %3618 = vmatpush1.msra.mxu0 %v3586
    %3619 = vmatprep.subr.mxu0 0.0
    %3620 = vmatpush1.msra.mxu0 0.0
    %3621 = vmatprep.subr.mxu0 0.0
    %3622 = vmatpush1.msra.mxu0 0.0
    %3623 = vmatprep.subr.mxu0 0.0
    %3624 = vmatpush1.msra.mxu0 0.0
    %3625 = vmatprep.subr.mxu0 0.0
    %3626 = vmatpush1.msra.mxu0 0.0
    %3627 = vmatprep.subr.mxu0 0.0
    %3628 = vmatpush1.msra.mxu0 0.0
    %3629 = vmatprep.subr.mxu0 0.0
    %3630 = vmatpush1.msra.mxu0 0.0
    %3631 = vmatprep.subr.mxu0 0.0
    %3632 = vmatpush1.msra.mxu0 0.0
    %3633 = vmatprep.subr.mxu0 0.0
    %3634 = vmatpush1.msra.mxu0 0.0
    %3635 = vmatprep.subr.mxu0 0.0
    %3636 = vmatpush1.msra.mxu0 0.0
    %3637 = vmatprep.subr.mxu0 0.0
    %3638 = vmatpush1.msra.mxu0 0.0
    %3639 = vmatprep.subr.mxu0 0.0
    %3640 = vmatpush1.msra.mxu0 0.0
    %3641 = vmatprep.subr.mxu0 0.0
    %3642 = vmatpush1.msra.mxu0 0.0
    %3643 = vmatprep.subr.mxu0 0.0
    %3644 = vmatpush1.msra.mxu0 0.0
    %3645 = vmatprep.subr.mxu0 0.0
    %3646 = vmatpush1.msra.mxu0 0.0
    %3647 = vmatprep.subr.mxu0 0.0
    %3648 = vmatpush1.msra.mxu0 0.0
    %3649 = vmatprep.subr.mxu0 0.0
    %3650 = vmatpush1.msra.mxu0 0.0
    %3651 = vmatprep.mubr.f32.mxu0 0.0
    %3652 = vmatmul.mubr.f32.gmra.mrb[0].mxu0 %v3567
    %v3653 = vpop.f32.mrb[0].mxu0
    %v3654 = vadd.f32 0.0, %v3653
    %v3655 = vpop.f32.mrb[0].mxu0
    %3656 = vdwg.mxu0
    %3657 = vmatprep.subr.mxu0 0.0
    %3658 = vmatpush1.msra.mxu0 %v3397
    %3659 = vmatprep.subr.mxu0 0.0
    %3660 = vmatpush1.msra.mxu0 %v3398
    %3661 = vmatprep.subr.mxu0 0.0
    %3662 = vmatpush1.msra.mxu0 %v3399
    %3663 = vmatprep.subr.mxu0 0.0
    %3664 = vmatpush1.msra.mxu0 %v3400
    %3665 = vmatprep.subr.mxu0 0.0
    %3666 = vmatpush1.msra.mxu0 %v3401
    %3667 = vmatprep.subr.mxu0 0.0
    %3668 = vmatpush1.msra.mxu0 %v3402
    %3669 = vmatprep.subr.mxu0 0.0
    %3670 = vmatpush1.msra.mxu0 %v3403
    %3671 = vmatprep.subr.mxu0 0.0
    %3672 = vmatpush1.msra.mxu0 %v3404
    %3673 = vmatprep.subr.mxu0 0.0
    %3674 = vmatpush1.msra.mxu0 %v3405
    %3675 = vmatprep.subr.mxu0 0.0
    %3676 = vmatpush1.msra.mxu0 %v3406
    %3677 = vmatprep.subr.mxu0 0.0
    %3678 = vmatpush1.msra.mxu0 %v3407
    %3679 = vmatprep.subr.mxu0 0.0
    %3680 = vmatpush1.msra.mxu0 %v3408
    %3681 = vmatprep.subr.mxu0 0.0
    %3682 = vmatpush1.msra.mxu0 %v3409
    %3683 = vmatprep.subr.mxu0 0.0
    %3684 = vmatpush1.msra.mxu0 %v3410
    %3685 = vmatprep.subr.mxu0 0.0
    %3686 = vmatpush1.msra.mxu0 %v3411
    %3687 = vmatprep.subr.mxu0 0.0
    %3688 = vmatpush1.msra.mxu0 %v3412
    %3689 = vmatprep.subr.mxu0 0.0
    %3690 = vmatpush1.msra.mxu0 0.0
    %3691 = vmatprep.subr.mxu0 0.0
    %3692 = vmatpush1.msra.mxu0 0.0
    %3693 = vmatprep.subr.mxu0 0.0
    %3694 = vmatpush1.msra.mxu0 0.0
    %3695 = vmatprep.subr.mxu0 0.0
    %3696 = vmatpush1.msra.mxu0 0.0
    %3697 = vmatprep.subr.mxu0 0.0
    %3698 = vmatpush1.msra.mxu0 0.0
    %3699 = vmatprep.subr.mxu0 0.0
    %3700 = vmatpush1.msra.mxu0 0.0
    %3701 = vmatprep.subr.mxu0 0.0
    %3702 = vmatpush1.msra.mxu0 0.0
    %3703 = vmatprep.subr.mxu0 0.0
    %3704 = vmatpush1.msra.mxu0 0.0
    %3705 = vmatprep.subr.mxu0 0.0
    %3706 = vmatpush1.msra.mxu0 0.0
    %3707 = vmatprep.subr.mxu0 0.0
    %3708 = vmatpush1.msra.mxu0 0.0
    %3709 = vmatprep.subr.mxu0 0.0
    %3710 = vmatpush1.msra.mxu0 0.0
    %3711 = vmatprep.subr.mxu0 0.0
    %3712 = vmatpush1.msra.mxu0 0.0
    %3713 = vmatprep.subr.mxu0 0.0
    %3714 = vmatpush1.msra.mxu0 0.0
    %3715 = vmatprep.subr.mxu0 0.0
    %3716 = vmatpush1.msra.mxu0 0.0
    %3717 = vmatprep.subr.mxu0 0.0
    %3718 = vmatpush1.msra.mxu0 0.0
    %3719 = vmatprep.subr.mxu0 0.0
    %3720 = vmatpush1.msra.mxu0 0.0
    %3721 = vmatprep.mubr.f32.mxu0 0.0
    %3722 = vmatmul.mubr.f32.gmra.mrb[0].mxu0 %v3393
    %v3723 = vpop.f32.mrb[0].mxu0
    %v3724 = vadd.f32 %v3654, %v3723
    %v3725 = vpop.f32.mrb[0].mxu0
    %3726 = vdwg.mxu0
    %3727 = vmatprep.subr.mxu0 0.0
    %3728 = vmatpush1.xpose.msra.mxu0 %v3095
    %3729 = vmatprep.subr.mxu0 0.0
    %3730 = vmatpush1.xpose.msra.mxu0 0.0
    %3731 = vmatprep.subr.mxu0 0.0
    %3732 = vmatpush1.xpose.msra.mxu0 0.0
    %3733 = vmatprep.subr.mxu0 0.0
    %3734 = vmatpush1.xpose.msra.mxu0 0.0
    %3735 = vmatprep.subr.mxu0 0.0
    %3736 = vmatpush1.xpose.msra.mxu0 0.0
    %3737 = vmatprep.subr.mxu0 0.0
    %3738 = vmatpush1.xpose.msra.mxu0 0.0
    %3739 = vmatprep.subr.mxu0 0.0
    %3740 = vmatpush1.xpose.msra.mxu0 0.0
    %3741 = vmatprep.subr.mxu0 0.0
    %3742 = vmatpush1.xpose.msra.mxu0 0.0
    %3743 = vmatprep.subr.mxu0 0.0
    %3744 = vmatpush1.xpose.msra.mxu0 0.0
    %3745 = vmatprep.subr.mxu0 0.0
    %3746 = vmatpush1.xpose.msra.mxu0 0.0
    %3747 = vmatprep.subr.mxu0 0.0
    %3748 = vmatpush1.xpose.msra.mxu0 0.0
    %3749 = vmatprep.subr.mxu0 0.0
    %3750 = vmatpush1.xpose.msra.mxu0 0.0
    %3751 = vmatprep.subr.mxu0 0.0
    %3752 = vmatpush1.xpose.msra.mxu0 0.0
    %3753 = vmatprep.subr.mxu0 0.0
    %3754 = vmatpush1.xpose.msra.mxu0 0.0
    %3755 = vmatprep.subr.mxu0 0.0
    %3756 = vmatpush1.xpose.msra.mxu0 0.0
    %3757 = vmatprep.subr.mxu0 0.0
    %3758 = vmatpush1.xpose.msra.mxu0 0.0
    %3759 = vmatprep.subr.mxu0 0.0
    %3760 = vmatpush1.xpose.msra.mxu0 0.0
    %3761 = vmatprep.subr.mxu0 0.0
    %3762 = vmatpush1.xpose.msra.mxu0 0.0
    %3763 = vmatprep.subr.mxu0 0.0
    %3764 = vmatpush1.xpose.msra.mxu0 0.0
    %3765 = vmatprep.subr.mxu0 0.0
    %3766 = vmatpush1.xpose.msra.mxu0 0.0
    %3767 = vmatprep.subr.mxu0 0.0
    %3768 = vmatpush1.xpose.msra.mxu0 0.0
    %3769 = vmatprep.subr.mxu0 0.0
    %3770 = vmatpush1.xpose.msra.mxu0 0.0
    %3771 = vmatprep.subr.mxu0 0.0
    %3772 = vmatpush1.xpose.msra.mxu0 0.0
    %3773 = vmatprep.subr.mxu0 0.0
    %3774 = vmatpush1.xpose.msra.mxu0 0.0
    %3775 = vmatprep.subr.mxu0 0.0
    %3776 = vmatpush1.xpose.msra.mxu0 0.0
    %3777 = vmatprep.subr.mxu0 0.0
    %3778 = vmatpush1.xpose.msra.mxu0 0.0
    %3779 = vmatprep.subr.mxu0 0.0
    %3780 = vmatpush1.xpose.msra.mxu0 0.0
    %3781 = vmatprep.subr.mxu0 0.0
    %3782 = vmatpush1.xpose.msra.mxu0 0.0
    %3783 = vmatprep.subr.mxu0 0.0
    %3784 = vmatpush1.xpose.msra.mxu0 0.0
    %3785 = vmatprep.subr.mxu0 0.0
    %3786 = vmatpush1.xpose.msra.mxu0 0.0
    %3787 = vmatprep.subr.mxu0 0.0
    %3788 = vmatpush1.xpose.msra.mxu0 0.0
    %3789 = vmatprep.subr.mxu0 0.0
    %3790 = vmatpush1.xpose.msra.mxu0 0.0
    %3791 = vmatprep.mubr.f32.mxu0 0.0
    %3792 = vmatmul.mubr.f32.gmra.mrb[0].mxu0 %v3093
    %v3793 = vpop.f32.mrb[0].mxu0
    %v3794 = vadd.f32 %v635, %v3793
    %v3795 = vpop.f32.mrb[0].mxu0
    %3796 = vdwg.mxu0
    %v3797 = vsel %vm1388, %v3794, -inf
    %3798 = vmax.xlane.f32.xlu0 %v3797
    %v3799 = vpop.xlane.xlu0 %3798
    %v3800 = vsub.f32 %v3794, %v3799
    %v3801 = vmul.f32 %v3800, 1.442695
    %v3802 = vpow.pop %v3801
    %v3803 = vsel %vm1388, %v3802, 0.0
    %3804 = vadd.xlane.f32.xlu0 %v3803
    %v3805 = vpop.xlane.xlu0 %3804
    %v3806 = vrcp.pop %v3805
    %v3807 = vmul.f32 %v3802, %v3806
    %v3809 = vsel %vm1400, %v3807, 0
    %v3812 = vsel %vm1404, %v3164, 0
    %3814 = vmatprep.subr.mxu0 0.0
    %3815 = vmatpush1.msra.mxu0 %v3812
    %3816 = vmatprep.subr.mxu0 0.0
    %3817 = vmatpush1.msra.mxu0 0.0
    %3818 = vmatprep.subr.mxu0 0.0
    %3819 = vmatpush1.msra.mxu0 0.0
    %3820 = vmatprep.subr.mxu0 0.0
    %3821 = vmatpush1.msra.mxu0 0.0
    %3822 = vmatprep.subr.mxu0 0.0
    %3823 = vmatpush1.msra.mxu0 0.0
    %3824 = vmatprep.subr.mxu0 0.0
    %3825 = vmatpush1.msra.mxu0 0.0
    %3826 = vmatprep.subr.mxu0 0.0
    %3827 = vmatpush1.msra.mxu0 0.0
    %3828 = vmatprep.subr.mxu0 0.0
    %3829 = vmatpush1.msra.mxu0 0.0
    %3830 = vmatprep.subr.mxu0 0.0
    %3831 = vmatpush1.msra.mxu0 0.0
    %3832 = vmatprep.subr.mxu0 0.0
    %3833 = vmatpush1.msra.mxu0 0.0
    %3834 = vmatprep.subr.mxu0 0.0
    %3835 = vmatpush1.msra.mxu0 0.0
    %3836 = vmatprep.subr.mxu0 0.0
    %3837 = vmatpush1.msra.mxu0 0.0
    %3838 = vmatprep.subr.mxu0 0.0
    %3839 = vmatpush1.msra.mxu0 0.0
    %3840 = vmatprep.subr.mxu0 0.0
    %3841 = vmatpush1.msra.mxu0 0.0
    %3842 = vmatprep.subr.mxu0 0.0
    %3843 = vmatpush1.msra.mxu0 0.0
    %3844 = vmatprep.subr.mxu0 0.0
    %3845 = vmatpush1.msra.mxu0 0.0
    %3846 = vmatprep.subr.mxu0 0.0
    %3847 = vmatpush1.msra.mxu0 0.0
    %3848 = vmatprep.subr.mxu0 0.0
    %3849 = vmatpush1.msra.mxu0 0.0
    %3850 = vmatprep.subr.mxu0 0.0
    %3851 = vmatpush1.msra.mxu0 0.0
    %3852 = vmatprep.subr.mxu0 0.0
    %3853 = vmatpush1.msra.mxu0 0.0
    %3854 = vmatprep.subr.mxu0 0.0
    %3855 = vmatpush1.msra.mxu0 0.0
    %3856 = vmatprep.subr.mxu0 0.0
    %3857 = vmatpush1.msra.mxu0 0.0
    %3858 = vmatprep.subr.mxu0 0.0
    %3859 = vmatpush1.msra.mxu0 0.0
    %3860 = vmatprep.subr.mxu0 0.0
    %3861 = vmatpush1.msra.mxu0 0.0
    %3862 = vmatprep.subr.mxu0 0.0
    %3863 = vmatpush1.msra.mxu0 0.0
    %3864 = vmatprep.subr.mxu0 0.0
    %3865 = vmatpush1.msra.mxu0 0.0
    %3866 = vmatprep.subr.mxu0 0.0
    %3867 = vmatpush1.msra.mxu0 0.0
    %3868 = vmatprep.subr.mxu0 0.0
    %3869 = vmatpush1.msra.mxu0 0.0
    %3870 = vmatprep.subr.mxu0 0.0
    %3871 = vmatpush1.msra.mxu0 0.0
    %3872 = vmatprep.subr.mxu0 0.0
    %3873 = vmatpush1.msra.mxu0 0.0
    %3874 = vmatprep.subr.mxu0 0.0
    %3875 = vmatpush1.msra.mxu0 0.0
    %3876 = vmatprep.subr.mxu0 0.0
    %3877 = vmatpush1.msra.mxu0 0.0
    %3878 = vmatprep.mubr.f32.mxu0 0.0
    %3879 = vmatmul.mubr.f32.gmra.mrb[0].mxu0 %v3809
    %v3880 = vpop.f32.mrb[0].mxu0
    %v3881 = vadd.f32 0.0, %v3880
    %v3882 = vpop.f32.mrb[0].mxu0
    %3883 = vdwg.mxu0
    %s3884 = scalar_lea.vmem [#allocation16], 768
    %v3885 = vld [vmem:[%s3884] sm:$0xff]
    %v3886 = vld [vmem:[%s3884 + $0x8] sm:$0xff]
    %v3887 = vld [vmem:[%s3884 + $0x10] sm:$0xff]
    %v3888 = vld [vmem:[%s3884 + $0x18] sm:$0xff]
    %v3889 = vld [vmem:[%s3884 + $0x20] sm:$0xff]
    %v3890 = vld [vmem:[%s3884 + $0x28] sm:$0xff]
    %v3891 = vld [vmem:[%s3884 + $0x30] sm:$0xff]
    %v3892 = vld [vmem:[%s3884 + $0x38] sm:$0xff]
    %v3893 = vld [vmem:[%s3884 + $0x40] sm:$0xff]
    %v3894 = vld [vmem:[%s3884 + $0x48] sm:$0xff]
    %v3895 = vld [vmem:[%s3884 + $0x50] sm:$0xff]
    %v3896 = vld [vmem:[%s3884 + $0x58] sm:$0xff]
    %v3897 = vld [vmem:[%s3884 + $0x60] sm:$0xff]
    %v3898 = vld [vmem:[%s3884 + $0x68] sm:$0xff]
    %v3899 = vld [vmem:[%s3884 + $0x70] sm:$0xff]
    %v3900 = vld [vmem:[%s3884 + $0x78] sm:$0xff]
    %3901 = vmatprep.subr.mxu0 0.0
    %3902 = vmatpush1.msra.mxu0 %v3885
    %3903 = vmatprep.subr.mxu0 0.0
    %3904 = vmatpush1.msra.mxu0 %v3886
    %3905 = vmatprep.subr.mxu0 0.0
    %3906 = vmatpush1.msra.mxu0 %v3887
    %3907 = vmatprep.subr.mxu0 0.0
    %3908 = vmatpush1.msra.mxu0 %v3888
    %3909 = vmatprep.subr.mxu0 0.0
    %3910 = vmatpush1.msra.mxu0 %v3889
    %3911 = vmatprep.subr.mxu0 0.0
    %3912 = vmatpush1.msra.mxu0 %v3890
    %3913 = vmatprep.subr.mxu0 0.0
    %3914 = vmatpush1.msra.mxu0 %v3891
    %3915 = vmatprep.subr.mxu0 0.0
    %3916 = vmatpush1.msra.mxu0 %v3892
    %3917 = vmatprep.subr.mxu0 0.0
    %3918 = vmatpush1.msra.mxu0 %v3893
    %3919 = vmatprep.subr.mxu0 0.0
    %3920 = vmatpush1.msra.mxu0 %v3894
    %3921 = vmatprep.subr.mxu0 0.0
    %3922 = vmatpush1.msra.mxu0 %v3895
    %3923 = vmatprep.subr.mxu0 0.0
    %3924 = vmatpush1.msra.mxu0 %v3896
    %3925 = vmatprep.subr.mxu0 0.0
    %3926 = vmatpush1.msra.mxu0 %v3897
    %3927 = vmatprep.subr.mxu0 0.0
    %3928 = vmatpush1.msra.mxu0 %v3898
    %3929 = vmatprep.subr.mxu0 0.0
    %3930 = vmatpush1.msra.mxu0 %v3899
    %3931 = vmatprep.subr.mxu0 0.0
    %3932 = vmatpush1.msra.mxu0 %v3900
    %3933 = vmatprep.subr.mxu0 0.0
    %3934 = vmatpush1.msra.mxu0 0.0
    %3935 = vmatprep.subr.mxu0 0.0
    %3936 = vmatpush1.msra.mxu0 0.0
    %3937 = vmatprep.subr.mxu0 0.0
    %3938 = vmatpush1.msra.mxu0 0.0
    %3939 = vmatprep.subr.mxu0 0.0
    %3940 = vmatpush1.msra.mxu0 0.0
    %3941 = vmatprep.subr.mxu0 0.0
    %3942 = vmatpush1.msra.mxu0 0.0
    %3943 = vmatprep.subr.mxu0 0.0
    %3944 = vmatpush1.msra.mxu0 0.0
    %3945 = vmatprep.subr.mxu0 0.0
    %3946 = vmatpush1.msra.mxu0 0.0
    %3947 = vmatprep.subr.mxu0 0.0
    %3948 = vmatpush1.msra.mxu0 0.0
    %3949 = vmatprep.subr.mxu0 0.0
    %3950 = vmatpush1.msra.mxu0 0.0
    %3951 = vmatprep.subr.mxu0 0.0
    %3952 = vmatpush1.msra.mxu0 0.0
    %3953 = vmatprep.subr.mxu0 0.0
    %3954 = vmatpush1.msra.mxu0 0.0
    %3955 = vmatprep.subr.mxu0 0.0
    %3956 = vmatpush1.msra.mxu0 0.0
    %3957 = vmatprep.subr.mxu0 0.0
    %3958 = vmatpush1.msra.mxu0 0.0
    %3959 = vmatprep.subr.mxu0 0.0
    %3960 = vmatpush1.msra.mxu0 0.0
    %3961 = vmatprep.subr.mxu0 0.0
    %3962 = vmatpush1.msra.mxu0 0.0
    %3963 = vmatprep.subr.mxu0 0.0
    %3964 = vmatpush1.msra.mxu0 0.0
    %3965 = vmatprep.mubr.f32.mxu0 0.0
    %3966 = vmatmul.mubr.f32.gmra.mrb[0].mxu0 %v3881
    %v3967 = vpop.f32.mrb[0].mxu0
    %v3968 = vadd.f32 0.0, %v3967
    %v3969 = vpop.f32.mrb[0].mxu0
    %3970 = vdwg.mxu0
    %v3971 = vadd.f32 %v3724, %v3968
    %3972 = vmatprep.subr.mxu0 0.0
    %3973 = vmatpush1.xpose.msra.mxu0 %v3235
    %3974 = vmatprep.subr.mxu0 0.0
    %3975 = vmatpush1.xpose.msra.mxu0 0.0
    %3976 = vmatprep.subr.mxu0 0.0
    %3977 = vmatpush1.xpose.msra.mxu0 0.0
    %3978 = vmatprep.subr.mxu0 0.0
    %3979 = vmatpush1.xpose.msra.mxu0 0.0
    %3980 = vmatprep.subr.mxu0 0.0
    %3981 = vmatpush1.xpose.msra.mxu0 0.0
    %3982 = vmatprep.subr.mxu0 0.0
    %3983 = vmatpush1.xpose.msra.mxu0 0.0
    %3984 = vmatprep.subr.mxu0 0.0
    %3985 = vmatpush1.xpose.msra.mxu0 0.0
    %3986 = vmatprep.subr.mxu0 0.0
    %3987 = vmatpush1.xpose.msra.mxu0 0.0
    %3988 = vmatprep.subr.mxu0 0.0
    %3989 = vmatpush1.xpose.msra.mxu0 0.0
    %3990 = vmatprep.subr.mxu0 0.0
    %3991 = vmatpush1.xpose.msra.mxu0 0.0
    %3992 = vmatprep.subr.mxu0 0.0
    %3993 = vmatpush1.xpose.msra.mxu0 0.0
    %3994 = vmatprep.subr.mxu0 0.0
    %3995 = vmatpush1.xpose.msra.mxu0 0.0
    %3996 = vmatprep.subr.mxu0 0.0
    %3997 = vmatpush1.xpose.msra.mxu0 0.0
    %3998 = vmatprep.subr.mxu0 0.0
    %3999 = vmatpush1.xpose.msra.mxu0 0.0
    %4000 = vmatprep.subr.mxu0 0.0
    %4001 = vmatpush1.xpose.msra.mxu0 0.0
    %4002 = vmatprep.subr.mxu0 0.0
    %4003 = vmatpush1.xpose.msra.mxu0 0.0
    %4004 = vmatprep.subr.mxu0 0.0
    %4005 = vmatpush1.xpose.msra.mxu0 0.0
    %4006 = vmatprep.subr.mxu0 0.0
    %4007 = vmatpush1.xpose.msra.mxu0 0.0
    %4008 = vmatprep.subr.mxu0 0.0
    %4009 = vmatpush1.xpose.msra.mxu0 0.0
    %4010 = vmatprep.subr.mxu0 0.0
    %4011 = vmatpush1.xpose.msra.mxu0 0.0
    %4012 = vmatprep.subr.mxu0 0.0
    %4013 = vmatpush1.xpose.msra.mxu0 0.0
    %4014 = vmatprep.subr.mxu0 0.0
    %4015 = vmatpush1.xpose.msra.mxu0 0.0
    %4016 = vmatprep.subr.mxu0 0.0
    %4017 = vmatpush1.xpose.msra.mxu0 0.0
    %4018 = vmatprep.subr.mxu0 0.0
    %4019 = vmatpush1.xpose.msra.mxu0 0.0
    %4020 = vmatprep.subr.mxu0 0.0
    %4021 = vmatpush1.xpose.msra.mxu0 0.0
    %4022 = vmatprep.subr.mxu0 0.0
    %4023 = vmatpush1.xpose.msra.mxu0 0.0
    %4024 = vmatprep.subr.mxu0 0.0
    %4025 = vmatpush1.xpose.msra.mxu0 0.0
    %4026 = vmatprep.subr.mxu0 0.0
    %4027 = vmatpush1.xpose.msra.mxu0 0.0
    %4028 = vmatprep.subr.mxu0 0.0
    %4029 = vmatpush1.xpose.msra.mxu0 0.0
    %4030 = vmatprep.subr.mxu0 0.0
    %4031 = vmatpush1.xpose.msra.mxu0 0.0
    %4032 = vmatprep.subr.mxu0 0.0
    %4033 = vmatpush1.xpose.msra.mxu0 0.0
    %4034 = vmatprep.subr.mxu0 0.0
    %4035 = vmatpush1.xpose.msra.mxu0 0.0
    %4036 = vmatprep.mubr.f32.mxu0 0.0
    %4037 = vmatmul.mubr.f32.gmra.mrb[0].mxu0 %v3166
    %v4038 = vpop.f32.mrb[0].mxu0
    %v4039 = vadd.f32 %v635, %v4038
    %v4040 = vpop.f32.mrb[0].mxu0
    %4041 = vdwg.mxu0
    %v4042 = vsel %vm1388, %v4039, -inf
    %4043 = vmax.xlane.f32.xlu0 %v4042
    %v4044 = vpop.xlane.xlu0 %4043
    %v4045 = vsub.f32 %v4039, %v4044
    %v4046 = vmul.f32 %v4045, 1.442695
    %v4047 = vpow.pop %v4046
    %v4048 = vsel %vm1388, %v4047, 0.0
    %4049 = vadd.xlane.f32.xlu0 %v4048
    %v4050 = vpop.xlane.xlu0 %4049
    %v4051 = vrcp.pop %v4050
    %v4052 = vmul.f32 %v4047, %v4051
    %v4054 = vsel %vm1400, %v4052, 0
    %v4057 = vsel %vm1404, %v3237, 0
    %4059 = vmatprep.subr.mxu0 0.0
    %4060 = vmatpush1.msra.mxu0 %v4057
    %4061 = vmatprep.subr.mxu0 0.0
    %4062 = vmatpush1.msra.mxu0 0.0
    %4063 = vmatprep.subr.mxu0 0.0
    %4064 = vmatpush1.msra.mxu0 0.0
    %4065 = vmatprep.subr.mxu0 0.0
    %4066 = vmatpush1.msra.mxu0 0.0
    %4067 = vmatprep.subr.mxu0 0.0
    %4068 = vmatpush1.msra.mxu0 0.0
    %4069 = vmatprep.subr.mxu0 0.0
    %4070 = vmatpush1.msra.mxu0 0.0
    %4071 = vmatprep.subr.mxu0 0.0
    %4072 = vmatpush1.msra.mxu0 0.0
    %4073 = vmatprep.subr.mxu0 0.0
    %4074 = vmatpush1.msra.mxu0 0.0
    %4075 = vmatprep.subr.mxu0 0.0
    %4076 = vmatpush1.msra.mxu0 0.0
    %4077 = vmatprep.subr.mxu0 0.0
    %4078 = vmatpush1.msra.mxu0 0.0
    %4079 = vmatprep.subr.mxu0 0.0
    %4080 = vmatpush1.msra.mxu0 0.0
    %4081 = vmatprep.subr.mxu0 0.0
    %4082 = vmatpush1.msra.mxu0 0.0
    %4083 = vmatprep.subr.mxu0 0.0
    %4084 = vmatpush1.msra.mxu0 0.0
    %4085 = vmatprep.subr.mxu0 0.0
    %4086 = vmatpush1.msra.mxu0 0.0
    %4087 = vmatprep.subr.mxu0 0.0
    %4088 = vmatpush1.msra.mxu0 0.0
    %4089 = vmatprep.subr.mxu0 0.0
    %4090 = vmatpush1.msra.mxu0 0.0
    %4091 = vmatprep.subr.mxu0 0.0
    %4092 = vmatpush1.msra.mxu0 0.0
    %4093 = vmatprep.subr.mxu0 0.0
    %4094 = vmatpush1.msra.mxu0 0.0
    %4095 = vmatprep.subr.mxu0 0.0
    %4096 = vmatpush1.msra.mxu0 0.0
    %4097 = vmatprep.subr.mxu0 0.0
    %4098 = vmatpush1.msra.mxu0 0.0
    %4099 = vmatprep.subr.mxu0 0.0
    %4100 = vmatpush1.msra.mxu0 0.0
    %4101 = vmatprep.subr.mxu0 0.0
    %4102 = vmatpush1.msra.mxu0 0.0
    %4103 = vmatprep.subr.mxu0 0.0
    %4104 = vmatpush1.msra.mxu0 0.0
    %4105 = vmatprep.subr.mxu0 0.0
    %4106 = vmatpush1.msra.mxu0 0.0
    %4107 = vmatprep.subr.mxu0 0.0
    %4108 = vmatpush1.msra.mxu0 0.0
    %4109 = vmatprep.subr.mxu0 0.0
    %4110 = vmatpush1.msra.mxu0 0.0
    %4111 = vmatprep.subr.mxu0 0.0
    %4112 = vmatpush1.msra.mxu0 0.0
    %4113 = vmatprep.subr.mxu0 0.0
    %4114 = vmatpush1.msra.mxu0 0.0
    %4115 = vmatprep.subr.mxu0 0.0
    %4116 = vmatpush1.msra.mxu0 0.0
    %4117 = vmatprep.subr.mxu0 0.0
    %4118 = vmatpush1.msra.mxu0 0.0
    %4119 = vmatprep.subr.mxu0 0.0
    %4120 = vmatpush1.msra.mxu0 0.0
    %4121 = vmatprep.subr.mxu0 0.0
    %4122 = vmatpush1.msra.mxu0 0.0
    %4123 = vmatprep.mubr.f32.mxu0 0.0
    %4124 = vmatmul.mubr.f32.gmra.mrb[0].mxu0 %v4054
    %v4125 = vpop.f32.mrb[0].mxu0
    %v4126 = vadd.f32 0.0, %v4125
    %v4127 = vpop.f32.mrb[0].mxu0
    %4128 = vdwg.mxu0
    %s4129 = scalar_lea.vmem [#allocation16], 896
    %v4130 = vld [vmem:[%s4129] sm:$0xff]
    %v4131 = vld [vmem:[%s4129 + $0x8] sm:$0xff]
    %v4132 = vld [vmem:[%s4129 + $0x10] sm:$0xff]
    %v4133 = vld [vmem:[%s4129 + $0x18] sm:$0xff]
    %v4134 = vld [vmem:[%s4129 + $0x20] sm:$0xff]
    %v4135 = vld [vmem:[%s4129 + $0x28] sm:$0xff]
    %v4136 = vld [vmem:[%s4129 + $0x30] sm:$0xff]
    %v4137 = vld [vmem:[%s4129 + $0x38] sm:$0xff]
    %v4138 = vld [vmem:[%s4129 + $0x40] sm:$0xff]
    %v4139 = vld [vmem:[%s4129 + $0x48] sm:$0xff]
    %v4140 = vld [vmem:[%s4129 + $0x50] sm:$0xff]
    %v4141 = vld [vmem:[%s4129 + $0x58] sm:$0xff]
    %v4142 = vld [vmem:[%s4129 + $0x60] sm:$0xff]
    %v4143 = vld [vmem:[%s4129 + $0x68] sm:$0xff]
    %v4144 = vld [vmem:[%s4129 + $0x70] sm:$0xff]
    %v4145 = vld [vmem:[%s4129 + $0x78] sm:$0xff]
    %4146 = vmatprep.subr.mxu0 0.0
    %4147 = vmatpush1.msra.mxu0 %v4130
    %4148 = vmatprep.subr.mxu0 0.0
    %4149 = vmatpush1.msra.mxu0 %v4131
    %4150 = vmatprep.subr.mxu0 0.0
    %4151 = vmatpush1.msra.mxu0 %v4132
    %4152 = vmatprep.subr.mxu0 0.0
    %4153 = vmatpush1.msra.mxu0 %v4133
    %4154 = vmatprep.subr.mxu0 0.0
    %4155 = vmatpush1.msra.mxu0 %v4134
    %4156 = vmatprep.subr.mxu0 0.0
    %4157 = vmatpush1.msra.mxu0 %v4135
    %4158 = vmatprep.subr.mxu0 0.0
    %4159 = vmatpush1.msra.mxu0 %v4136
    %4160 = vmatprep.subr.mxu0 0.0
    %4161 = vmatpush1.msra.mxu0 %v4137
    %4162 = vmatprep.subr.mxu0 0.0
    %4163 = vmatpush1.msra.mxu0 %v4138
    %4164 = vmatprep.subr.mxu0 0.0
    %4165 = vmatpush1.msra.mxu0 %v4139
    %4166 = vmatprep.subr.mxu0 0.0
    %4167 = vmatpush1.msra.mxu0 %v4140
    %4168 = vmatprep.subr.mxu0 0.0
    %4169 = vmatpush1.msra.mxu0 %v4141
    %4170 = vmatprep.subr.mxu0 0.0
    %4171 = vmatpush1.msra.mxu0 %v4142
    %4172 = vmatprep.subr.mxu0 0.0
    %4173 = vmatpush1.msra.mxu0 %v4143
    %4174 = vmatprep.subr.mxu0 0.0
    %4175 = vmatpush1.msra.mxu0 %v4144
    %4176 = vmatprep.subr.mxu0 0.0
    %4177 = vmatpush1.msra.mxu0 %v4145
    %4178 = vmatprep.subr.mxu0 0.0
    %4179 = vmatpush1.msra.mxu0 0.0
    %4180 = vmatprep.subr.mxu0 0.0
    %4181 = vmatpush1.msra.mxu0 0.0
    %4182 = vmatprep.subr.mxu0 0.0
    %4183 = vmatpush1.msra.mxu0 0.0
    %4184 = vmatprep.subr.mxu0 0.0
    %4185 = vmatpush1.msra.mxu0 0.0
    %4186 = vmatprep.subr.mxu0 0.0
    %4187 = vmatpush1.msra.mxu0 0.0
    %4188 = vmatprep.subr.mxu0 0.0
    %4189 = vmatpush1.msra.mxu0 0.0
    %4190 = vmatprep.subr.mxu0 0.0
    %4191 = vmatpush1.msra.mxu0 0.0
    %4192 = vmatprep.subr.mxu0 0.0
    %4193 = vmatpush1.msra.mxu0 0.0
    %4194 = vmatprep.subr.mxu0 0.0
    %4195 = vmatpush1.msra.mxu0 0.0
    %4196 = vmatprep.subr.mxu0 0.0
    %4197 = vmatpush1.msra.mxu0 0.0
    %4198 = vmatprep.subr.mxu0 0.0
    %4199 = vmatpush1.msra.mxu0 0.0
    %4200 = vmatprep.subr.mxu0 0.0
    %4201 = vmatpush1.msra.mxu0 0.0
    %4202 = vmatprep.subr.mxu0 0.0
    %4203 = vmatpush1.msra.mxu0 0.0
    %4204 = vmatprep.subr.mxu0 0.0
    %4205 = vmatpush1.msra.mxu0 0.0
    %4206 = vmatprep.subr.mxu0 0.0
    %4207 = vmatpush1.msra.mxu0 0.0
    %4208 = vmatprep.subr.mxu0 0.0
    %4209 = vmatpush1.msra.mxu0 0.0
    %4210 = vmatprep.mubr.f32.mxu0 0.0
    %4211 = vmatmul.mubr.f32.gmra.mrb[0].mxu0 %v4126
    %v4212 = vpop.f32.mrb[0].mxu0
    %v4213 = vadd.f32 0.0, %v4212
    %v4214 = vpop.f32.mrb[0].mxu0
    %4215 = vdwg.mxu0
    %v4216 = vadd.f32 %v3971, %v4213
    %s4217 = scalar_lea.vmem [#allocation18], 1
    %v4218 = vld [vmem:[%s4217] sm:$0x1]
    %v4220 = vlaneseq
    %v4221 = vshrl.u32 %v4220, 7
    %v4222 = vsub.s32 0, %v4221
    %v4223 = vrot.slane %v4218, %v4222
    %v4225 = vadd.f32 %v4216, %v4223
    %v4226 = vadd.f32 %v2554, %v4225
    %s4227 = scalar_lea.vmem [#allocation19], 1
    %v4228 = vld [vmem:[%s4227] sm:$0x1]
    %s4229 = scalar_lea.vmem [#allocation21], 1
    %v4230 = vld [vmem:[%s4229] sm:$0x1]
    %v4231 = vsel %vm1404, %v4226, 0.0
    %4232 = vadd.xlane.f32.xlu0 %v4231
    %v4233 = vpop.xlane.xlu0 %4232
    %v4234 = vmul.f32 %v4233, 0.03125
    %v4235 = vsub.f32 %v4226, %v4234
    %v4236 = vmul.f32 %v4235, %v338
    %v4237 = vmul.f32 %v4236, %v4236
    %v4238 = vsel %vm1404, %v4237, 0.0
    %4239 = vadd.xlane.f32.xlu0 %v4238
    %v4240 = vpop.xlane.xlu0 %4239
    %v4241 = vmul.f32 %v4240, 0.03125
    %v4242 = vadd.f32 %v4241, 1e-05
    %v4243 = vrsqrt.pop %v4242
    %v4244 = vmul.f32 %v4236, %v4243
    %v4246 = vlaneseq
    %v4247 = vshrl.u32 %v4246, 7
    %v4248 = vsub.s32 0, %v4247
    %v4249 = vrot.slane %v4228, %v4248
    %v4251 = vmul.f32 %v4244, %v4249
    %v4253 = vlaneseq
    %v4254 = vshrl.u32 %v4253, 7
    %v4255 = vsub.s32 0, %v4254
    %v4256 = vrot.slane %v4230, %v4255
    %v4258 = vadd.f32 %v4251, %v4256
    %s4259 = scalar_lea.vmem [#allocation22], 128
    %v4260 = vld [vmem:[%s4259] sm:$0xff]
    %v4261 = vld [vmem:[%s4259 + $0x8] sm:$0xff]
    %v4262 = vld [vmem:[%s4259 + $0x10] sm:$0xff]
    %v4263 = vld [vmem:[%s4259 + $0x18] sm:$0xff]
    %v4264 = vld [vmem:[%s4259 + $0x20] sm:$0xff]
    %v4265 = vld [vmem:[%s4259 + $0x28] sm:$0xff]
    %v4266 = vld [vmem:[%s4259 + $0x30] sm:$0xff]
    %v4267 = vld [vmem:[%s4259 + $0x38] sm:$0xff]
    %v4268 = vld [vmem:[%s4259 + $0x40] sm:$0xff]
    %v4269 = vld [vmem:[%s4259 + $0x48] sm:$0xff]
    %v4270 = vld [vmem:[%s4259 + $0x50] sm:$0xff]
    %v4271 = vld [vmem:[%s4259 + $0x58] sm:$0xff]
    %v4272 = vld [vmem:[%s4259 + $0x60] sm:$0xff]
    %v4273 = vld [vmem:[%s4259 + $0x68] sm:$0xff]
    %v4274 = vld [vmem:[%s4259 + $0x70] sm:$0xff]
    %v4275 = vld [vmem:[%s4259 + $0x78] sm:$0xff]
    %s4276 = scalar_lea.vmem [#allocation24], 1
    %v4277 = vld [vmem:[%s4276] sm:$0x1]
    %v4279 = vlaneseq
    %v4280 = vshrl.u32 %v4279, 7
    %v4281 = vsub.s32 0, %v4280
    %v4282 = vrot.slane %v4277, %v4281
    %4284 = vmatprep.subr.mxu0 0.0
    %4285 = vmatpush1.msra.mxu0 %v4260
    %4286 = vmatprep.subr.mxu0 0.0
    %4287 = vmatpush1.msra.mxu0 %v4261
    %4288 = vmatprep.subr.mxu0 0.0
    %4289 = vmatpush1.msra.mxu0 %v4262
    %4290 = vmatprep.subr.mxu0 0.0
    %4291 = vmatpush1.msra.mxu0 %v4263
    %4292 = vmatprep.subr.mxu0 0.0
    %4293 = vmatpush1.msra.mxu0 %v4264
    %4294 = vmatprep.subr.mxu0 0.0
    %4295 = vmatpush1.msra.mxu0 %v4265
    %4296 = vmatprep.subr.mxu0 0.0
    %4297 = vmatpush1.msra.mxu0 %v4266
    %4298 = vmatprep.subr.mxu0 0.0
    %4299 = vmatpush1.msra.mxu0 %v4267
    %4300 = vmatprep.subr.mxu0 0.0
    %4301 = vmatpush1.msra.mxu0 %v4268
    %4302 = vmatprep.subr.mxu0 0.0
    %4303 = vmatpush1.msra.mxu0 %v4269
    %4304 = vmatprep.subr.mxu0 0.0
    %4305 = vmatpush1.msra.mxu0 %v4270
    %4306 = vmatprep.subr.mxu0 0.0
    %4307 = vmatpush1.msra.mxu0 %v4271
    %4308 = vmatprep.subr.mxu0 0.0
    %4309 = vmatpush1.msra.mxu0 %v4272
    %4310 = vmatprep.subr.mxu0 0.0
    %4311 = vmatpush1.msra.mxu0 %v4273
    %4312 = vmatprep.subr.mxu0 0.0
    %4313 = vmatpush1.msra.mxu0 %v4274
    %4314 = vmatprep.subr.mxu0 0.0
    %4315 = vmatpush1.msra.mxu0 %v4275
    %4316 = vmatprep.subr.mxu0 0.0
    %4317 = vmatpush1.msra.mxu0 0.0
    %4318 = vmatprep.subr.mxu0 0.0
    %4319 = vmatpush1.msra.mxu0 0.0
    %4320 = vmatprep.subr.mxu0 0.0
    %4321 = vmatpush1.msra.mxu0 0.0
    %4322 = vmatprep.subr.mxu0 0.0
    %4323 = vmatpush1.msra.mxu0 0.0
    %4324 = vmatprep.subr.mxu0 0.0
    %4325 = vmatpush1.msra.mxu0 0.0
    %4326 = vmatprep.subr.mxu0 0.0
    %4327 = vmatpush1.msra.mxu0 0.0
    %4328 = vmatprep.subr.mxu0 0.0
    %4329 = vmatpush1.msra.mxu0 0.0
    %4330 = vmatprep.subr.mxu0 0.0
    %4331 = vmatpush1.msra.mxu0 0.0
    %4332 = vmatprep.subr.mxu0 0.0
    %4333 = vmatpush1.msra.mxu0 0.0
    %4334 = vmatprep.subr.mxu0 0.0
    %4335 = vmatpush1.msra.mxu0 0.0
    %4336 = vmatprep.subr.mxu0 0.0
    %4337 = vmatpush1.msra.mxu0 0.0
    %4338 = vmatprep.subr.mxu0 0.0
    %4339 = vmatpush1.msra.mxu0 0.0
    %4340 = vmatprep.subr.mxu0 0.0
    %4341 = vmatpush1.msra.mxu0 0.0
    %4342 = vmatprep.subr.mxu0 0.0
    %4343 = vmatpush1.msra.mxu0 0.0
    %4344 = vmatprep.subr.mxu0 0.0
    %4345 = vmatpush1.msra.mxu0 0.0
    %4346 = vmatprep.subr.mxu0 0.0
    %4347 = vmatpush1.msra.mxu0 0.0
    %4348 = vmatprep.mubr.f32.mxu0 0.0
    %4349 = vmatmul.mubr.f32.gmra.mrb[0].mxu0 %v4258
    %v4350 = vpop.f32.mrb[0].mxu0
    %v4351 = vadd.f32 %v4282, %v4350
    %v4352 = vpop.f32.mrb[0].mxu0
    %4353 = vdwg.mxu0
    %v4354 = vmax.f32 %v4351, 0.0
    %s4355 = scalar_lea.vmem [#allocation25], 128
    %v4356 = vld [vmem:[%s4355] sm:$0xff]
    %v4357 = vld [vmem:[%s4355 + $0x8] sm:$0xff]
    %v4358 = vld [vmem:[%s4355 + $0x10] sm:$0xff]
    %v4359 = vld [vmem:[%s4355 + $0x18] sm:$0xff]
    %v4360 = vld [vmem:[%s4355 + $0x20] sm:$0xff]
    %v4361 = vld [vmem:[%s4355 + $0x28] sm:$0xff]
    %v4362 = vld [vmem:[%s4355 + $0x30] sm:$0xff]
    %v4363 = vld [vmem:[%s4355 + $0x38] sm:$0xff]
    %v4364 = vld [vmem:[%s4355 + $0x40] sm:$0xff]
    %v4365 = vld [vmem:[%s4355 + $0x48] sm:$0xff]
    %v4366 = vld [vmem:[%s4355 + $0x50] sm:$0xff]
    %v4367 = vld [vmem:[%s4355 + $0x58] sm:$0xff]
    %v4368 = vld [vmem:[%s4355 + $0x60] sm:$0xff]
    %v4369 = vld [vmem:[%s4355 + $0x68] sm:$0xff]
    %v4370 = vld [vmem:[%s4355 + $0x70] sm:$0xff]
    %v4371 = vld [vmem:[%s4355 + $0x78] sm:$0xff]
    %s4372 = scalar_lea.vmem [#allocation27], 1
    %v4373 = vld [vmem:[%s4372] sm:$0x1]
    %v4375 = vlaneseq
    %v4376 = vshrl.u32 %v4375, 7
    %v4377 = vsub.s32 0, %v4376
    %v4378 = vrot.slane %v4373, %v4377
    %4380 = vmatprep.subr.mxu0 0.0
    %4381 = vmatpush1.msra.mxu0 %v4356
    %4382 = vmatprep.subr.mxu0 0.0
    %4383 = vmatpush1.msra.mxu0 %v4357
    %4384 = vmatprep.subr.mxu0 0.0
    %4385 = vmatpush1.msra.mxu0 %v4358
    %4386 = vmatprep.subr.mxu0 0.0
    %4387 = vmatpush1.msra.mxu0 %v4359
    %4388 = vmatprep.subr.mxu0 0.0
    %4389 = vmatpush1.msra.mxu0 %v4360
    %4390 = vmatprep.subr.mxu0 0.0
    %4391 = vmatpush1.msra.mxu0 %v4361
    %4392 = vmatprep.subr.mxu0 0.0
    %4393 = vmatpush1.msra.mxu0 %v4362
    %4394 = vmatprep.subr.mxu0 0.0
    %4395 = vmatpush1.msra.mxu0 %v4363
    %4396 = vmatprep.subr.mxu0 0.0
    %4397 = vmatpush1.msra.mxu0 %v4364
    %4398 = vmatprep.subr.mxu0 0.0
    %4399 = vmatpush1.msra.mxu0 %v4365
    %4400 = vmatprep.subr.mxu0 0.0
    %4401 = vmatpush1.msra.mxu0 %v4366
    %4402 = vmatprep.subr.mxu0 0.0
    %4403 = vmatpush1.msra.mxu0 %v4367
    %4404 = vmatprep.subr.mxu0 0.0
    %4405 = vmatpush1.msra.mxu0 %v4368
    %4406 = vmatprep.subr.mxu0 0.0
    %4407 = vmatpush1.msra.mxu0 %v4369
    %4408 = vmatprep.subr.mxu0 0.0
    %4409 = vmatpush1.msra.mxu0 %v4370
    %4410 = vmatprep.subr.mxu0 0.0
    %4411 = vmatpush1.msra.mxu0 %v4371
    %4412 = vmatprep.subr.mxu0 0.0
    %4413 = vmatpush1.msra.mxu0 0.0
    %4414 = vmatprep.subr.mxu0 0.0
    %4415 = vmatpush1.msra.mxu0 0.0
    %4416 = vmatprep.subr.mxu0 0.0
    %4417 = vmatpush1.msra.mxu0 0.0
    %4418 = vmatprep.subr.mxu0 0.0
    %4419 = vmatpush1.msra.mxu0 0.0
    %4420 = vmatprep.subr.mxu0 0.0
    %4421 = vmatpush1.msra.mxu0 0.0
    %4422 = vmatprep.subr.mxu0 0.0
    %4423 = vmatpush1.msra.mxu0 0.0
    %4424 = vmatprep.subr.mxu0 0.0
    %4425 = vmatpush1.msra.mxu0 0.0
    %4426 = vmatprep.subr.mxu0 0.0
    %4427 = vmatpush1.msra.mxu0 0.0
    %4428 = vmatprep.subr.mxu0 0.0
    %4429 = vmatpush1.msra.mxu0 0.0
    %4430 = vmatprep.subr.mxu0 0.0
    %4431 = vmatpush1.msra.mxu0 0.0
    %4432 = vmatprep.subr.mxu0 0.0
    %4433 = vmatpush1.msra.mxu0 0.0
    %4434 = vmatprep.subr.mxu0 0.0
    %4435 = vmatpush1.msra.mxu0 0.0
    %4436 = vmatprep.subr.mxu0 0.0
    %4437 = vmatpush1.msra.mxu0 0.0
    %4438 = vmatprep.subr.mxu0 0.0
    %4439 = vmatpush1.msra.mxu0 0.0
    %4440 = vmatprep.subr.mxu0 0.0
    %4441 = vmatpush1.msra.mxu0 0.0
    %4442 = vmatprep.subr.mxu0 0.0
    %4443 = vmatpush1.msra.mxu0 0.0
    %4444 = vmatprep.mubr.f32.mxu0 0.0
    %4445 = vmatmul.mubr.f32.gmra.mrb[0].mxu0 %v4354
    %v4446 = vpop.f32.mrb[0].mxu0
    %v4447 = vadd.f32 %v4378, %v4446
    %v4448 = vpop.f32.mrb[0].mxu0
    %4449 = vdwg.mxu0
    %v4450 = vadd.f32 %v4258, %v4447
    %s4451 = scalar_lea.vmem [#allocation28], 1
    %v4452 = vld [vmem:[%s4451] sm:$0x1]
    %s4453 = scalar_lea.vmem [#allocation30], 1
    %v4454 = vld [vmem:[%s4453] sm:$0x1]
    %v4455 = vsel %vm1404, %v4450, 0.0
    %4456 = vadd.xlane.f32.xlu0 %v4455
    %v4457 = vpop.xlane.xlu0 %4456
    %v4458 = vmul.f32 %v4457, 0.03125
    %v4459 = vsub.f32 %v4450, %v4458
    %v4460 = vmul.f32 %v4459, %v338
    %v4461 = vmul.f32 %v4460, %v4460
    %v4462 = vsel %vm1404, %v4461, 0.0
    %4463 = vadd.xlane.f32.xlu0 %v4462
    %v4464 = vpop.xlane.xlu0 %4463
    %v4465 = vmul.f32 %v4464, 0.03125
    %v4466 = vadd.f32 %v4465, 1e-05
    %v4467 = vrsqrt.pop %v4466
    %v4468 = vmul.f32 %v4460, %v4467
    %v4470 = vlaneseq
    %v4471 = vshrl.u32 %v4470, 7
    %v4472 = vsub.s32 0, %v4471
    %v4473 = vrot.slane %v4452, %v4472
    %v4475 = vmul.f32 %v4468, %v4473
    %v4477 = vlaneseq
    %v4478 = vshrl.u32 %v4477, 7
    %v4479 = vsub.s32 0, %v4478
    %v4480 = vrot.slane %v4454, %v4479
    %v4482 = vadd.f32 %v4475, %v4480
    %4483 = vst [vmem:[#allocation35] sm:$0x3] %v4482
    %v4484 = vld [vmem:[#allocation31] sm:$0xff]
    %v4485 = vld [vmem:[#allocation31 + $0x8] sm:$0xff]
    %v4486 = vld [vmem:[#allocation31 + $0x10] sm:$0xff]
    %v4487 = vld [vmem:[#allocation31 + $0x18] sm:$0xff]
    %v4488 = vld [vmem:[#allocation31 + $0x20] sm:$0xff]
    %v4489 = vld [vmem:[#allocation31 + $0x28] sm:$0xff]
    %v4490 = vld [vmem:[#allocation31 + $0x30] sm:$0xff]
    %v4491 = vld [vmem:[#allocation31 + $0x38] sm:$0xff]
    %v4492 = vld [vmem:[#allocation31 + $0x40] sm:$0xff]
    %v4493 = vld [vmem:[#allocation31 + $0x48] sm:$0xff]
    %v4494 = vld [vmem:[#allocation31 + $0x50] sm:$0xff]
    %v4495 = vld [vmem:[#allocation31 + $0x58] sm:$0xff]
    %v4496 = vld [vmem:[#allocation31 + $0x60] sm:$0xff]
    %v4497 = vld [vmem:[#allocation31 + $0x68] sm:$0xff]
    %v4498 = vld [vmem:[#allocation31 + $0x70] sm:$0xff]
    %v4499 = vld [vmem:[#allocation31 + $0x78] sm:$0xff]
    %v4500 = vld [vmem:[#allocation33] sm:$0x1]
    %v4502 = vlaneseq
    %v4503 = vshrl.u32 %v4502, 7
    %v4504 = vsub.s32 0, %v4503
    %v4505 = vrot.slane %v4500, %v4504
    %4507 = vmatprep.subr.mxu0 0.0
    %4508 = vmatpush1.msra.mxu0 %v4484
    %4509 = vmatprep.subr.mxu0 0.0
    %4510 = vmatpush1.msra.mxu0 %v4485
    %4511 = vmatprep.subr.mxu0 0.0
    %4512 = vmatpush1.msra.mxu0 %v4486
    %4513 = vmatprep.subr.mxu0 0.0
    %4514 = vmatpush1.msra.mxu0 %v4487
    %4515 = vmatprep.subr.mxu0 0.0
    %4516 = vmatpush1.msra.mxu0 %v4488
    %4517 = vmatprep.subr.mxu0 0.0
    %4518 = vmatpush1.msra.mxu0 %v4489
    %4519 = vmatprep.subr.mxu0 0.0
    %4520 = vmatpush1.msra.mxu0 %v4490
    %4521 = vmatprep.subr.mxu0 0.0
    %4522 = vmatpush1.msra.mxu0 %v4491
    %4523 = vmatprep.subr.mxu0 0.0
    %4524 = vmatpush1.msra.mxu0 %v4492
    %4525 = vmatprep.subr.mxu0 0.0
    %4526 = vmatpush1.msra.mxu0 %v4493
    %4527 = vmatprep.subr.mxu0 0.0
    %4528 = vmatpush1.msra.mxu0 %v4494
    %4529 = vmatprep.subr.mxu0 0.0
    %4530 = vmatpush1.msra.mxu0 %v4495
    %4531 = vmatprep.subr.mxu0 0.0
    %4532 = vmatpush1.msra.mxu0 %v4496
    %4533 = vmatprep.subr.mxu0 0.0
    %4534 = vmatpush1.msra.mxu0 %v4497
    %4535 = vmatprep.subr.mxu0 0.0
    %4536 = vmatpush1.msra.mxu0 %v4498
    %4537 = vmatprep.subr.mxu0 0.0
    %4538 = vmatpush1.msra.mxu0 %v4499
    %4539 = vmatprep.subr.mxu0 0.0
    %4540 = vmatpush1.msra.mxu0 0.0
    %4541 = vmatprep.subr.mxu0 0.0
    %4542 = vmatpush1.msra.mxu0 0.0
    %4543 = vmatprep.subr.mxu0 0.0
    %4544 = vmatpush1.msra.mxu0 0.0
    %4545 = vmatprep.subr.mxu0 0.0
    %4546 = vmatpush1.msra.mxu0 0.0
    %4547 = vmatprep.subr.mxu0 0.0
    %4548 = vmatpush1.msra.mxu0 0.0
    %4549 = vmatprep.subr.mxu0 0.0
    %4550 = vmatpush1.msra.mxu0 0.0
    %4551 = vmatprep.subr.mxu0 0.0
    %4552 = vmatpush1.msra.mxu0 0.0
    %4553 = vmatprep.subr.mxu0 0.0
    %4554 = vmatpush1.msra.mxu0 0.0
    %4555 = vmatprep.subr.mxu0 0.0
    %4556 = vmatpush1.msra.mxu0 0.0
    %4557 = vmatprep.subr.mxu0 0.0
    %4558 = vmatpush1.msra.mxu0 0.0
    %4559 = vmatprep.subr.mxu0 0.0
    %4560 = vmatpush1.msra.mxu0 0.0
    %4561 = vmatprep.subr.mxu0 0.0
    %4562 = vmatpush1.msra.mxu0 0.0
    %4563 = vmatprep.subr.mxu0 0.0
    %4564 = vmatpush1.msra.mxu0 0.0
    %4565 = vmatprep.subr.mxu0 0.0
    %4566 = vmatpush1.msra.mxu0 0.0
    %4567 = vmatprep.subr.mxu0 0.0
    %4568 = vmatpush1.msra.mxu0 0.0
    %4569 = vmatprep.subr.mxu0 0.0
    %4570 = vmatpush1.msra.mxu0 0.0
    %4571 = vmatprep.mubr.f32.mxu0 0.0
    %4572 = vmatmul.mubr.f32.gmra.mrb[0].mxu0 %v4482
    %v4573 = vpop.f32.mrb[0].mxu0
    %v4574 = vadd.f32 %v4505, %v4573
    %v4575 = vpop.f32.mrb[0].mxu0
    %4576 = vdwg.mxu0
    %4577 = vst [vmem:[#allocation34] sm:$0x3] %v4574
    // Predicated region
    $region166: #{forward.1} parent=1 // pred_check
      _
    $region167: #{forward.1} parent=1 // pred_check_branch
      %4579 = sbr.rel (0) target = $region169
    $region168: #{forward.1} parent=1 // pred_region
      %s4581 = ssub.s32 32, 32
      %4582 = vsyncadd [#allocation4], %s4581
      %s4584 = sshll.u32 [#allocation34], 4
      %s4585 = int_to_ptr.vmem [resolvable:$true] %s4584
      %4587 = dma.vmem_to_hbm [thread:$0]  %s4585, 32, %s21, [#allocation4]
    $region169: #{forward.1} parent=1 // pred_fallthru
      _
    // Predicated region
    $region170: #{forward.1} parent=1 // pred_check
      _
    $region171: #{forward.1} parent=1 // pred_check_branch
      %4589 = sbr.rel (0) target = $region173
    $region172: #{forward.1} parent=1 // pred_region
      %s4591 = ssub.s32 32, 32
      %4592 = vsyncadd [#allocation36], %s4591
      %s4594 = sshll.u32 [#allocation35], 4
      %s4595 = int_to_ptr.vmem [resolvable:$true] %s4594
      %4597 = dma.vmem_to_hbm [thread:$0]  %s4595, 32, %s22, [#allocation36]
    $region173: #{forward.1} parent=1 // pred_fallthru
      _
    // Predicated region
    $region174: #{forward.1} parent=1 // pred_check
      _
    $region175: #{forward.1} parent=1 // pred_check_branch
      %4599 = sbr.rel (0) target = $region177
    $region176: #{forward.1} parent=1 // pred_region
      %4600 = dma.done [#allocation4], 32
    $region177: #{forward.1} parent=1 // pred_fallthru
      _
    // Predicated region
    $region178: #{forward.1} parent=1 // pred_check
      _
    $region179: #{forward.1} parent=1 // pred_check_branch
      %4602 = sbr.rel (0) target = $region181
    $region180: #{forward.1} parent=1 // pred_region
      %4603 = dma.done [#allocation36], 32
    $region181: #{forward.1} parent=1 // pred_fallthru
      _
    %4604 = vsyncpa [#allocation3], 1
    %4605 = vsyncpa [#allocation11], 1
    %4606 = vsyncpa [#allocation14], 1
    %4607 = vsyncpa [#allocation17], 1
    %4608 = vsyncpa [#allocation20], 1
    %4609 = vsyncpa [#allocation23], 1
    %4610 = vsyncpa [#allocation26], 1
    %4611 = vsyncpa [#allocation29], 1
    %4612 = vsyncpa [#allocation32], 1
    %4613 = vsyncpa [#allocation4], 1
    %4614 = vsyncpa [#allocation36], 1
    %4615 = vsyncpa [#allocation5], 1
    %4616 = vsyncpa [#allocation7], 1

</llo_original>
